<compile_context>
chip_gen: v7x
topology: tpu7x:2x2x1
jax: 0.10.0
libtpu: 0.0.40
codegen_flags: <defaults>
</compile_context>

<pallas_src>
import math

import jax
import jax.numpy as jnp
from jax import lax
from jax.experimental import pallas as pl
from jax.experimental.pallas import tpu as pltpu  # noqa: F401  (TPU backend)

# ---- static configuration (small shapes consistent with the module) ----
HID_DIM = 32
N_HEADS = 4
HEAD_DIM = HID_DIM // N_HEADS          # 8
POS_FF_DIM = 64
MAX_REL_POS = 64
SEQ = 8
BATCH = 2
G = N_HEADS * BATCH                    # 8 (head, batch) groups
EPS = 1e-5
SCALE = math.sqrt(HEAD_DIM)            # nn.Parameter(sqrt(head_dim)) deterministic init
INV_SCALE = 1.0 / SCALE

# ---- narrow slab (lane width = HEAD_DIM = 8): row offsets ----
_N_WQKV0, _N_WQKV1 = 0, 3 * N_HEADS * HID_DIM                          # 0 .. 384
_N_BQKV0, _N_BQKV1 = _N_WQKV1, _N_WQKV1 + 3 * N_HEADS * BATCH * SEQ    # 384 .. 576
_N_RELK0, _N_RELK1 = _N_BQKV1, _N_BQKV1 + SEQ * SEQ                    # 576 .. 640
_N_RELV0, _N_RELV1 = _N_RELK1, _N_RELK1 + SEQ * SEQ                    # 640 .. 704
NARROW_ROWS = _N_RELV1                                                 # 704

# ---- wide slab (lane width = POS_FF_DIM = 64): row offsets ----
_W_WO0,  _W_WO1  = 0, G * HEAD_DIM                                     # 0 .. 64
_W_WF10, _W_WF11 = _W_WO1, _W_WO1 + HID_DIM                            # 64 .. 96
_W_WF20, _W_WF21 = _W_WF11, _W_WF11 + POS_FF_DIM                       # 96 .. 160
_W_BO  = _W_WF21                                                       # 160
_W_G1  = _W_BO + 1
_W_BE1 = _W_G1 + 1
_W_BF1 = _W_BE1 + 1
_W_BF2 = _W_BF1 + 1
_W_G2  = _W_BF2 + 1
_W_BE2 = _W_G2 + 1
WIDE_ROWS = _W_BE2 + 2                                                 # 168 (8-aligned)


def encoder_layer_kernel(src_ref, wn_ref, ww_ref, out_ref):
    """Single invocation (no grid): src_ref is the full (B*S, H) token block."""
    bs = BATCH * SEQ
    src = src_ref[...]                                                 # (16, 32) f32

    # ---- unpack the two parameter slabs (static slices; minor dim unchanged) ----
    wqkv = wn_ref[_N_WQKV0:_N_WQKV1, :].reshape(3 * N_HEADS, HID_DIM, HEAD_DIM)
    bqkv = wn_ref[_N_BQKV0:_N_BQKV1, :].reshape(3 * N_HEADS, bs, HEAD_DIM)
    relk = wn_ref[_N_RELK0:_N_RELK1, :].reshape(SEQ, SEQ, HEAD_DIM)
    relv = wn_ref[_N_RELV0:_N_RELV1, :].reshape(SEQ, SEQ, HEAD_DIM)

    wo_g = ww_ref[_W_WO0:_W_WO1, :HID_DIM].reshape(G, HEAD_DIM, HID_DIM)
    wf1  = ww_ref[_W_WF10:_W_WF11, :POS_FF_DIM]                        # (32, 64)
    wf2  = ww_ref[_W_WF20:_W_WF21, :HID_DIM]                           # (64, 32)
    bo   = ww_ref[_W_BO:_W_BO + 1,   :HID_DIM]
    g1   = ww_ref[_W_G1:_W_G1 + 1,   :HID_DIM]
    be1  = ww_ref[_W_BE1:_W_BE1 + 1, :HID_DIM]
    bf1  = ww_ref[_W_BF1:_W_BF1 + 1, :POS_FF_DIM]
    bf2  = ww_ref[_W_BF2:_W_BF2 + 1, :HID_DIM]
    g2   = ww_ref[_W_G2:_W_G2 + 1,   :HID_DIM]
    be2  = ww_ref[_W_BE2:_W_BE2 + 1, :HID_DIM]

    # ---- fused, head-batched Q/K/V projection (one batched MXU dot + bias) ----
    src_b = jnp.broadcast_to(src[None], (3 * N_HEADS, bs, HID_DIM))
    qkv = lax.dot_general(src_b, wqkv,
                          dimension_numbers=(((2,), (1,)), ((0,), (0,))),
                          preferred_element_type=jnp.float32) + bqkv   # (12, 16, 8)
    # regroup to (G = head*B + batch, S, HD): attention runs block-diagonally,
    # so no cross-batch mask and no (B,B) tiling of the rel-pos tables.
    qkv_g = qkv.reshape(3 * G, SEQ, HEAD_DIM)                          # (24, 8, 8)
    q, k, v = qkv_g[:G], qkv_g[G:2 * G], qkv_g[2 * G:]                 # (G, S, HD)

    # ---- attention scores ----
    # content-content term, batched over groups on the MXU
    attn1 = lax.dot_general(q, k, (((2,), (2,)), ((0,), (0,))),
                            preferred_element_type=jnp.float32)        # (G, S, S)
    # content-position term: sum_d q[g,i,d] * relk[i,j,d]
    attn2 = jnp.sum(q[:, :, None, :] * relk[None], axis=-1)            # (G, S, S)

    a = (attn1 + attn2) * INV_SCALE
    a = a - jnp.max(a, axis=-1, keepdims=True)
    e = jnp.exp(a)
    p = e / jnp.sum(e, axis=-1, keepdims=True)      # exact softmax (rows sum to 1)

    # ---- attention output ----
    w1 = lax.dot_general(p, v, (((2,), (1,)), ((0,), (0,))),
                         preferred_element_type=jnp.float32)           # (G, S, HD)
    w2 = jnp.sum(p[:, :, :, None] * relv[None], axis=2)                # (G, S, HD)
    o_g = w1 + w2

    # output projection fc_o: one batched MXU dot over groups, reduce over heads
    xo = lax.dot_general(o_g, wo_g, (((2,), (1,)), ((0,), (0,))),
                         preferred_element_type=jnp.float32)           # (G, S, H)
    x = jnp.sum(xo.reshape(N_HEADS, BATCH, SEQ, HID_DIM), axis=0)      # (B, S, H)
    x = x.reshape(bs, HID_DIM) + bo                                    # (16, 32)

    # ---- residual + LayerNorm 1 ----
    r = src + x
    mu = jnp.mean(r, axis=-1, keepdims=True)
    var = jnp.mean((r - mu) ** 2, axis=-1, keepdims=True)
    y = (r - mu) * lax.rsqrt(var + EPS) * g1 + be1

    # ---- position-wise feed-forward ----
    h1 = jnp.maximum(
        jnp.dot(y, wf1, preferred_element_type=jnp.float32) + bf1, 0.0)
    ff = jnp.dot(h1, wf2, preferred_element_type=jnp.float32) + bf2

    # ---- residual + LayerNorm 2 ----
    r2 = y + ff
    mu2 = jnp.mean(r2, axis=-1, keepdims=True)
    var2 = jnp.mean((r2 - mu2) ** 2, axis=-1, keepdims=True)
    out = (r2 - mu2) * lax.rsqrt(var2 + EPS) * g2 + be2
    out_ref[...] = out.astype(out_ref.dtype)


# -------- parameter-build-time packing (runs ONCE, outside the hot path) --------
def pack_params(params):
    (wq, bq, wk, bk, wv, bv, wo, bo, table_k, table_v,
     g1, be1, wf1, bf1, wf2, bf2, g2, be2) = params
    H, NH, HD, S, B = HID_DIM, N_HEADS, HEAD_DIM, SEQ, BATCH
    bs = B * S

    def heads_w(w):          # (H, H) with (in, out) layout -> (NH, H, HD)
        return w.reshape(H, NH, HD).transpose(1, 0, 2)

    def heads_b(b):          # (1, H) -> (NH, B*S, HD), pre-broadcast (plain add in-kernel)
        return jnp.broadcast_to(b.reshape(NH, HD)[:, None, :], (NH, bs, HD))

    wqkv = jnp.concatenate([heads_w(wq), heads_w(wk), heads_w(wv)], axis=0)   # (12, H, HD)
    bqkv = jnp.concatenate([heads_b(bq), heads_b(bk), heads_b(bv)], axis=0)   # (12, bs, HD)

    # RelativePosition.forward (static gather, length_q = length_k = S)
    rng = jnp.arange(S)
    dist = jnp.clip(rng[None, :] - rng[:, None], -MAX_REL_POS, MAX_REL_POS) + MAX_REL_POS
    relk = table_k[dist]                                                      # (S, S, HD)
    relv = table_v[dist]

    w_narrow = jnp.concatenate(
        [wqkv.reshape(-1, HD), bqkv.reshape(-1, HD),
         relk.reshape(-1, HD), relv.reshape(-1, HD)], axis=0).astype(jnp.float32)
    assert w_narrow.shape == (NARROW_ROWS, HD)

    # fc_o weights: one (HD, H) block per (head, batch) group, g = h*B + b
    wo_g = jnp.repeat(wo.reshape(NH, HD, H), B, axis=0)                       # (G, HD, H)

    def pad_w(x):            # pad lane dim to POS_FF_DIM
        return jnp.pad(x, ((0, 0), (0, POS_FF_DIM - x.shape[1])))

    def row(x):
        return pad_w(x.reshape(1, -1))

    w_wide = jnp.concatenate(
        [pad_w(wo_g.reshape(G * HD, H)), pad_w(wf1), pad_w(wf2),
         row(bo), row(g1), row(be1), row(bf1), row(bf2), row(g2), row(be2),
         jnp.zeros((1, POS_FF_DIM), jnp.float32)], axis=0).astype(jnp.float32)
    assert w_wide.shape == (WIDE_ROWS, POS_FF_DIM)

    return w_narrow, w_wide


def encoder_layer(src, packed):
    """Per-call forward: a free reshape + ONE gridless pallas_call (3 input DMAs)."""
    w_narrow, w_wide = packed
    B, S, H = src.shape
    out2 = pl.pallas_call(
        encoder_layer_kernel,
        out_shape=jax.ShapeDtypeStruct((B * S, H), src.dtype),
        # no grid / no BlockSpecs: all operands (< 80 KB) resident in VMEM for
        # the single invocation; src + 2 packed slabs in, one 2 KB slab out.
    )(src.reshape(B * S, H), w_narrow, w_wide)
    return out2.reshape(B, S, H)


# ---------------- parameter setup & pure-JAX reference (glue) ----------------
def make_params(key):
    ks = jax.random.split(key, 12)
    std = 0.1
    wq = jax.random.normal(ks[0], (HID_DIM, HID_DIM), jnp.float32) * std   # (in, out)
    wk = jax.random.normal(ks[1], (HID_DIM, HID_DIM), jnp.float32) * std
    wv = jax.random.normal(ks[2], (HID_DIM, HID_DIM), jnp.float32) * std
    wo = jax.random.normal(ks[3], (HID_DIM, HID_DIM), jnp.float32) * std
    bq = jax.random.normal(ks[4], (1, HID_DIM), jnp.float32) * std
    bk = jax.random.normal(ks[5], (1, HID_DIM), jnp.float32) * std
    bv = jax.random.normal(ks[6], (1, HID_DIM), jnp.float32) * std
    bo = jax.random.normal(ks[7], (1, HID_DIM), jnp.float32) * std

    # RelativePosition embedding tables: (2*max_rel+1, head_dim)
    table_k = jax.random.normal(ks[8], (2 * MAX_REL_POS + 1, HEAD_DIM), jnp.float32) * std
    table_v = jax.random.normal(ks[9], (2 * MAX_REL_POS + 1, HEAD_DIM), jnp.float32) * std

    g1 = jnp.ones((1, HID_DIM), jnp.float32)            # LayerNorm default init
    be1 = jnp.zeros((1, HID_DIM), jnp.float32)
    g2 = jnp.ones((1, HID_DIM), jnp.float32)
    be2 = jnp.zeros((1, HID_DIM), jnp.float32)

    wf1 = jax.random.normal(ks[10], (HID_DIM, POS_FF_DIM), jnp.float32) * std
    bf1 = jnp.zeros((1, POS_FF_DIM), jnp.float32)
    wf2 = jax.random.normal(ks[11], (POS_FF_DIM, HID_DIM), jnp.float32) * std
    bf2 = jnp.zeros((1, HID_DIM), jnp.float32)

    return (wq, bq, wk, bk, wv, bv, wo, bo, table_k, table_v,
            g1, be1, wf1, bf1, wf2, bf2, g2, be2)


def _layernorm(x, g, b):
    mu = jnp.mean(x, axis=-1, keepdims=True)
    var = jnp.mean((x - mu) ** 2, axis=-1, keepdims=True)
    return (x - mu) * lax.rsqrt(var + EPS) * g + b


def reference(src, params):
    (wq, bq, wk, bk, wv, bv, wo, bo, table_k, table_v,
     g1, be1, wf1, bf1, wf2, bf2, g2, be2) = params
    B, S, H = src.shape
    rng = jnp.arange(S)
    dist = jnp.clip(rng[None, :] - rng[:, None], -MAX_REL_POS, MAX_REL_POS) + MAX_REL_POS
    relk = table_k[dist]
    relv = table_v[dist]
    q = src @ wq + bq
    k = src @ wk + bk
    v = src @ wv + bv
    q4 = q.reshape(B, S, N_HEADS, HEAD_DIM).transpose(0, 2, 1, 3)
    k4 = k.reshape(B, S, N_HEADS, HEAD_DIM).transpose(0, 2, 1, 3)
    v4 = v.reshape(B, S, N_HEADS, HEAD_DIM).transpose(0, 2, 1, 3)
    attn1 = jnp.einsum('bhid,bhjd->bhij', q4, k4)
    attn2 = jnp.einsum('bhid,ijd->bhij', q4, relk)
    p = jax.nn.softmax((attn1 + attn2) / SCALE, axis=-1)
    w1 = jnp.einsum('bhij,bhjd->bhid', p, v4)
    w2 = jnp.einsum('bhij,ijd->bhid', p, relv)
    x = (w1 + w2).transpose(0, 2, 1, 3).reshape(B, S, H)
    x = x @ wo + bo
    y = _layernorm(src + x, g1, be1)
    h1 = jnp.maximum(y @ wf1 + bf1, 0.0)
    ff = h1 @ wf2 + bf2
    return _layernorm(y + ff, g2, be2)


if __name__ == "__main__":
    key = jax.random.PRNGKey(0)
    k_src, k_par = jax.random.split(key)
    src = jax.random.normal(k_src, (BATCH, SEQ, HID_DIM), jnp.float32)
    params = make_params(k_par)

    # one-time, parameter-build-time packing (hoisted out of the forward path)
    packed = pack_params(params)
    packed = tuple(jax.block_until_ready(a) for a in packed)

    fwd = jax.jit(encoder_layer)
    out = jax.block_until_ready(fwd(src, packed))
    ref = jax.block_until_ready(reference(src, params))

    assert out.shape == (BATCH, SEQ, HID_DIM)
    err = float(jnp.max(jnp.abs(out - ref)))
    assert err < 1e-3, f"max abs err = {err}"
    print("KERNEL_OK")
</pallas_src>

<mosaic_0001>
module attributes {stable_mosaic.version = 11 : i64} {
  func.func @encoder_layer_kernel(%arg0: memref<16x32xf32, #tpu.memory_space<vmem>>, %arg1: memref<704x8xf32, #tpu.memory_space<vmem>>, %arg2: memref<168x64xf32, #tpu.memory_space<vmem>>, %arg3: memref<16x32xf32, #tpu.memory_space<vmem>>) attributes {dimension_semantics = [], scalar_prefetch = 0 : i64, scratch_operands = 0 : i64, tpu.core_type = #tpu.core_type<tc>} {
    %c0 = arith.constant 0 : index
    %c0_0 = arith.constant 0 : index
    %0 = vector.load %arg0[%c0, %c0_0] : memref<16x32xf32, #tpu.memory_space<vmem>>, vector<16x32xf32>
    %c0_1 = arith.constant 0 : index
    %c0_2 = arith.constant 0 : index
    %1 = vector.load %arg1[%c0_1, %c0_2] : memref<704x8xf32, #tpu.memory_space<vmem>>, vector<384x8xf32>
    %2 = vector.shape_cast %1 : vector<384x8xf32> to vector<12x32x8xf32>
    %c384 = arith.constant 384 : index
    %c0_3 = arith.constant 0 : index
    %3 = vector.load %arg1[%c384, %c0_3] : memref<704x8xf32, #tpu.memory_space<vmem>>, vector<192x8xf32>
    %4 = vector.shape_cast %3 : vector<192x8xf32> to vector<12x16x8xf32>
    %c576 = arith.constant 576 : index
    %c0_4 = arith.constant 0 : index
    %5 = vector.load %arg1[%c576, %c0_4] : memref<704x8xf32, #tpu.memory_space<vmem>>, vector<64x8xf32>
    %6 = vector.shape_cast %5 : vector<64x8xf32> to vector<8x8x8xf32>
    %c640 = arith.constant 640 : index
    %c0_5 = arith.constant 0 : index
    %7 = vector.load %arg1[%c640, %c0_5] : memref<704x8xf32, #tpu.memory_space<vmem>>, vector<64x8xf32>
    %8 = vector.shape_cast %7 : vector<64x8xf32> to vector<8x8x8xf32>
    %c0_6 = arith.constant 0 : index
    %c0_7 = arith.constant 0 : index
    %9 = vector.load %arg2[%c0_6, %c0_7] : memref<168x64xf32, #tpu.memory_space<vmem>>, vector<64x32xf32>
    %10 = vector.shape_cast %9 : vector<64x32xf32> to vector<8x8x32xf32>
    %c64 = arith.constant 64 : index
    %c0_8 = arith.constant 0 : index
    %11 = vector.load %arg2[%c64, %c0_8] : memref<168x64xf32, #tpu.memory_space<vmem>>, vector<32x64xf32>
    %c96 = arith.constant 96 : index
    %c0_9 = arith.constant 0 : index
    %12 = vector.load %arg2[%c96, %c0_9] : memref<168x64xf32, #tpu.memory_space<vmem>>, vector<64x32xf32>
    %c160 = arith.constant 160 : index
    %c0_10 = arith.constant 0 : index
    %13 = vector.load %arg2[%c160, %c0_10] : memref<168x64xf32, #tpu.memory_space<vmem>>, vector<1x32xf32>
    %c161 = arith.constant 161 : index
    %c0_11 = arith.constant 0 : index
    %14 = vector.load %arg2[%c161, %c0_11] : memref<168x64xf32, #tpu.memory_space<vmem>>, vector<1x32xf32>
    %c162 = arith.constant 162 : index
    %c0_12 = arith.constant 0 : index
    %15 = vector.load %arg2[%c162, %c0_12] : memref<168x64xf32, #tpu.memory_space<vmem>>, vector<1x32xf32>
    %c163 = arith.constant 163 : index
    %c0_13 = arith.constant 0 : index
    %16 = vector.load %arg2[%c163, %c0_13] : memref<168x64xf32, #tpu.memory_space<vmem>>, vector<1x64xf32>
    %c164 = arith.constant 164 : index
    %c0_14 = arith.constant 0 : index
    %17 = vector.load %arg2[%c164, %c0_14] : memref<168x64xf32, #tpu.memory_space<vmem>>, vector<1x32xf32>
    %c165 = arith.constant 165 : index
    %c0_15 = arith.constant 0 : index
    %18 = vector.load %arg2[%c165, %c0_15] : memref<168x64xf32, #tpu.memory_space<vmem>>, vector<1x32xf32>
    %c166 = arith.constant 166 : index
    %c0_16 = arith.constant 0 : index
    %19 = vector.load %arg2[%c166, %c0_16] : memref<168x64xf32, #tpu.memory_space<vmem>>, vector<1x32xf32>
    %20 = vector.shape_cast %0 : vector<16x32xf32> to vector<1x16x32xf32>
    %21 = vector.shape_cast %20 : vector<1x16x32xf32> to vector<1x16x32xf32>
    %22 = vector.broadcast %21 : vector<1x16x32xf32> to vector<12x16x32xf32>
    %cst = arith.constant dense<0.000000e+00> : vector<12x16x8xf32>
    %23 = tpu.matmul %22, %2, %cst {dimension_numbers = #tpu.dot_dimension_numbers<[2], [1], [1], [2], [0, 0, 0, 1, 1, 2], [0], [0]>} : vector<12x16x32xf32>, vector<12x32x8xf32>, vector<12x16x8xf32> -> vector<12x16x8xf32>
    %24 = arith.addf %23, %4 : vector<12x16x8xf32>
    %25 = vector.shape_cast %24 : vector<12x16x8xf32> to vector<24x8x8xf32>
    %26 = vector.extract_strided_slice %25 {offsets = [0, 0, 0], sizes = [8, 8, 8], strides = [1, 1, 1]} : vector<24x8x8xf32> to vector<8x8x8xf32>
    %27 = vector.extract_strided_slice %25 {offsets = [8, 0, 0], sizes = [8, 8, 8], strides = [1, 1, 1]} : vector<24x8x8xf32> to vector<8x8x8xf32>
    %28 = vector.extract_strided_slice %25 {offsets = [16, 0, 0], sizes = [8, 8, 8], strides = [1, 1, 1]} : vector<24x8x8xf32> to vector<8x8x8xf32>
    %cst_17 = arith.constant dense<0.000000e+00> : vector<8x8x8xf32>
    %29 = tpu.matmul %26, %27, %cst_17 {dimension_numbers = #tpu.dot_dimension_numbers<[2], [2], [1], [1], [0, 0, 0, 1, 1, 1], [0], [0]>} : vector<8x8x8xf32>, vector<8x8x8xf32>, vector<8x8x8xf32> -> vector<8x8x8xf32>
    %30 = vector.shape_cast %26 : vector<8x8x8xf32> to vector<8x8x1x8xf32>
    %31 = vector.shape_cast %6 : vector<8x8x8xf32> to vector<1x8x8x8xf32>
    %32 = vector.broadcast %30 : vector<8x8x1x8xf32> to vector<8x8x8x8xf32>
    %33 = vector.broadcast %31 : vector<1x8x8x8xf32> to vector<8x8x8x8xf32>
    %34 = arith.mulf %32, %33 : vector<8x8x8x8xf32>
    %cst_18 = arith.constant dense<0.000000e+00> : vector<8x8x8xf32>
    %35 = vector.multi_reduction <add>, %34, %cst_18 [3] : vector<8x8x8x8xf32> to vector<8x8x8xf32>
    %36 = arith.addf %29, %35 : vector<8x8x8xf32>
    %cst_19 = arith.constant 0.353553385 : f32
    %37 = vector.broadcast %cst_19 : f32 to vector<8x8x8xf32>
    %38 = arith.mulf %36, %37 : vector<8x8x8xf32>
    %cst_20 = arith.constant dense<0xFF800000> : vector<8x8xf32>
    %39 = vector.multi_reduction <maximumf>, %38, %cst_20 [2] : vector<8x8x8xf32> to vector<8x8xf32>
    %40 = vector.shape_cast %39 : vector<8x8xf32> to vector<8x8x1xf32>
    %41 = vector.broadcast %40 : vector<8x8x1xf32> to vector<8x8x8xf32>
    %42 = arith.subf %38, %41 : vector<8x8x8xf32>
    %43 = math.exp %42 : vector<8x8x8xf32>
    %cst_21 = arith.constant dense<0.000000e+00> : vector<8x8xf32>
    %44 = vector.multi_reduction <add>, %43, %cst_21 [2] : vector<8x8x8xf32> to vector<8x8xf32>
    %45 = vector.shape_cast %44 : vector<8x8xf32> to vector<8x8x1xf32>
    %46 = vector.broadcast %45 : vector<8x8x1xf32> to vector<8x8x8xf32>
    %47 = arith.divf %43, %46 : vector<8x8x8xf32>
    %cst_22 = arith.constant dense<0.000000e+00> : vector<8x8x8xf32>
    %48 = tpu.matmul %47, %28, %cst_22 {dimension_numbers = #tpu.dot_dimension_numbers<[2], [1], [1], [2], [0, 0, 0, 1, 1, 2], [0], [0]>} : vector<8x8x8xf32>, vector<8x8x8xf32>, vector<8x8x8xf32> -> vector<8x8x8xf32>
    %49 = vector.shape_cast %47 : vector<8x8x8xf32> to vector<8x8x8x1xf32>
    %50 = vector.shape_cast %8 : vector<8x8x8xf32> to vector<1x8x8x8xf32>
    %51 = vector.broadcast %49 : vector<8x8x8x1xf32> to vector<8x8x8x8xf32>
    %52 = vector.broadcast %50 : vector<1x8x8x8xf32> to vector<8x8x8x8xf32>
    %53 = arith.mulf %51, %52 : vector<8x8x8x8xf32>
    %cst_23 = arith.constant dense<0.000000e+00> : vector<8x8x8xf32>
    %54 = vector.multi_reduction <add>, %53, %cst_23 [2] : vector<8x8x8x8xf32> to vector<8x8x8xf32>
    %55 = arith.addf %48, %54 : vector<8x8x8xf32>
    %cst_24 = arith.constant dense<0.000000e+00> : vector<8x8x32xf32>
    %56 = tpu.matmul %55, %10, %cst_24 {dimension_numbers = #tpu.dot_dimension_numbers<[2], [1], [1], [2], [0, 0, 0, 1, 1, 2], [0], [0]>} : vector<8x8x8xf32>, vector<8x8x32xf32>, vector<8x8x32xf32> -> vector<8x8x32xf32>
    %57 = vector.shape_cast %56 : vector<8x8x32xf32> to vector<4x2x8x32xf32>
    %cst_25 = arith.constant dense<0.000000e+00> : vector<2x8x32xf32>
    %58 = vector.multi_reduction <add>, %57, %cst_25 [0] : vector<4x2x8x32xf32> to vector<2x8x32xf32>
    %59 = vector.shape_cast %58 : vector<2x8x32xf32> to vector<16x32xf32>
    %60 = vector.broadcast %13 : vector<1x32xf32> to vector<16x32xf32>
    %61 = arith.addf %59, %60 : vector<16x32xf32>
    %62 = arith.addf %0, %61 : vector<16x32xf32>
    %cst_26 = arith.constant dense<0.000000e+00> : vector<16xf32>
    %63 = vector.multi_reduction <add>, %62, %cst_26 [1] : vector<16x32xf32> to vector<16xf32>
    %64 = vector.shape_cast %63 : vector<16xf32> to vector<16x1xf32>
    %cst_27 = arith.constant 3.200000e+01 : f32
    %65 = vector.broadcast %cst_27 : f32 to vector<16x1xf32>
    %66 = arith.divf %64, %65 : vector<16x1xf32>
    %67 = vector.broadcast %66 : vector<16x1xf32> to vector<16x32xf32>
    %68 = arith.subf %62, %67 : vector<16x32xf32>
    %69 = arith.mulf %68, %68 : vector<16x32xf32>
    %cst_28 = arith.constant dense<0.000000e+00> : vector<16xf32>
    %70 = vector.multi_reduction <add>, %69, %cst_28 [1] : vector<16x32xf32> to vector<16xf32>
    %71 = vector.shape_cast %70 : vector<16xf32> to vector<16x1xf32>
    %cst_29 = arith.constant 3.200000e+01 : f32
    %72 = vector.broadcast %cst_29 : f32 to vector<16x1xf32>
    %73 = arith.divf %71, %72 : vector<16x1xf32>
    %74 = vector.broadcast %66 : vector<16x1xf32> to vector<16x32xf32>
    %75 = arith.subf %62, %74 : vector<16x32xf32>
    %cst_30 = arith.constant 9.99999974E-6 : f32
    %76 = vector.broadcast %cst_30 : f32 to vector<16x1xf32>
    %77 = arith.addf %73, %76 : vector<16x1xf32>
    %78 = math.rsqrt %77 : vector<16x1xf32>
    %79 = vector.broadcast %78 : vector<16x1xf32> to vector<16x32xf32>
    %80 = arith.mulf %75, %79 : vector<16x32xf32>
    %81 = vector.broadcast %14 : vector<1x32xf32> to vector<16x32xf32>
    %82 = arith.mulf %80, %81 : vector<16x32xf32>
    %83 = vector.broadcast %15 : vector<1x32xf32> to vector<16x32xf32>
    %84 = arith.addf %82, %83 : vector<16x32xf32>
    %cst_31 = arith.constant dense<0.000000e+00> : vector<16x64xf32>
    %85 = tpu.matmul %84, %11, %cst_31 {dimension_numbers = #tpu.dot_dimension_numbers<[1], [0], [0], [1], [0, 0, 1, 1], [], []>} : vector<16x32xf32>, vector<32x64xf32>, vector<16x64xf32> -> vector<16x64xf32>
    %86 = vector.broadcast %16 : vector<1x64xf32> to vector<16x64xf32>
    %87 = arith.addf %85, %86 : vector<16x64xf32>
    %cst_32 = arith.constant 0.000000e+00 : f32
    %88 = vector.broadcast %cst_32 : f32 to vector<16x64xf32>
    %89 = arith.maximumf %87, %88 : vector<16x64xf32>
    %cst_33 = arith.constant dense<0.000000e+00> : vector<16x32xf32>
    %90 = tpu.matmul %89, %12, %cst_33 {dimension_numbers = #tpu.dot_dimension_numbers<[1], [0], [0], [1], [0, 0, 1, 1], [], []>} : vector<16x64xf32>, vector<64x32xf32>, vector<16x32xf32> -> vector<16x32xf32>
    %91 = vector.broadcast %17 : vector<1x32xf32> to vector<16x32xf32>
    %92 = arith.addf %90, %91 : vector<16x32xf32>
    %93 = arith.addf %84, %92 : vector<16x32xf32>
    %cst_34 = arith.constant dense<0.000000e+00> : vector<16xf32>
    %94 = vector.multi_reduction <add>, %93, %cst_34 [1] : vector<16x32xf32> to vector<16xf32>
    %95 = vector.shape_cast %94 : vector<16xf32> to vector<16x1xf32>
    %cst_35 = arith.constant 3.200000e+01 : f32
    %96 = vector.broadcast %cst_35 : f32 to vector<16x1xf32>
    %97 = arith.divf %95, %96 : vector<16x1xf32>
    %98 = vector.broadcast %97 : vector<16x1xf32> to vector<16x32xf32>
    %99 = arith.subf %93, %98 : vector<16x32xf32>
    %100 = arith.mulf %99, %99 : vector<16x32xf32>
    %cst_36 = arith.constant dense<0.000000e+00> : vector<16xf32>
    %101 = vector.multi_reduction <add>, %100, %cst_36 [1] : vector<16x32xf32> to vector<16xf32>
    %102 = vector.shape_cast %101 : vector<16xf32> to vector<16x1xf32>
    %cst_37 = arith.constant 3.200000e+01 : f32
    %103 = vector.broadcast %cst_37 : f32 to vector<16x1xf32>
    %104 = arith.divf %102, %103 : vector<16x1xf32>
    %105 = vector.broadcast %97 : vector<16x1xf32> to vector<16x32xf32>
    %106 = arith.subf %93, %105 : vector<16x32xf32>
    %cst_38 = arith.constant 9.99999974E-6 : f32
    %107 = vector.broadcast %cst_38 : f32 to vector<16x1xf32>
    %108 = arith.addf %104, %107 : vector<16x1xf32>
    %109 = math.rsqrt %108 : vector<16x1xf32>
    %110 = vector.broadcast %109 : vector<16x1xf32> to vector<16x32xf32>
    %111 = arith.mulf %106, %110 : vector<16x32xf32>
    %112 = vector.broadcast %18 : vector<1x32xf32> to vector<16x32xf32>
    %113 = arith.mulf %111, %112 : vector<16x32xf32>
    %114 = vector.broadcast %19 : vector<1x32xf32> to vector<16x32xf32>
    %115 = arith.addf %113, %114 : vector<16x32xf32>
    %c0_39 = arith.constant 0 : index
    %c0_40 = arith.constant 0 : index
    %116 = vector.load %arg3[%c0_39, %c0_40] : memref<16x32xf32, #tpu.memory_space<vmem>>, vector<16x32xf32>
    tpu.vector_store %arg3[%c0_39, %c0_40], %115 {strides = array<i32>} : memref<16x32xf32, #tpu.memory_space<vmem>>, vector<16x32xf32>,
    return
  }
}

</mosaic_0001>

<llo_original>
// kernel: encoder_layer.1
$region0: #{encoder_layer.1}
  #allocation0 [shape = 'u32[]', space=smem, size = 0x4, offset = 0x4, fixed_abs, tag = 'smem constant byte address 0x4 - core index']
  #allocation1 [shape = 'u32[144,128]{1,0:T(1,128)}', space=vmem, size = 0x12000, scoped, tag = 'internal scratch']
  %s0 = inlined_call_operand.vmem [shape: f32[16,32], index: 0, kind: input, shape index: {}]
  %s1 = inlined_call_operand.vmem [shape: f32[704,8], index: 1, kind: input, shape index: {}]
  %s2 = inlined_call_operand.vmem [shape: f32[168,64], index: 2, kind: input, shape index: {}]
  %s3 = inlined_call_operand.hbm [shape: f32[16,32], index: 3, kind: output, shape index: {}]
  %s4 = sld [smem:[#allocation0]]
  $region22: #{encoder_layer.1} parent=0
    _
  %s6 = ssub.s32 1, %s4
  %s7 = scalar_select 0, %s6, %s4
  $region1: #{encoder_layer.1} parent=0
    #allocation2 [shape = 'u8[8192]{0}', space=vmem, size = 0x2000, scoped, tag = 'output window, operand 0, single buffered']
    #allocation3 [shape = 's32[1]{0}', space=sflag, size = 0x4, scoped, tag = 'scoped memory for encoder_layer.1']
    %8 = vsyncpa [#allocation3], 0
    // Predicated region
    $region2: #{encoder_layer.1} parent=1 // pred_check
      _
    $region3: #{encoder_layer.1} parent=1 // pred_check_branch
      %10 = sbr.rel (0) target = $region5
    $region4: #{encoder_layer.1} parent=1 // pred_region
      _
    $region5: #{encoder_layer.1} parent=1 // pred_fallthru
      _
    // Predicated region
    $region6: #{encoder_layer.1} parent=1 // pred_check
      _
    $region7: #{encoder_layer.1} parent=1 // pred_check_branch
      %12 = sbr.rel (0) target = $region9
    $region8: #{encoder_layer.1} parent=1 // pred_region
      _
    $region9: #{encoder_layer.1} parent=1 // pred_fallthru
      _
    // Predicated region
    $region10: #{encoder_layer.1} parent=1 // pred_check
      _
    $region11: #{encoder_layer.1} parent=1 // pred_check_branch
      %14 = sbr.rel (0) target = $region13
    $region12: #{encoder_layer.1} parent=1 // pred_region
      _
    $region13: #{encoder_layer.1} parent=1 // pred_fallthru
      _
    %v15 = vld [vmem:[%s0] sm:$0xff]
    %v16 = vld [vmem:[%s0 + $0x8] sm:$0xff]
    %v17 = vld [vmem:[%s1] sm:$0xff]
    %v18 = vld [vmem:[%s1 + $0x8] sm:$0xff]
    %v19 = vld [vmem:[%s1 + $0x10] sm:$0xff]
    %v20 = vld [vmem:[%s1 + $0x18] sm:$0xff]
    %v21 = vld [vmem:[%s1 + $0x20] sm:$0xff]
    %v22 = vld [vmem:[%s1 + $0x28] sm:$0xff]
    %v23 = vld [vmem:[%s1 + $0x30] sm:$0xff]
    %v24 = vld [vmem:[%s1 + $0x38] sm:$0xff]
    %v25 = vld [vmem:[%s1 + $0x40] sm:$0xff]
    %v26 = vld [vmem:[%s1 + $0x48] sm:$0xff]
    %v27 = vld [vmem:[%s1 + $0x50] sm:$0xff]
    %v28 = vld [vmem:[%s1 + $0x58] sm:$0xff]
    %v29 = vld [vmem:[%s1 + $0x60] sm:$0xff]
    %v30 = vld [vmem:[%s1 + $0x68] sm:$0xff]
    %v31 = vld [vmem:[%s1 + $0x70] sm:$0xff]
    %v32 = vld [vmem:[%s1 + $0x78] sm:$0xff]
    %v33 = vld [vmem:[%s1 + $0x80] sm:$0xff]
    %v34 = vld [vmem:[%s1 + $0x88] sm:$0xff]
    %v35 = vld [vmem:[%s1 + $0x90] sm:$0xff]
    %v36 = vld [vmem:[%s1 + $0x98] sm:$0xff]
    %v37 = vld [vmem:[%s1 + $0xa0] sm:$0xff]
    %v38 = vld [vmem:[%s1 + $0xa8] sm:$0xff]
    %v39 = vld [vmem:[%s1 + $0xb0] sm:$0xff]
    %v40 = vld [vmem:[%s1 + $0xb8] sm:$0xff]
    %v41 = vld [vmem:[%s1 + $0xc0] sm:$0xff]
    %v42 = vld [vmem:[%s1 + $0xc8] sm:$0xff]
    %v43 = vld [vmem:[%s1 + $0xd0] sm:$0xff]
    %v44 = vld [vmem:[%s1 + $0xd8] sm:$0xff]
    %v45 = vld [vmem:[%s1 + $0xe0] sm:$0xff]
    %v46 = vld [vmem:[%s1 + $0xe8] sm:$0xff]
    %v47 = vld [vmem:[%s1 + $0xf0] sm:$0xff]
    %v48 = vld [vmem:[%s1 + $0xf8] sm:$0xff]
    %v49 = vld [vmem:[%s1 + $0x100] sm:$0xff]
    %v50 = vld [vmem:[%s1 + $0x108] sm:$0xff]
    %v51 = vld [vmem:[%s1 + $0x110] sm:$0xff]
    %v52 = vld [vmem:[%s1 + $0x118] sm:$0xff]
    %v53 = vld [vmem:[%s1 + $0x120] sm:$0xff]
    %v54 = vld [vmem:[%s1 + $0x128] sm:$0xff]
    %v55 = vld [vmem:[%s1 + $0x130] sm:$0xff]
    %v56 = vld [vmem:[%s1 + $0x138] sm:$0xff]
    %v57 = vld [vmem:[%s1 + $0x140] sm:$0xff]
    %v58 = vld [vmem:[%s1 + $0x148] sm:$0xff]
    %v59 = vld [vmem:[%s1 + $0x150] sm:$0xff]
    %v60 = vld [vmem:[%s1 + $0x158] sm:$0xff]
    %v61 = vld [vmem:[%s1 + $0x160] sm:$0xff]
    %v62 = vld [vmem:[%s1 + $0x168] sm:$0xff]
    %v63 = vld [vmem:[%s1 + $0x170] sm:$0xff]
    %v64 = vld [vmem:[%s1 + $0x178] sm:$0xff]
    %v65 = vld [vmem:[%s1 + $0x180] sm:$0xff]
    %v66 = vld [vmem:[%s1 + $0x188] sm:$0xff]
    %v67 = vld [vmem:[%s1 + $0x190] sm:$0xff]
    %v68 = vld [vmem:[%s1 + $0x198] sm:$0xff]
    %v69 = vld [vmem:[%s1 + $0x1a0] sm:$0xff]
    %v70 = vld [vmem:[%s1 + $0x1a8] sm:$0xff]
    %v71 = vld [vmem:[%s1 + $0x1b0] sm:$0xff]
    %v72 = vld [vmem:[%s1 + $0x1b8] sm:$0xff]
    %v73 = vld [vmem:[%s1 + $0x1c0] sm:$0xff]
    %v74 = vld [vmem:[%s1 + $0x1c8] sm:$0xff]
    %v75 = vld [vmem:[%s1 + $0x1d0] sm:$0xff]
    %v76 = vld [vmem:[%s1 + $0x1d8] sm:$0xff]
    %v77 = vld [vmem:[%s1 + $0x1e0] sm:$0xff]
    %v78 = vld [vmem:[%s1 + $0x1e8] sm:$0xff]
    %v79 = vld [vmem:[%s1 + $0x1f0] sm:$0xff]
    %v80 = vld [vmem:[%s1 + $0x1f8] sm:$0xff]
    %v81 = vld [vmem:[%s1 + $0x200] sm:$0xff]
    %v82 = vld [vmem:[%s1 + $0x208] sm:$0xff]
    %v83 = vld [vmem:[%s1 + $0x210] sm:$0xff]
    %v84 = vld [vmem:[%s1 + $0x218] sm:$0xff]
    %v85 = vld [vmem:[%s1 + $0x220] sm:$0xff]
    %v86 = vld [vmem:[%s1 + $0x228] sm:$0xff]
    %v87 = vld [vmem:[%s1 + $0x230] sm:$0xff]
    %v88 = vld [vmem:[%s1 + $0x238] sm:$0xff]
    %v89 = vld [vmem:[%s1 + $0x240] sm:$0xff]
    %v90 = vld [vmem:[%s1 + $0x248] sm:$0xff]
    %v91 = vld [vmem:[%s1 + $0x250] sm:$0xff]
    %v92 = vld [vmem:[%s1 + $0x258] sm:$0xff]
    %v93 = vld [vmem:[%s1 + $0x260] sm:$0xff]
    %v94 = vld [vmem:[%s1 + $0x268] sm:$0xff]
    %v95 = vld [vmem:[%s1 + $0x270] sm:$0xff]
    %v96 = vld [vmem:[%s1 + $0x278] sm:$0xff]
    %v97 = vld [vmem:[%s1 + $0x280] sm:$0xff]
    %v98 = vld [vmem:[%s1 + $0x288] sm:$0xff]
    %v99 = vld [vmem:[%s1 + $0x290] sm:$0xff]
    %v100 = vld [vmem:[%s1 + $0x298] sm:$0xff]
    %v101 = vld [vmem:[%s1 + $0x2a0] sm:$0xff]
    %v102 = vld [vmem:[%s1 + $0x2a8] sm:$0xff]
    %v103 = vld [vmem:[%s1 + $0x2b0] sm:$0xff]
    %v104 = vld [vmem:[%s1 + $0x2b8] sm:$0xff]
    %v105 = vld [vmem:[%s2] sm:$0xff]
    %v106 = vld [vmem:[%s2 + $0x8] sm:$0xff]
    %v107 = vld [vmem:[%s2 + $0x10] sm:$0xff]
    %v108 = vld [vmem:[%s2 + $0x18] sm:$0xff]
    %v109 = vld [vmem:[%s2 + $0x20] sm:$0xff]
    %v110 = vld [vmem:[%s2 + $0x28] sm:$0xff]
    %v111 = vld [vmem:[%s2 + $0x30] sm:$0xff]
    %v112 = vld [vmem:[%s2 + $0x38] sm:$0xff]
    %v113 = vld [vmem:[%s2 + $0x40] sm:$0xff]
    %v114 = vld [vmem:[%s2 + $0x48] sm:$0xff]
    %v115 = vld [vmem:[%s2 + $0x50] sm:$0xff]
    %v116 = vld [vmem:[%s2 + $0x58] sm:$0xff]
    %v117 = vld [vmem:[%s2 + $0x60] sm:$0xff]
    %v118 = vld [vmem:[%s2 + $0x68] sm:$0xff]
    %v119 = vld [vmem:[%s2 + $0x70] sm:$0xff]
    %v120 = vld [vmem:[%s2 + $0x78] sm:$0xff]
    %v121 = vld [vmem:[%s2 + $0x80] sm:$0xff]
    %v122 = vld [vmem:[%s2 + $0x88] sm:$0xff]
    %v123 = vld [vmem:[%s2 + $0x90] sm:$0xff]
    %v124 = vld [vmem:[%s2 + $0x98] sm:$0xff]
    %v125 = vld [vmem:[%s2 + $0xa0] sm:$0x1]
    %v126 = vld [vmem:[%s2 + $0xa1] sm:$0x1]
    %v127 = vld [vmem:[%s2 + $0xa2] sm:$0x1]
    %v128 = vld [vmem:[%s2 + $0xa3] sm:$0x1]
    %v129 = vld [vmem:[%s2 + $0xa4] sm:$0x1]
    %v130 = vld [vmem:[%s2 + $0xa5] sm:$0x1]
    %v131 = vld [vmem:[%s2 + $0xa6] sm:$0x1]
    %vm132 = vcmask 261120
    %v134 = vsel %vm132, %v15, 0
    %v137 = vsel %vm132, %v16, 0
    %139 = vmatprep.subr.mxu0 0.0
    %140 = vmatpush1.msra.mxu0 %v17
    %141 = vmatprep.subr.mxu0 0.0
    %142 = vmatpush1.msra.mxu0 %v18
    %143 = vmatprep.subr.mxu0 0.0
    %144 = vmatpush1.msra.mxu0 %v19
    %145 = vmatprep.subr.mxu0 0.0
    %146 = vmatpush1.msra.mxu0 %v20
    %147 = vmatprep.subr.mxu0 0.0
    %148 = vmatpush1.msra.mxu0 0.0
    %149 = vmatprep.subr.mxu0 0.0
    %150 = vmatpush1.msra.mxu0 0.0
    %151 = vmatprep.subr.mxu0 0.0
    %152 = vmatpush1.msra.mxu0 0.0
    %153 = vmatprep.subr.mxu0 0.0
    %154 = vmatpush1.msra.mxu0 0.0
    %155 = vmatprep.subr.mxu0 0.0
    %156 = vmatpush1.msra.mxu0 0.0
    %157 = vmatprep.subr.mxu0 0.0
    %158 = vmatpush1.msra.mxu0 0.0
    %159 = vmatprep.subr.mxu0 0.0
    %160 = vmatpush1.msra.mxu0 0.0
    %161 = vmatprep.subr.mxu0 0.0
    %162 = vmatpush1.msra.mxu0 0.0
    %163 = vmatprep.subr.mxu0 0.0
    %164 = vmatpush1.msra.mxu0 0.0
    %165 = vmatprep.subr.mxu0 0.0
    %166 = vmatpush1.msra.mxu0 0.0
    %167 = vmatprep.subr.mxu0 0.0
    %168 = vmatpush1.msra.mxu0 0.0
    %169 = vmatprep.subr.mxu0 0.0
    %170 = vmatpush1.msra.mxu0 0.0
    %171 = vmatprep.subr.mxu0 0.0
    %172 = vmatpush1.msra.mxu0 0.0
    %173 = vmatprep.subr.mxu0 0.0
    %174 = vmatpush1.msra.mxu0 0.0
    %175 = vmatprep.subr.mxu0 0.0
    %176 = vmatpush1.msra.mxu0 0.0
    %177 = vmatprep.subr.mxu0 0.0
    %178 = vmatpush1.msra.mxu0 0.0
    %179 = vmatprep.subr.mxu0 0.0
    %180 = vmatpush1.msra.mxu0 0.0
    %181 = vmatprep.subr.mxu0 0.0
    %182 = vmatpush1.msra.mxu0 0.0
    %183 = vmatprep.subr.mxu0 0.0
    %184 = vmatpush1.msra.mxu0 0.0
    %185 = vmatprep.subr.mxu0 0.0
    %186 = vmatpush1.msra.mxu0 0.0
    %187 = vmatprep.subr.mxu0 0.0
    %188 = vmatpush1.msra.mxu0 0.0
    %189 = vmatprep.subr.mxu0 0.0
    %190 = vmatpush1.msra.mxu0 0.0
    %191 = vmatprep.subr.mxu0 0.0
    %192 = vmatpush1.msra.mxu0 0.0
    %193 = vmatprep.subr.mxu0 0.0
    %194 = vmatpush1.msra.mxu0 0.0
    %195 = vmatprep.subr.mxu0 0.0
    %196 = vmatpush1.msra.mxu0 0.0
    %197 = vmatprep.subr.mxu0 0.0
    %198 = vmatpush1.msra.mxu0 0.0
    %199 = vmatprep.subr.mxu0 0.0
    %200 = vmatpush1.msra.mxu0 0.0
    %201 = vmatprep.subr.mxu0 0.0
    %202 = vmatpush1.msra.mxu0 0.0
    %203 = vmatprep.mubr.f32.mxu0 0.0
    %204 = vmatmul.mubr.f32.gmra.mrb[0].mxu0 %v134
    %v205 = vpop.f32.mrb[0].mxu0
    %v206 = vadd.f32 %v65, %v205
    %v207 = vpop.f32.mrb[0].mxu0
    %208 = vmatprep.mubr.f32.mxu0 0.0
    %209 = vmatmul.mubr.f32.gmra.mrb[0].mxu0 %v137
    %v210 = vpop.f32.mrb[0].mxu0
    %v211 = vadd.f32 %v66, %v210
    %v212 = vpop.f32.mrb[0].mxu0
    %213 = vdwg.mxu0
    %214 = vmatprep.subr.mxu0 0.0
    %215 = vmatpush1.msra.mxu0 %v21
    %216 = vmatprep.subr.mxu0 0.0
    %217 = vmatpush1.msra.mxu0 %v22
    %218 = vmatprep.subr.mxu0 0.0
    %219 = vmatpush1.msra.mxu0 %v23
    %220 = vmatprep.subr.mxu0 0.0
    %221 = vmatpush1.msra.mxu0 %v24
    %222 = vmatprep.subr.mxu0 0.0
    %223 = vmatpush1.msra.mxu0 0.0
    %224 = vmatprep.subr.mxu0 0.0
    %225 = vmatpush1.msra.mxu0 0.0
    %226 = vmatprep.subr.mxu0 0.0
    %227 = vmatpush1.msra.mxu0 0.0
    %228 = vmatprep.subr.mxu0 0.0
    %229 = vmatpush1.msra.mxu0 0.0
    %230 = vmatprep.subr.mxu0 0.0
    %231 = vmatpush1.msra.mxu0 0.0
    %232 = vmatprep.subr.mxu0 0.0
    %233 = vmatpush1.msra.mxu0 0.0
    %234 = vmatprep.subr.mxu0 0.0
    %235 = vmatpush1.msra.mxu0 0.0
    %236 = vmatprep.subr.mxu0 0.0
    %237 = vmatpush1.msra.mxu0 0.0
    %238 = vmatprep.subr.mxu0 0.0
    %239 = vmatpush1.msra.mxu0 0.0
    %240 = vmatprep.subr.mxu0 0.0
    %241 = vmatpush1.msra.mxu0 0.0
    %242 = vmatprep.subr.mxu0 0.0
    %243 = vmatpush1.msra.mxu0 0.0
    %244 = vmatprep.subr.mxu0 0.0
    %245 = vmatpush1.msra.mxu0 0.0
    %246 = vmatprep.subr.mxu0 0.0
    %247 = vmatpush1.msra.mxu0 0.0
    %248 = vmatprep.subr.mxu0 0.0
    %249 = vmatpush1.msra.mxu0 0.0
    %250 = vmatprep.subr.mxu0 0.0
    %251 = vmatpush1.msra.mxu0 0.0
    %252 = vmatprep.subr.mxu0 0.0
    %253 = vmatpush1.msra.mxu0 0.0
    %254 = vmatprep.subr.mxu0 0.0
    %255 = vmatpush1.msra.mxu0 0.0
    %256 = vmatprep.subr.mxu0 0.0
    %257 = vmatpush1.msra.mxu0 0.0
    %258 = vmatprep.subr.mxu0 0.0
    %259 = vmatpush1.msra.mxu0 0.0
    %260 = vmatprep.subr.mxu0 0.0
    %261 = vmatpush1.msra.mxu0 0.0
    %262 = vmatprep.subr.mxu0 0.0
    %263 = vmatpush1.msra.mxu0 0.0
    %264 = vmatprep.subr.mxu0 0.0
    %265 = vmatpush1.msra.mxu0 0.0
    %266 = vmatprep.subr.mxu0 0.0
    %267 = vmatpush1.msra.mxu0 0.0
    %268 = vmatprep.subr.mxu0 0.0
    %269 = vmatpush1.msra.mxu0 0.0
    %270 = vmatprep.subr.mxu0 0.0
    %271 = vmatpush1.msra.mxu0 0.0
    %272 = vmatprep.subr.mxu0 0.0
    %273 = vmatpush1.msra.mxu0 0.0
    %274 = vmatprep.subr.mxu0 0.0
    %275 = vmatpush1.msra.mxu0 0.0
    %276 = vmatprep.subr.mxu0 0.0
    %277 = vmatpush1.msra.mxu0 0.0
    %278 = vmatprep.mubr.f32.mxu0 0.0
    %279 = vmatmul.mubr.f32.gmra.mrb[0].mxu0 %v134
    %v280 = vpop.f32.mrb[0].mxu0
    %v281 = vadd.f32 %v67, %v280
    %v282 = vpop.f32.mrb[0].mxu0
    %283 = vmatprep.mubr.f32.mxu0 0.0
    %284 = vmatmul.mubr.f32.gmra.mrb[0].mxu0 %v137
    %v285 = vpop.f32.mrb[0].mxu0
    %v286 = vadd.f32 %v68, %v285
    %v287 = vpop.f32.mrb[0].mxu0
    %288 = vdwg.mxu0
    %289 = vmatprep.subr.mxu0 0.0
    %290 = vmatpush1.msra.mxu0 %v25
    %291 = vmatprep.subr.mxu0 0.0
    %292 = vmatpush1.msra.mxu0 %v26
    %293 = vmatprep.subr.mxu0 0.0
    %294 = vmatpush1.msra.mxu0 %v27
    %295 = vmatprep.subr.mxu0 0.0
    %296 = vmatpush1.msra.mxu0 %v28
    %297 = vmatprep.subr.mxu0 0.0
    %298 = vmatpush1.msra.mxu0 0.0
    %299 = vmatprep.subr.mxu0 0.0
    %300 = vmatpush1.msra.mxu0 0.0
    %301 = vmatprep.subr.mxu0 0.0
    %302 = vmatpush1.msra.mxu0 0.0
    %303 = vmatprep.subr.mxu0 0.0
    %304 = vmatpush1.msra.mxu0 0.0
    %305 = vmatprep.subr.mxu0 0.0
    %306 = vmatpush1.msra.mxu0 0.0
    %307 = vmatprep.subr.mxu0 0.0
    %308 = vmatpush1.msra.mxu0 0.0
    %309 = vmatprep.subr.mxu0 0.0
    %310 = vmatpush1.msra.mxu0 0.0
    %311 = vmatprep.subr.mxu0 0.0
    %312 = vmatpush1.msra.mxu0 0.0
    %313 = vmatprep.subr.mxu0 0.0
    %314 = vmatpush1.msra.mxu0 0.0
    %315 = vmatprep.subr.mxu0 0.0
    %316 = vmatpush1.msra.mxu0 0.0
    %317 = vmatprep.subr.mxu0 0.0
    %318 = vmatpush1.msra.mxu0 0.0
    %319 = vmatprep.subr.mxu0 0.0
    %320 = vmatpush1.msra.mxu0 0.0
    %321 = vmatprep.subr.mxu0 0.0
    %322 = vmatpush1.msra.mxu0 0.0
    %323 = vmatprep.subr.mxu0 0.0
    %324 = vmatpush1.msra.mxu0 0.0
    %325 = vmatprep.subr.mxu0 0.0
    %326 = vmatpush1.msra.mxu0 0.0
    %327 = vmatprep.subr.mxu0 0.0
    %328 = vmatpush1.msra.mxu0 0.0
    %329 = vmatprep.subr.mxu0 0.0
    %330 = vmatpush1.msra.mxu0 0.0
    %331 = vmatprep.subr.mxu0 0.0
    %332 = vmatpush1.msra.mxu0 0.0
    %333 = vmatprep.subr.mxu0 0.0
    %334 = vmatpush1.msra.mxu0 0.0
    %335 = vmatprep.subr.mxu0 0.0
    %336 = vmatpush1.msra.mxu0 0.0
    %337 = vmatprep.subr.mxu0 0.0
    %338 = vmatpush1.msra.mxu0 0.0
    %339 = vmatprep.subr.mxu0 0.0
    %340 = vmatpush1.msra.mxu0 0.0
    %341 = vmatprep.subr.mxu0 0.0
    %342 = vmatpush1.msra.mxu0 0.0
    %343 = vmatprep.subr.mxu0 0.0
    %344 = vmatpush1.msra.mxu0 0.0
    %345 = vmatprep.subr.mxu0 0.0
    %346 = vmatpush1.msra.mxu0 0.0
    %347 = vmatprep.subr.mxu0 0.0
    %348 = vmatpush1.msra.mxu0 0.0
    %349 = vmatprep.subr.mxu0 0.0
    %350 = vmatpush1.msra.mxu0 0.0
    %351 = vmatprep.subr.mxu0 0.0
    %352 = vmatpush1.msra.mxu0 0.0
    %353 = vmatprep.mubr.f32.mxu0 0.0
    %354 = vmatmul.mubr.f32.gmra.mrb[0].mxu0 %v134
    %v355 = vpop.f32.mrb[0].mxu0
    %v356 = vadd.f32 %v69, %v355
    %v357 = vpop.f32.mrb[0].mxu0
    %358 = vmatprep.mubr.f32.mxu0 0.0
    %359 = vmatmul.mubr.f32.gmra.mrb[0].mxu0 %v137
    %v360 = vpop.f32.mrb[0].mxu0
    %v361 = vadd.f32 %v70, %v360
    %v362 = vpop.f32.mrb[0].mxu0
    %363 = vdwg.mxu0
    %364 = vmatprep.subr.mxu0 0.0
    %365 = vmatpush1.msra.mxu0 %v29
    %366 = vmatprep.subr.mxu0 0.0
    %367 = vmatpush1.msra.mxu0 %v30
    %368 = vmatprep.subr.mxu0 0.0
    %369 = vmatpush1.msra.mxu0 %v31
    %370 = vmatprep.subr.mxu0 0.0
    %371 = vmatpush1.msra.mxu0 %v32
    %372 = vmatprep.subr.mxu0 0.0
    %373 = vmatpush1.msra.mxu0 0.0
    %374 = vmatprep.subr.mxu0 0.0
    %375 = vmatpush1.msra.mxu0 0.0
    %376 = vmatprep.subr.mxu0 0.0
    %377 = vmatpush1.msra.mxu0 0.0
    %378 = vmatprep.subr.mxu0 0.0
    %379 = vmatpush1.msra.mxu0 0.0
    %380 = vmatprep.subr.mxu0 0.0
    %381 = vmatpush1.msra.mxu0 0.0
    %382 = vmatprep.subr.mxu0 0.0
    %383 = vmatpush1.msra.mxu0 0.0
    %384 = vmatprep.subr.mxu0 0.0
    %385 = vmatpush1.msra.mxu0 0.0
    %386 = vmatprep.subr.mxu0 0.0
    %387 = vmatpush1.msra.mxu0 0.0
    %388 = vmatprep.subr.mxu0 0.0
    %389 = vmatpush1.msra.mxu0 0.0
    %390 = vmatprep.subr.mxu0 0.0
    %391 = vmatpush1.msra.mxu0 0.0
    %392 = vmatprep.subr.mxu0 0.0
    %393 = vmatpush1.msra.mxu0 0.0
    %394 = vmatprep.subr.mxu0 0.0
    %395 = vmatpush1.msra.mxu0 0.0
    %396 = vmatprep.subr.mxu0 0.0
    %397 = vmatpush1.msra.mxu0 0.0
    %398 = vmatprep.subr.mxu0 0.0
    %399 = vmatpush1.msra.mxu0 0.0
    %400 = vmatprep.subr.mxu0 0.0
    %401 = vmatpush1.msra.mxu0 0.0
    %402 = vmatprep.subr.mxu0 0.0
    %403 = vmatpush1.msra.mxu0 0.0
    %404 = vmatprep.subr.mxu0 0.0
    %405 = vmatpush1.msra.mxu0 0.0
    %406 = vmatprep.subr.mxu0 0.0
    %407 = vmatpush1.msra.mxu0 0.0
    %408 = vmatprep.subr.mxu0 0.0
    %409 = vmatpush1.msra.mxu0 0.0
    %410 = vmatprep.subr.mxu0 0.0
    %411 = vmatpush1.msra.mxu0 0.0
    %412 = vmatprep.subr.mxu0 0.0
    %413 = vmatpush1.msra.mxu0 0.0
    %414 = vmatprep.subr.mxu0 0.0
    %415 = vmatpush1.msra.mxu0 0.0
    %416 = vmatprep.subr.mxu0 0.0
    %417 = vmatpush1.msra.mxu0 0.0
    %418 = vmatprep.subr.mxu0 0.0
    %419 = vmatpush1.msra.mxu0 0.0
    %420 = vmatprep.subr.mxu0 0.0
    %421 = vmatpush1.msra.mxu0 0.0
    %422 = vmatprep.subr.mxu0 0.0
    %423 = vmatpush1.msra.mxu0 0.0
    %424 = vmatprep.subr.mxu0 0.0
    %425 = vmatpush1.msra.mxu0 0.0
    %426 = vmatprep.subr.mxu0 0.0
    %427 = vmatpush1.msra.mxu0 0.0
    %428 = vmatprep.mubr.f32.mxu0 0.0
    %429 = vmatmul.mubr.f32.gmra.mrb[0].mxu0 %v134
    %v430 = vpop.f32.mrb[0].mxu0
    %v431 = vadd.f32 %v71, %v430
    %v432 = vpop.f32.mrb[0].mxu0
    %433 = vmatprep.mubr.f32.mxu0 0.0
    %434 = vmatmul.mubr.f32.gmra.mrb[0].mxu0 %v137
    %v435 = vpop.f32.mrb[0].mxu0
    %v436 = vadd.f32 %v72, %v435
    %v437 = vpop.f32.mrb[0].mxu0
    %438 = vdwg.mxu0
    %439 = vmatprep.subr.mxu0 0.0
    %440 = vmatpush1.msra.mxu0 %v33
    %441 = vmatprep.subr.mxu0 0.0
    %442 = vmatpush1.msra.mxu0 %v34
    %443 = vmatprep.subr.mxu0 0.0
    %444 = vmatpush1.msra.mxu0 %v35
    %445 = vmatprep.subr.mxu0 0.0
    %446 = vmatpush1.msra.mxu0 %v36
    %447 = vmatprep.subr.mxu0 0.0
    %448 = vmatpush1.msra.mxu0 0.0
    %449 = vmatprep.subr.mxu0 0.0
    %450 = vmatpush1.msra.mxu0 0.0
    %451 = vmatprep.subr.mxu0 0.0
    %452 = vmatpush1.msra.mxu0 0.0
    %453 = vmatprep.subr.mxu0 0.0
    %454 = vmatpush1.msra.mxu0 0.0
    %455 = vmatprep.subr.mxu0 0.0
    %456 = vmatpush1.msra.mxu0 0.0
    %457 = vmatprep.subr.mxu0 0.0
    %458 = vmatpush1.msra.mxu0 0.0
    %459 = vmatprep.subr.mxu0 0.0
    %460 = vmatpush1.msra.mxu0 0.0
    %461 = vmatprep.subr.mxu0 0.0
    %462 = vmatpush1.msra.mxu0 0.0
    %463 = vmatprep.subr.mxu0 0.0
    %464 = vmatpush1.msra.mxu0 0.0
    %465 = vmatprep.subr.mxu0 0.0
    %466 = vmatpush1.msra.mxu0 0.0
    %467 = vmatprep.subr.mxu0 0.0
    %468 = vmatpush1.msra.mxu0 0.0
    %469 = vmatprep.subr.mxu0 0.0
    %470 = vmatpush1.msra.mxu0 0.0
    %471 = vmatprep.subr.mxu0 0.0
    %472 = vmatpush1.msra.mxu0 0.0
    %473 = vmatprep.subr.mxu0 0.0
    %474 = vmatpush1.msra.mxu0 0.0
    %475 = vmatprep.subr.mxu0 0.0
    %476 = vmatpush1.msra.mxu0 0.0
    %477 = vmatprep.subr.mxu0 0.0
    %478 = vmatpush1.msra.mxu0 0.0
    %479 = vmatprep.subr.mxu0 0.0
    %480 = vmatpush1.msra.mxu0 0.0
    %481 = vmatprep.subr.mxu0 0.0
    %482 = vmatpush1.msra.mxu0 0.0
    %483 = vmatprep.subr.mxu0 0.0
    %484 = vmatpush1.msra.mxu0 0.0
    %485 = vmatprep.subr.mxu0 0.0
    %486 = vmatpush1.msra.mxu0 0.0
    %487 = vmatprep.subr.mxu0 0.0
    %488 = vmatpush1.msra.mxu0 0.0
    %489 = vmatprep.subr.mxu0 0.0
    %490 = vmatpush1.msra.mxu0 0.0
    %491 = vmatprep.subr.mxu0 0.0
    %492 = vmatpush1.msra.mxu0 0.0
    %493 = vmatprep.subr.mxu0 0.0
    %494 = vmatpush1.msra.mxu0 0.0
    %495 = vmatprep.subr.mxu0 0.0
    %496 = vmatpush1.msra.mxu0 0.0
    %497 = vmatprep.subr.mxu0 0.0
    %498 = vmatpush1.msra.mxu0 0.0
    %499 = vmatprep.subr.mxu0 0.0
    %500 = vmatpush1.msra.mxu0 0.0
    %501 = vmatprep.subr.mxu0 0.0
    %502 = vmatpush1.msra.mxu0 0.0
    %503 = vmatprep.mubr.f32.mxu0 0.0
    %504 = vmatmul.mubr.f32.gmra.mrb[0].mxu0 %v134
    %v505 = vpop.f32.mrb[0].mxu0
    %v506 = vadd.f32 %v73, %v505
    %v507 = vpop.f32.mrb[0].mxu0
    %508 = vmatprep.mubr.f32.mxu0 0.0
    %509 = vmatmul.mubr.f32.gmra.mrb[0].mxu0 %v137
    %v510 = vpop.f32.mrb[0].mxu0
    %v511 = vadd.f32 %v74, %v510
    %v512 = vpop.f32.mrb[0].mxu0
    %513 = vdwg.mxu0
    %514 = vmatprep.subr.mxu0 0.0
    %515 = vmatpush1.msra.mxu0 %v37
    %516 = vmatprep.subr.mxu0 0.0
    %517 = vmatpush1.msra.mxu0 %v38
    %518 = vmatprep.subr.mxu0 0.0
    %519 = vmatpush1.msra.mxu0 %v39
    %520 = vmatprep.subr.mxu0 0.0
    %521 = vmatpush1.msra.mxu0 %v40
    %522 = vmatprep.subr.mxu0 0.0
    %523 = vmatpush1.msra.mxu0 0.0
    %524 = vmatprep.subr.mxu0 0.0
    %525 = vmatpush1.msra.mxu0 0.0
    %526 = vmatprep.subr.mxu0 0.0
    %527 = vmatpush1.msra.mxu0 0.0
    %528 = vmatprep.subr.mxu0 0.0
    %529 = vmatpush1.msra.mxu0 0.0
    %530 = vmatprep.subr.mxu0 0.0
    %531 = vmatpush1.msra.mxu0 0.0
    %532 = vmatprep.subr.mxu0 0.0
    %533 = vmatpush1.msra.mxu0 0.0
    %534 = vmatprep.subr.mxu0 0.0
    %535 = vmatpush1.msra.mxu0 0.0
    %536 = vmatprep.subr.mxu0 0.0
    %537 = vmatpush1.msra.mxu0 0.0
    %538 = vmatprep.subr.mxu0 0.0
    %539 = vmatpush1.msra.mxu0 0.0
    %540 = vmatprep.subr.mxu0 0.0
    %541 = vmatpush1.msra.mxu0 0.0
    %542 = vmatprep.subr.mxu0 0.0
    %543 = vmatpush1.msra.mxu0 0.0
    %544 = vmatprep.subr.mxu0 0.0
    %545 = vmatpush1.msra.mxu0 0.0
    %546 = vmatprep.subr.mxu0 0.0
    %547 = vmatpush1.msra.mxu0 0.0
    %548 = vmatprep.subr.mxu0 0.0
    %549 = vmatpush1.msra.mxu0 0.0
    %550 = vmatprep.subr.mxu0 0.0
    %551 = vmatpush1.msra.mxu0 0.0
    %552 = vmatprep.subr.mxu0 0.0
    %553 = vmatpush1.msra.mxu0 0.0
    %554 = vmatprep.subr.mxu0 0.0
    %555 = vmatpush1.msra.mxu0 0.0
    %556 = vmatprep.subr.mxu0 0.0
    %557 = vmatpush1.msra.mxu0 0.0
    %558 = vmatprep.subr.mxu0 0.0
    %559 = vmatpush1.msra.mxu0 0.0
    %560 = vmatprep.subr.mxu0 0.0
    %561 = vmatpush1.msra.mxu0 0.0
    %562 = vmatprep.subr.mxu0 0.0
    %563 = vmatpush1.msra.mxu0 0.0
    %564 = vmatprep.subr.mxu0 0.0
    %565 = vmatpush1.msra.mxu0 0.0
    %566 = vmatprep.subr.mxu0 0.0
    %567 = vmatpush1.msra.mxu0 0.0
    %568 = vmatprep.subr.mxu0 0.0
    %569 = vmatpush1.msra.mxu0 0.0
    %570 = vmatprep.subr.mxu0 0.0
    %571 = vmatpush1.msra.mxu0 0.0
    %572 = vmatprep.subr.mxu0 0.0
    %573 = vmatpush1.msra.mxu0 0.0
    %574 = vmatprep.subr.mxu0 0.0
    %575 = vmatpush1.msra.mxu0 0.0
    %576 = vmatprep.subr.mxu0 0.0
    %577 = vmatpush1.msra.mxu0 0.0
    %578 = vmatprep.mubr.f32.mxu0 0.0
    %579 = vmatmul.mubr.f32.gmra.mrb[0].mxu0 %v134
    %v580 = vpop.f32.mrb[0].mxu0
    %v581 = vadd.f32 %v75, %v580
    %v582 = vpop.f32.mrb[0].mxu0
    %583 = vmatprep.mubr.f32.mxu0 0.0
    %584 = vmatmul.mubr.f32.gmra.mrb[0].mxu0 %v137
    %v585 = vpop.f32.mrb[0].mxu0
    %v586 = vadd.f32 %v76, %v585
    %v587 = vpop.f32.mrb[0].mxu0
    %588 = vdwg.mxu0
    %589 = vmatprep.subr.mxu0 0.0
    %590 = vmatpush1.msra.mxu0 %v41
    %591 = vmatprep.subr.mxu0 0.0
    %592 = vmatpush1.msra.mxu0 %v42
    %593 = vmatprep.subr.mxu0 0.0
    %594 = vmatpush1.msra.mxu0 %v43
    %595 = vmatprep.subr.mxu0 0.0
    %596 = vmatpush1.msra.mxu0 %v44
    %597 = vmatprep.subr.mxu0 0.0
    %598 = vmatpush1.msra.mxu0 0.0
    %599 = vmatprep.subr.mxu0 0.0
    %600 = vmatpush1.msra.mxu0 0.0
    %601 = vmatprep.subr.mxu0 0.0
    %602 = vmatpush1.msra.mxu0 0.0
    %603 = vmatprep.subr.mxu0 0.0
    %604 = vmatpush1.msra.mxu0 0.0
    %605 = vmatprep.subr.mxu0 0.0
    %606 = vmatpush1.msra.mxu0 0.0
    %607 = vmatprep.subr.mxu0 0.0
    %608 = vmatpush1.msra.mxu0 0.0
    %609 = vmatprep.subr.mxu0 0.0
    %610 = vmatpush1.msra.mxu0 0.0
    %611 = vmatprep.subr.mxu0 0.0
    %612 = vmatpush1.msra.mxu0 0.0
    %613 = vmatprep.subr.mxu0 0.0
    %614 = vmatpush1.msra.mxu0 0.0
    %615 = vmatprep.subr.mxu0 0.0
    %616 = vmatpush1.msra.mxu0 0.0
    %617 = vmatprep.subr.mxu0 0.0
    %618 = vmatpush1.msra.mxu0 0.0
    %619 = vmatprep.subr.mxu0 0.0
    %620 = vmatpush1.msra.mxu0 0.0
    %621 = vmatprep.subr.mxu0 0.0
    %622 = vmatpush1.msra.mxu0 0.0
    %623 = vmatprep.subr.mxu0 0.0
    %624 = vmatpush1.msra.mxu0 0.0
    %625 = vmatprep.subr.mxu0 0.0
    %626 = vmatpush1.msra.mxu0 0.0
    %627 = vmatprep.subr.mxu0 0.0
    %628 = vmatpush1.msra.mxu0 0.0
    %629 = vmatprep.subr.mxu0 0.0
    %630 = vmatpush1.msra.mxu0 0.0
    %631 = vmatprep.subr.mxu0 0.0
    %632 = vmatpush1.msra.mxu0 0.0
    %633 = vmatprep.subr.mxu0 0.0
    %634 = vmatpush1.msra.mxu0 0.0
    %635 = vmatprep.subr.mxu0 0.0
    %636 = vmatpush1.msra.mxu0 0.0
    %637 = vmatprep.subr.mxu0 0.0
    %638 = vmatpush1.msra.mxu0 0.0
    %639 = vmatprep.subr.mxu0 0.0
    %640 = vmatpush1.msra.mxu0 0.0
    %641 = vmatprep.subr.mxu0 0.0
    %642 = vmatpush1.msra.mxu0 0.0
    %643 = vmatprep.subr.mxu0 0.0
    %644 = vmatpush1.msra.mxu0 0.0
    %645 = vmatprep.subr.mxu0 0.0
    %646 = vmatpush1.msra.mxu0 0.0
    %647 = vmatprep.subr.mxu0 0.0
    %648 = vmatpush1.msra.mxu0 0.0
    %649 = vmatprep.subr.mxu0 0.0
    %650 = vmatpush1.msra.mxu0 0.0
    %651 = vmatprep.subr.mxu0 0.0
    %652 = vmatpush1.msra.mxu0 0.0
    %653 = vmatprep.mubr.f32.mxu0 0.0
    %654 = vmatmul.mubr.f32.gmra.mrb[0].mxu0 %v134
    %v655 = vpop.f32.mrb[0].mxu0
    %v656 = vadd.f32 %v77, %v655
    %v657 = vpop.f32.mrb[0].mxu0
    %658 = vmatprep.mubr.f32.mxu0 0.0
    %659 = vmatmul.mubr.f32.gmra.mrb[0].mxu0 %v137
    %v660 = vpop.f32.mrb[0].mxu0
    %v661 = vadd.f32 %v78, %v660
    %v662 = vpop.f32.mrb[0].mxu0
    %663 = vdwg.mxu0
    %664 = vmatprep.subr.mxu0 0.0
    %665 = vmatpush1.msra.mxu0 %v45
    %666 = vmatprep.subr.mxu0 0.0
    %667 = vmatpush1.msra.mxu0 %v46
    %668 = vmatprep.subr.mxu0 0.0
    %669 = vmatpush1.msra.mxu0 %v47
    %670 = vmatprep.subr.mxu0 0.0
    %671 = vmatpush1.msra.mxu0 %v48
    %672 = vmatprep.subr.mxu0 0.0
    %673 = vmatpush1.msra.mxu0 0.0
    %674 = vmatprep.subr.mxu0 0.0
    %675 = vmatpush1.msra.mxu0 0.0
    %676 = vmatprep.subr.mxu0 0.0
    %677 = vmatpush1.msra.mxu0 0.0
    %678 = vmatprep.subr.mxu0 0.0
    %679 = vmatpush1.msra.mxu0 0.0
    %680 = vmatprep.subr.mxu0 0.0
    %681 = vmatpush1.msra.mxu0 0.0
    %682 = vmatprep.subr.mxu0 0.0
    %683 = vmatpush1.msra.mxu0 0.0
    %684 = vmatprep.subr.mxu0 0.0
    %685 = vmatpush1.msra.mxu0 0.0
    %686 = vmatprep.subr.mxu0 0.0
    %687 = vmatpush1.msra.mxu0 0.0
    %688 = vmatprep.subr.mxu0 0.0
    %689 = vmatpush1.msra.mxu0 0.0
    %690 = vmatprep.subr.mxu0 0.0
    %691 = vmatpush1.msra.mxu0 0.0
    %692 = vmatprep.subr.mxu0 0.0
    %693 = vmatpush1.msra.mxu0 0.0
    %694 = vmatprep.subr.mxu0 0.0
    %695 = vmatpush1.msra.mxu0 0.0
    %696 = vmatprep.subr.mxu0 0.0
    %697 = vmatpush1.msra.mxu0 0.0
    %698 = vmatprep.subr.mxu0 0.0
    %699 = vmatpush1.msra.mxu0 0.0
    %700 = vmatprep.subr.mxu0 0.0
    %701 = vmatpush1.msra.mxu0 0.0
    %702 = vmatprep.subr.mxu0 0.0
    %703 = vmatpush1.msra.mxu0 0.0
    %704 = vmatprep.subr.mxu0 0.0
    %705 = vmatpush1.msra.mxu0 0.0
    %706 = vmatprep.subr.mxu0 0.0
    %707 = vmatpush1.msra.mxu0 0.0
    %708 = vmatprep.subr.mxu0 0.0
    %709 = vmatpush1.msra.mxu0 0.0
    %710 = vmatprep.subr.mxu0 0.0
    %711 = vmatpush1.msra.mxu0 0.0
    %712 = vmatprep.subr.mxu0 0.0
    %713 = vmatpush1.msra.mxu0 0.0
    %714 = vmatprep.subr.mxu0 0.0
    %715 = vmatpush1.msra.mxu0 0.0
    %716 = vmatprep.subr.mxu0 0.0
    %717 = vmatpush1.msra.mxu0 0.0
    %718 = vmatprep.subr.mxu0 0.0
    %719 = vmatpush1.msra.mxu0 0.0
    %720 = vmatprep.subr.mxu0 0.0
    %721 = vmatpush1.msra.mxu0 0.0
    %722 = vmatprep.subr.mxu0 0.0
    %723 = vmatpush1.msra.mxu0 0.0
    %724 = vmatprep.subr.mxu0 0.0
    %725 = vmatpush1.msra.mxu0 0.0
    %726 = vmatprep.subr.mxu0 0.0
    %727 = vmatpush1.msra.mxu0 0.0
    %728 = vmatprep.mubr.f32.mxu0 0.0
    %729 = vmatmul.mubr.f32.gmra.mrb[0].mxu0 %v134
    %v730 = vpop.f32.mrb[0].mxu0
    %v731 = vadd.f32 %v79, %v730
    %v732 = vpop.f32.mrb[0].mxu0
    %733 = vmatprep.mubr.f32.mxu0 0.0
    %734 = vmatmul.mubr.f32.gmra.mrb[0].mxu0 %v137
    %v735 = vpop.f32.mrb[0].mxu0
    %v736 = vadd.f32 %v80, %v735
    %v737 = vpop.f32.mrb[0].mxu0
    %738 = vdwg.mxu0
    %739 = vmatprep.subr.mxu0 0.0
    %740 = vmatpush1.msra.mxu0 %v49
    %741 = vmatprep.subr.mxu0 0.0
    %742 = vmatpush1.msra.mxu0 %v50
    %743 = vmatprep.subr.mxu0 0.0
    %744 = vmatpush1.msra.mxu0 %v51
    %745 = vmatprep.subr.mxu0 0.0
    %746 = vmatpush1.msra.mxu0 %v52
    %747 = vmatprep.subr.mxu0 0.0
    %748 = vmatpush1.msra.mxu0 0.0
    %749 = vmatprep.subr.mxu0 0.0
    %750 = vmatpush1.msra.mxu0 0.0
    %751 = vmatprep.subr.mxu0 0.0
    %752 = vmatpush1.msra.mxu0 0.0
    %753 = vmatprep.subr.mxu0 0.0
    %754 = vmatpush1.msra.mxu0 0.0
    %755 = vmatprep.subr.mxu0 0.0
    %756 = vmatpush1.msra.mxu0 0.0
    %757 = vmatprep.subr.mxu0 0.0
    %758 = vmatpush1.msra.mxu0 0.0
    %759 = vmatprep.subr.mxu0 0.0
    %760 = vmatpush1.msra.mxu0 0.0
    %761 = vmatprep.subr.mxu0 0.0
    %762 = vmatpush1.msra.mxu0 0.0
    %763 = vmatprep.subr.mxu0 0.0
    %764 = vmatpush1.msra.mxu0 0.0
    %765 = vmatprep.subr.mxu0 0.0
    %766 = vmatpush1.msra.mxu0 0.0
    %767 = vmatprep.subr.mxu0 0.0
    %768 = vmatpush1.msra.mxu0 0.0
    %769 = vmatprep.subr.mxu0 0.0
    %770 = vmatpush1.msra.mxu0 0.0
    %771 = vmatprep.subr.mxu0 0.0
    %772 = vmatpush1.msra.mxu0 0.0
    %773 = vmatprep.subr.mxu0 0.0
    %774 = vmatpush1.msra.mxu0 0.0
    %775 = vmatprep.subr.mxu0 0.0
    %776 = vmatpush1.msra.mxu0 0.0
    %777 = vmatprep.subr.mxu0 0.0
    %778 = vmatpush1.msra.mxu0 0.0
    %779 = vmatprep.subr.mxu0 0.0
    %780 = vmatpush1.msra.mxu0 0.0
    %781 = vmatprep.subr.mxu0 0.0
    %782 = vmatpush1.msra.mxu0 0.0
    %783 = vmatprep.subr.mxu0 0.0
    %784 = vmatpush1.msra.mxu0 0.0
    %785 = vmatprep.subr.mxu0 0.0
    %786 = vmatpush1.msra.mxu0 0.0
    %787 = vmatprep.subr.mxu0 0.0
    %788 = vmatpush1.msra.mxu0 0.0
    %789 = vmatprep.subr.mxu0 0.0
    %790 = vmatpush1.msra.mxu0 0.0
    %791 = vmatprep.subr.mxu0 0.0
    %792 = vmatpush1.msra.mxu0 0.0
    %793 = vmatprep.subr.mxu0 0.0
    %794 = vmatpush1.msra.mxu0 0.0
    %795 = vmatprep.subr.mxu0 0.0
    %796 = vmatpush1.msra.mxu0 0.0
    %797 = vmatprep.subr.mxu0 0.0
    %798 = vmatpush1.msra.mxu0 0.0
    %799 = vmatprep.subr.mxu0 0.0
    %800 = vmatpush1.msra.mxu0 0.0
    %801 = vmatprep.subr.mxu0 0.0
    %802 = vmatpush1.msra.mxu0 0.0
    %803 = vmatprep.mubr.f32.mxu0 0.0
    %804 = vmatmul.mubr.f32.gmra.mrb[0].mxu0 %v134
    %v805 = vpop.f32.mrb[0].mxu0
    %v806 = vadd.f32 %v81, %v805
    %v807 = vpop.f32.mrb[0].mxu0
    %808 = vmatprep.mubr.f32.mxu0 0.0
    %809 = vmatmul.mubr.f32.gmra.mrb[0].mxu0 %v137
    %v810 = vpop.f32.mrb[0].mxu0
    %v811 = vadd.f32 %v82, %v810
    %v812 = vpop.f32.mrb[0].mxu0
    %813 = vdwg.mxu0
    %814 = vmatprep.subr.mxu0 0.0
    %815 = vmatpush1.msra.mxu0 %v53
    %816 = vmatprep.subr.mxu0 0.0
    %817 = vmatpush1.msra.mxu0 %v54
    %818 = vmatprep.subr.mxu0 0.0
    %819 = vmatpush1.msra.mxu0 %v55
    %820 = vmatprep.subr.mxu0 0.0
    %821 = vmatpush1.msra.mxu0 %v56
    %822 = vmatprep.subr.mxu0 0.0
    %823 = vmatpush1.msra.mxu0 0.0
    %824 = vmatprep.subr.mxu0 0.0
    %825 = vmatpush1.msra.mxu0 0.0
    %826 = vmatprep.subr.mxu0 0.0
    %827 = vmatpush1.msra.mxu0 0.0
    %828 = vmatprep.subr.mxu0 0.0
    %829 = vmatpush1.msra.mxu0 0.0
    %830 = vmatprep.subr.mxu0 0.0
    %831 = vmatpush1.msra.mxu0 0.0
    %832 = vmatprep.subr.mxu0 0.0
    %833 = vmatpush1.msra.mxu0 0.0
    %834 = vmatprep.subr.mxu0 0.0
    %835 = vmatpush1.msra.mxu0 0.0
    %836 = vmatprep.subr.mxu0 0.0
    %837 = vmatpush1.msra.mxu0 0.0
    %838 = vmatprep.subr.mxu0 0.0
    %839 = vmatpush1.msra.mxu0 0.0
    %840 = vmatprep.subr.mxu0 0.0
    %841 = vmatpush1.msra.mxu0 0.0
    %842 = vmatprep.subr.mxu0 0.0
    %843 = vmatpush1.msra.mxu0 0.0
    %844 = vmatprep.subr.mxu0 0.0
    %845 = vmatpush1.msra.mxu0 0.0
    %846 = vmatprep.subr.mxu0 0.0
    %847 = vmatpush1.msra.mxu0 0.0
    %848 = vmatprep.subr.mxu0 0.0
    %849 = vmatpush1.msra.mxu0 0.0
    %850 = vmatprep.subr.mxu0 0.0
    %851 = vmatpush1.msra.mxu0 0.0
    %852 = vmatprep.subr.mxu0 0.0
    %853 = vmatpush1.msra.mxu0 0.0
    %854 = vmatprep.subr.mxu0 0.0
    %855 = vmatpush1.msra.mxu0 0.0
    %856 = vmatprep.subr.mxu0 0.0
    %857 = vmatpush1.msra.mxu0 0.0
    %858 = vmatprep.subr.mxu0 0.0
    %859 = vmatpush1.msra.mxu0 0.0
    %860 = vmatprep.subr.mxu0 0.0
    %861 = vmatpush1.msra.mxu0 0.0
    %862 = vmatprep.subr.mxu0 0.0
    %863 = vmatpush1.msra.mxu0 0.0
    %864 = vmatprep.subr.mxu0 0.0
    %865 = vmatpush1.msra.mxu0 0.0
    %866 = vmatprep.subr.mxu0 0.0
    %867 = vmatpush1.msra.mxu0 0.0
    %868 = vmatprep.subr.mxu0 0.0
    %869 = vmatpush1.msra.mxu0 0.0
    %870 = vmatprep.subr.mxu0 0.0
    %871 = vmatpush1.msra.mxu0 0.0
    %872 = vmatprep.subr.mxu0 0.0
    %873 = vmatpush1.msra.mxu0 0.0
    %874 = vmatprep.subr.mxu0 0.0
    %875 = vmatpush1.msra.mxu0 0.0
    %876 = vmatprep.subr.mxu0 0.0
    %877 = vmatpush1.msra.mxu0 0.0
    %878 = vmatprep.mubr.f32.mxu0 0.0
    %879 = vmatmul.mubr.f32.gmra.mrb[0].mxu0 %v134
    %v880 = vpop.f32.mrb[0].mxu0
    %v881 = vadd.f32 %v83, %v880
    %v882 = vpop.f32.mrb[0].mxu0
    %883 = vmatprep.mubr.f32.mxu0 0.0
    %884 = vmatmul.mubr.f32.gmra.mrb[0].mxu0 %v137
    %v885 = vpop.f32.mrb[0].mxu0
    %v886 = vadd.f32 %v84, %v885
    %v887 = vpop.f32.mrb[0].mxu0
    %888 = vdwg.mxu0
    %889 = vmatprep.subr.mxu0 0.0
    %890 = vmatpush1.msra.mxu0 %v57
    %891 = vmatprep.subr.mxu0 0.0
    %892 = vmatpush1.msra.mxu0 %v58
    %893 = vmatprep.subr.mxu0 0.0
    %894 = vmatpush1.msra.mxu0 %v59
    %895 = vmatprep.subr.mxu0 0.0
    %896 = vmatpush1.msra.mxu0 %v60
    %897 = vmatprep.subr.mxu0 0.0
    %898 = vmatpush1.msra.mxu0 0.0
    %899 = vmatprep.subr.mxu0 0.0
    %900 = vmatpush1.msra.mxu0 0.0
    %901 = vmatprep.subr.mxu0 0.0
    %902 = vmatpush1.msra.mxu0 0.0
    %903 = vmatprep.subr.mxu0 0.0
    %904 = vmatpush1.msra.mxu0 0.0
    %905 = vmatprep.subr.mxu0 0.0
    %906 = vmatpush1.msra.mxu0 0.0
    %907 = vmatprep.subr.mxu0 0.0
    %908 = vmatpush1.msra.mxu0 0.0
    %909 = vmatprep.subr.mxu0 0.0
    %910 = vmatpush1.msra.mxu0 0.0
    %911 = vmatprep.subr.mxu0 0.0
    %912 = vmatpush1.msra.mxu0 0.0
    %913 = vmatprep.subr.mxu0 0.0
    %914 = vmatpush1.msra.mxu0 0.0
    %915 = vmatprep.subr.mxu0 0.0
    %916 = vmatpush1.msra.mxu0 0.0
    %917 = vmatprep.subr.mxu0 0.0
    %918 = vmatpush1.msra.mxu0 0.0
    %919 = vmatprep.subr.mxu0 0.0
    %920 = vmatpush1.msra.mxu0 0.0
    %921 = vmatprep.subr.mxu0 0.0
    %922 = vmatpush1.msra.mxu0 0.0
    %923 = vmatprep.subr.mxu0 0.0
    %924 = vmatpush1.msra.mxu0 0.0
    %925 = vmatprep.subr.mxu0 0.0
    %926 = vmatpush1.msra.mxu0 0.0
    %927 = vmatprep.subr.mxu0 0.0
    %928 = vmatpush1.msra.mxu0 0.0
    %929 = vmatprep.subr.mxu0 0.0
    %930 = vmatpush1.msra.mxu0 0.0
    %931 = vmatprep.subr.mxu0 0.0
    %932 = vmatpush1.msra.mxu0 0.0
    %933 = vmatprep.subr.mxu0 0.0
    %934 = vmatpush1.msra.mxu0 0.0
    %935 = vmatprep.subr.mxu0 0.0
    %936 = vmatpush1.msra.mxu0 0.0
    %937 = vmatprep.subr.mxu0 0.0
    %938 = vmatpush1.msra.mxu0 0.0
    %939 = vmatprep.subr.mxu0 0.0
    %940 = vmatpush1.msra.mxu0 0.0
    %941 = vmatprep.subr.mxu0 0.0
    %942 = vmatpush1.msra.mxu0 0.0
    %943 = vmatprep.subr.mxu0 0.0
    %944 = vmatpush1.msra.mxu0 0.0
    %945 = vmatprep.subr.mxu0 0.0
    %946 = vmatpush1.msra.mxu0 0.0
    %947 = vmatprep.subr.mxu0 0.0
    %948 = vmatpush1.msra.mxu0 0.0
    %949 = vmatprep.subr.mxu0 0.0
    %950 = vmatpush1.msra.mxu0 0.0
    %951 = vmatprep.subr.mxu0 0.0
    %952 = vmatpush1.msra.mxu0 0.0
    %953 = vmatprep.mubr.f32.mxu0 0.0
    %954 = vmatmul.mubr.f32.gmra.mrb[0].mxu0 %v134
    %v955 = vpop.f32.mrb[0].mxu0
    %v956 = vadd.f32 %v85, %v955
    %v957 = vpop.f32.mrb[0].mxu0
    %958 = vmatprep.mubr.f32.mxu0 0.0
    %959 = vmatmul.mubr.f32.gmra.mrb[0].mxu0 %v137
    %v960 = vpop.f32.mrb[0].mxu0
    %v961 = vadd.f32 %v86, %v960
    %v962 = vpop.f32.mrb[0].mxu0
    %963 = vdwg.mxu0
    %964 = vmatprep.subr.mxu0 0.0
    %965 = vmatpush1.msra.mxu0 %v61
    %966 = vmatprep.subr.mxu0 0.0
    %967 = vmatpush1.msra.mxu0 %v62
    %968 = vmatprep.subr.mxu0 0.0
    %969 = vmatpush1.msra.mxu0 %v63
    %970 = vmatprep.subr.mxu0 0.0
    %971 = vmatpush1.msra.mxu0 %v64
    %972 = vmatprep.subr.mxu0 0.0
    %973 = vmatpush1.msra.mxu0 0.0
    %974 = vmatprep.subr.mxu0 0.0
    %975 = vmatpush1.msra.mxu0 0.0
    %976 = vmatprep.subr.mxu0 0.0
    %977 = vmatpush1.msra.mxu0 0.0
    %978 = vmatprep.subr.mxu0 0.0
    %979 = vmatpush1.msra.mxu0 0.0
    %980 = vmatprep.subr.mxu0 0.0
    %981 = vmatpush1.msra.mxu0 0.0
    %982 = vmatprep.subr.mxu0 0.0
    %983 = vmatpush1.msra.mxu0 0.0
    %984 = vmatprep.subr.mxu0 0.0
    %985 = vmatpush1.msra.mxu0 0.0
    %986 = vmatprep.subr.mxu0 0.0
    %987 = vmatpush1.msra.mxu0 0.0
    %988 = vmatprep.subr.mxu0 0.0
    %989 = vmatpush1.msra.mxu0 0.0
    %990 = vmatprep.subr.mxu0 0.0
    %991 = vmatpush1.msra.mxu0 0.0
    %992 = vmatprep.subr.mxu0 0.0
    %993 = vmatpush1.msra.mxu0 0.0
    %994 = vmatprep.subr.mxu0 0.0
    %995 = vmatpush1.msra.mxu0 0.0
    %996 = vmatprep.subr.mxu0 0.0
    %997 = vmatpush1.msra.mxu0 0.0
    %998 = vmatprep.subr.mxu0 0.0
    %999 = vmatpush1.msra.mxu0 0.0
    %1000 = vmatprep.subr.mxu0 0.0
    %1001 = vmatpush1.msra.mxu0 0.0
    %1002 = vmatprep.subr.mxu0 0.0
    %1003 = vmatpush1.msra.mxu0 0.0
    %1004 = vmatprep.subr.mxu0 0.0
    %1005 = vmatpush1.msra.mxu0 0.0
    %1006 = vmatprep.subr.mxu0 0.0
    %1007 = vmatpush1.msra.mxu0 0.0
    %1008 = vmatprep.subr.mxu0 0.0
    %1009 = vmatpush1.msra.mxu0 0.0
    %1010 = vmatprep.subr.mxu0 0.0
    %1011 = vmatpush1.msra.mxu0 0.0
    %1012 = vmatprep.subr.mxu0 0.0
    %1013 = vmatpush1.msra.mxu0 0.0
    %1014 = vmatprep.subr.mxu0 0.0
    %1015 = vmatpush1.msra.mxu0 0.0
    %1016 = vmatprep.subr.mxu0 0.0
    %1017 = vmatpush1.msra.mxu0 0.0
    %1018 = vmatprep.subr.mxu0 0.0
    %1019 = vmatpush1.msra.mxu0 0.0
    %1020 = vmatprep.subr.mxu0 0.0
    %1021 = vmatpush1.msra.mxu0 0.0
    %1022 = vmatprep.subr.mxu0 0.0
    %1023 = vmatpush1.msra.mxu0 0.0
    %1024 = vmatprep.subr.mxu0 0.0
    %1025 = vmatpush1.msra.mxu0 0.0
    %1026 = vmatprep.subr.mxu0 0.0
    %1027 = vmatpush1.msra.mxu0 0.0
    %1028 = vmatprep.mubr.f32.mxu0 0.0
    %1029 = vmatmul.mubr.f32.gmra.mrb[0].mxu0 %v134
    %v1030 = vpop.f32.mrb[0].mxu0
    %v1031 = vadd.f32 %v87, %v1030
    %v1032 = vpop.f32.mrb[0].mxu0
    %1033 = vmatprep.mubr.f32.mxu0 0.0
    %1034 = vmatmul.mubr.f32.gmra.mrb[0].mxu0 %v137
    %v1035 = vpop.f32.mrb[0].mxu0
    %v1036 = vadd.f32 %v88, %v1035
    %v1037 = vpop.f32.mrb[0].mxu0
    %1038 = vdwg.mxu0
    %v1047 = vcombine.high %v206, %v206
    %v1049 = vunpack.c.l.s4 1966171168
    %v1050 = vunpack.c.0.s8 %v1049
    %v1051 = vlaneseq
    %v1052 = vshrl.u32 %v1051, 7
    %v1053 = vsub.s32 %v1050, %v1052
    %v1054 = vrot.slane %v206, %v1053
    %v1056 = vunpack.c.l.s4 1966171168
    %v1057 = vunpack.c.0.s8 %v1056
    %v1058 = vlaneseq
    %v1059 = vshrl.u32 %v1058, 7
    %v1060 = vsub.s32 %v1057, %v1059
    %v1061 = vrot.slane %v1047, %v1060
    %v1062 = vcombine.high %v1054, %v1054
    %v1063 = vcombine.high %v1061, %v1061
    %v1065 = vunpack.c.l.s4 1966171168
    %v1066 = vunpack.c.0.s8 %v1065
    %v1067 = vlaneseq
    %v1068 = vshrl.u32 %v1067, 7
    %v1069 = vsub.s32 %v1066, %v1068
    %v1070 = vrot.slane %v1054, %v1069
    %v1072 = vunpack.c.l.s4 1966171168
    %v1073 = vunpack.c.0.s8 %v1072
    %v1074 = vlaneseq
    %v1075 = vshrl.u32 %v1074, 7
    %v1076 = vsub.s32 %v1073, %v1075
    %v1077 = vrot.slane %v1061, %v1076
    %v1079 = vunpack.c.l.s4 1966171168
    %v1080 = vunpack.c.0.s8 %v1079
    %v1081 = vlaneseq
    %v1082 = vshrl.u32 %v1081, 7
    %v1083 = vsub.s32 %v1080, %v1082
    %v1084 = vrot.slane %v1062, %v1083
    %v1086 = vunpack.c.l.s4 1966171168
    %v1087 = vunpack.c.0.s8 %v1086
    %v1088 = vlaneseq
    %v1089 = vshrl.u32 %v1088, 7
    %v1090 = vsub.s32 %v1087, %v1089
    %v1091 = vrot.slane %v1063, %v1090
    %v1092 = vcombine.high %v1070, %v1070
    %v1093 = vcombine.high %v1077, %v1077
    %v1094 = vcombine.high %v1084, %v1084
    %v1095 = vcombine.high %v1091, %v1091
    %v1096 = vcombine.high %v211, %v211
    %v1098 = vunpack.c.l.s4 1966171168
    %v1099 = vunpack.c.0.s8 %v1098
    %v1100 = vlaneseq
    %v1101 = vshrl.u32 %v1100, 7
    %v1102 = vsub.s32 %v1099, %v1101
    %v1103 = vrot.slane %v211, %v1102
    %v1105 = vunpack.c.l.s4 1966171168
    %v1106 = vunpack.c.0.s8 %v1105
    %v1107 = vlaneseq
    %v1108 = vshrl.u32 %v1107, 7
    %v1109 = vsub.s32 %v1106, %v1108
    %v1110 = vrot.slane %v1096, %v1109
    %v1111 = vcombine.high %v1103, %v1103
    %v1112 = vcombine.high %v1110, %v1110
    %v1114 = vunpack.c.l.s4 1966171168
    %v1115 = vunpack.c.0.s8 %v1114
    %v1116 = vlaneseq
    %v1117 = vshrl.u32 %v1116, 7
    %v1118 = vsub.s32 %v1115, %v1117
    %v1119 = vrot.slane %v1103, %v1118
    %v1121 = vunpack.c.l.s4 1966171168
    %v1122 = vunpack.c.0.s8 %v1121
    %v1123 = vlaneseq
    %v1124 = vshrl.u32 %v1123, 7
    %v1125 = vsub.s32 %v1122, %v1124
    %v1126 = vrot.slane %v1110, %v1125
    %v1128 = vunpack.c.l.s4 1966171168
    %v1129 = vunpack.c.0.s8 %v1128
    %v1130 = vlaneseq
    %v1131 = vshrl.u32 %v1130, 7
    %v1132 = vsub.s32 %v1129, %v1131
    %v1133 = vrot.slane %v1111, %v1132
    %v1135 = vunpack.c.l.s4 1966171168
    %v1136 = vunpack.c.0.s8 %v1135
    %v1137 = vlaneseq
    %v1138 = vshrl.u32 %v1137, 7
    %v1139 = vsub.s32 %v1136, %v1138
    %v1140 = vrot.slane %v1112, %v1139
    %v1141 = vcombine.high %v1119, %v1119
    %v1142 = vcombine.high %v1126, %v1126
    %v1143 = vcombine.high %v1133, %v1133
    %v1144 = vcombine.high %v1140, %v1140
    %v1145 = vcombine.high %v281, %v281
    %v1147 = vunpack.c.l.s4 1966171168
    %v1148 = vunpack.c.0.s8 %v1147
    %v1149 = vlaneseq
    %v1150 = vshrl.u32 %v1149, 7
    %v1151 = vsub.s32 %v1148, %v1150
    %v1152 = vrot.slane %v281, %v1151
    %v1154 = vunpack.c.l.s4 1966171168
    %v1155 = vunpack.c.0.s8 %v1154
    %v1156 = vlaneseq
    %v1157 = vshrl.u32 %v1156, 7
    %v1158 = vsub.s32 %v1155, %v1157
    %v1159 = vrot.slane %v1145, %v1158
    %v1160 = vcombine.high %v1152, %v1152
    %v1161 = vcombine.high %v1159, %v1159
    %v1163 = vunpack.c.l.s4 1966171168
    %v1164 = vunpack.c.0.s8 %v1163
    %v1165 = vlaneseq
    %v1166 = vshrl.u32 %v1165, 7
    %v1167 = vsub.s32 %v1164, %v1166
    %v1168 = vrot.slane %v1152, %v1167
    %v1170 = vunpack.c.l.s4 1966171168
    %v1171 = vunpack.c.0.s8 %v1170
    %v1172 = vlaneseq
    %v1173 = vshrl.u32 %v1172, 7
    %v1174 = vsub.s32 %v1171, %v1173
    %v1175 = vrot.slane %v1159, %v1174
    %v1177 = vunpack.c.l.s4 1966171168
    %v1178 = vunpack.c.0.s8 %v1177
    %v1179 = vlaneseq
    %v1180 = vshrl.u32 %v1179, 7
    %v1181 = vsub.s32 %v1178, %v1180
    %v1182 = vrot.slane %v1160, %v1181
    %v1184 = vunpack.c.l.s4 1966171168
    %v1185 = vunpack.c.0.s8 %v1184
    %v1186 = vlaneseq
    %v1187 = vshrl.u32 %v1186, 7
    %v1188 = vsub.s32 %v1185, %v1187
    %v1189 = vrot.slane %v1161, %v1188
    %v1190 = vcombine.high %v1168, %v1168
    %v1191 = vcombine.high %v1175, %v1175
    %v1192 = vcombine.high %v1182, %v1182
    %v1193 = vcombine.high %v1189, %v1189
    %v1194 = vcombine.high %v286, %v286
    %v1196 = vunpack.c.l.s4 1966171168
    %v1197 = vunpack.c.0.s8 %v1196
    %v1198 = vlaneseq
    %v1199 = vshrl.u32 %v1198, 7
    %v1200 = vsub.s32 %v1197, %v1199
    %v1201 = vrot.slane %v286, %v1200
    %v1203 = vunpack.c.l.s4 1966171168
    %v1204 = vunpack.c.0.s8 %v1203
    %v1205 = vlaneseq
    %v1206 = vshrl.u32 %v1205, 7
    %v1207 = vsub.s32 %v1204, %v1206
    %v1208 = vrot.slane %v1194, %v1207
    %v1209 = vcombine.high %v1201, %v1201
    %v1210 = vcombine.high %v1208, %v1208
    %v1212 = vunpack.c.l.s4 1966171168
    %v1213 = vunpack.c.0.s8 %v1212
    %v1214 = vlaneseq
    %v1215 = vshrl.u32 %v1214, 7
    %v1216 = vsub.s32 %v1213, %v1215
    %v1217 = vrot.slane %v1201, %v1216
    %v1219 = vunpack.c.l.s4 1966171168
    %v1220 = vunpack.c.0.s8 %v1219
    %v1221 = vlaneseq
    %v1222 = vshrl.u32 %v1221, 7
    %v1223 = vsub.s32 %v1220, %v1222
    %v1224 = vrot.slane %v1208, %v1223
    %v1226 = vunpack.c.l.s4 1966171168
    %v1227 = vunpack.c.0.s8 %v1226
    %v1228 = vlaneseq
    %v1229 = vshrl.u32 %v1228, 7
    %v1230 = vsub.s32 %v1227, %v1229
    %v1231 = vrot.slane %v1209, %v1230
    %v1233 = vunpack.c.l.s4 1966171168
    %v1234 = vunpack.c.0.s8 %v1233
    %v1235 = vlaneseq
    %v1236 = vshrl.u32 %v1235, 7
    %v1237 = vsub.s32 %v1234, %v1236
    %v1238 = vrot.slane %v1210, %v1237
    %v1239 = vcombine.high %v1217, %v1217
    %v1240 = vcombine.high %v1224, %v1224
    %v1241 = vcombine.high %v1231, %v1231
    %v1242 = vcombine.high %v1238, %v1238
    %v1243 = vcombine.high %v356, %v356
    %v1245 = vunpack.c.l.s4 1966171168
    %v1246 = vunpack.c.0.s8 %v1245
    %v1247 = vlaneseq
    %v1248 = vshrl.u32 %v1247, 7
    %v1249 = vsub.s32 %v1246, %v1248
    %v1250 = vrot.slane %v356, %v1249
    %v1252 = vunpack.c.l.s4 1966171168
    %v1253 = vunpack.c.0.s8 %v1252
    %v1254 = vlaneseq
    %v1255 = vshrl.u32 %v1254, 7
    %v1256 = vsub.s32 %v1253, %v1255
    %v1257 = vrot.slane %v1243, %v1256
    %v1258 = vcombine.high %v1250, %v1250
    %v1259 = vcombine.high %v1257, %v1257
    %v1261 = vunpack.c.l.s4 1966171168
    %v1262 = vunpack.c.0.s8 %v1261
    %v1263 = vlaneseq
    %v1264 = vshrl.u32 %v1263, 7
    %v1265 = vsub.s32 %v1262, %v1264
    %v1266 = vrot.slane %v1250, %v1265
    %v1268 = vunpack.c.l.s4 1966171168
    %v1269 = vunpack.c.0.s8 %v1268
    %v1270 = vlaneseq
    %v1271 = vshrl.u32 %v1270, 7
    %v1272 = vsub.s32 %v1269, %v1271
    %v1273 = vrot.slane %v1257, %v1272
    %v1275 = vunpack.c.l.s4 1966171168
    %v1276 = vunpack.c.0.s8 %v1275
    %v1277 = vlaneseq
    %v1278 = vshrl.u32 %v1277, 7
    %v1279 = vsub.s32 %v1276, %v1278
    %v1280 = vrot.slane %v1258, %v1279
    %v1282 = vunpack.c.l.s4 1966171168
    %v1283 = vunpack.c.0.s8 %v1282
    %v1284 = vlaneseq
    %v1285 = vshrl.u32 %v1284, 7
    %v1286 = vsub.s32 %v1283, %v1285
    %v1287 = vrot.slane %v1259, %v1286
    %v1288 = vcombine.high %v1266, %v1266
    %v1289 = vcombine.high %v1273, %v1273
    %v1290 = vcombine.high %v1280, %v1280
    %v1291 = vcombine.high %v1287, %v1287
    %v1292 = vcombine.high %v361, %v361
    %v1294 = vunpack.c.l.s4 1966171168
    %v1295 = vunpack.c.0.s8 %v1294
    %v1296 = vlaneseq
    %v1297 = vshrl.u32 %v1296, 7
    %v1298 = vsub.s32 %v1295, %v1297
    %v1299 = vrot.slane %v361, %v1298
    %v1301 = vunpack.c.l.s4 1966171168
    %v1302 = vunpack.c.0.s8 %v1301
    %v1303 = vlaneseq
    %v1304 = vshrl.u32 %v1303, 7
    %v1305 = vsub.s32 %v1302, %v1304
    %v1306 = vrot.slane %v1292, %v1305
    %v1307 = vcombine.high %v1299, %v1299
    %v1308 = vcombine.high %v1306, %v1306
    %v1310 = vunpack.c.l.s4 1966171168
    %v1311 = vunpack.c.0.s8 %v1310
    %v1312 = vlaneseq
    %v1313 = vshrl.u32 %v1312, 7
    %v1314 = vsub.s32 %v1311, %v1313
    %v1315 = vrot.slane %v1299, %v1314
    %v1317 = vunpack.c.l.s4 1966171168
    %v1318 = vunpack.c.0.s8 %v1317
    %v1319 = vlaneseq
    %v1320 = vshrl.u32 %v1319, 7
    %v1321 = vsub.s32 %v1318, %v1320
    %v1322 = vrot.slane %v1306, %v1321
    %v1324 = vunpack.c.l.s4 1966171168
    %v1325 = vunpack.c.0.s8 %v1324
    %v1326 = vlaneseq
    %v1327 = vshrl.u32 %v1326, 7
    %v1328 = vsub.s32 %v1325, %v1327
    %v1329 = vrot.slane %v1307, %v1328
    %v1331 = vunpack.c.l.s4 1966171168
    %v1332 = vunpack.c.0.s8 %v1331
    %v1333 = vlaneseq
    %v1334 = vshrl.u32 %v1333, 7
    %v1335 = vsub.s32 %v1332, %v1334
    %v1336 = vrot.slane %v1308, %v1335
    %v1337 = vcombine.high %v1315, %v1315
    %v1338 = vcombine.high %v1322, %v1322
    %v1339 = vcombine.high %v1329, %v1329
    %v1340 = vcombine.high %v1336, %v1336
    %v1341 = vcombine.high %v431, %v431
    %v1343 = vunpack.c.l.s4 1966171168
    %v1344 = vunpack.c.0.s8 %v1343
    %v1345 = vlaneseq
    %v1346 = vshrl.u32 %v1345, 7
    %v1347 = vsub.s32 %v1344, %v1346
    %v1348 = vrot.slane %v431, %v1347
    %v1350 = vunpack.c.l.s4 1966171168
    %v1351 = vunpack.c.0.s8 %v1350
    %v1352 = vlaneseq
    %v1353 = vshrl.u32 %v1352, 7
    %v1354 = vsub.s32 %v1351, %v1353
    %v1355 = vrot.slane %v1341, %v1354
    %v1356 = vcombine.high %v1348, %v1348
    %v1357 = vcombine.high %v1355, %v1355
    %v1359 = vunpack.c.l.s4 1966171168
    %v1360 = vunpack.c.0.s8 %v1359
    %v1361 = vlaneseq
    %v1362 = vshrl.u32 %v1361, 7
    %v1363 = vsub.s32 %v1360, %v1362
    %v1364 = vrot.slane %v1348, %v1363
    %v1366 = vunpack.c.l.s4 1966171168
    %v1367 = vunpack.c.0.s8 %v1366
    %v1368 = vlaneseq
    %v1369 = vshrl.u32 %v1368, 7
    %v1370 = vsub.s32 %v1367, %v1369
    %v1371 = vrot.slane %v1355, %v1370
    %v1373 = vunpack.c.l.s4 1966171168
    %v1374 = vunpack.c.0.s8 %v1373
    %v1375 = vlaneseq
    %v1376 = vshrl.u32 %v1375, 7
    %v1377 = vsub.s32 %v1374, %v1376
    %v1378 = vrot.slane %v1356, %v1377
    %v1380 = vunpack.c.l.s4 1966171168
    %v1381 = vunpack.c.0.s8 %v1380
    %v1382 = vlaneseq
    %v1383 = vshrl.u32 %v1382, 7
    %v1384 = vsub.s32 %v1381, %v1383
    %v1385 = vrot.slane %v1357, %v1384
    %v1386 = vcombine.high %v1364, %v1364
    %v1387 = vcombine.high %v1371, %v1371
    %v1388 = vcombine.high %v1378, %v1378
    %v1389 = vcombine.high %v1385, %v1385
    %v1390 = vcombine.high %v436, %v436
    %v1392 = vunpack.c.l.s4 1966171168
    %v1393 = vunpack.c.0.s8 %v1392
    %v1394 = vlaneseq
    %v1395 = vshrl.u32 %v1394, 7
    %v1396 = vsub.s32 %v1393, %v1395
    %v1397 = vrot.slane %v436, %v1396
    %v1399 = vunpack.c.l.s4 1966171168
    %v1400 = vunpack.c.0.s8 %v1399
    %v1401 = vlaneseq
    %v1402 = vshrl.u32 %v1401, 7
    %v1403 = vsub.s32 %v1400, %v1402
    %v1404 = vrot.slane %v1390, %v1403
    %v1405 = vcombine.high %v1397, %v1397
    %v1406 = vcombine.high %v1404, %v1404
    %v1408 = vunpack.c.l.s4 1966171168
    %v1409 = vunpack.c.0.s8 %v1408
    %v1410 = vlaneseq
    %v1411 = vshrl.u32 %v1410, 7
    %v1412 = vsub.s32 %v1409, %v1411
    %v1413 = vrot.slane %v1397, %v1412
    %v1415 = vunpack.c.l.s4 1966171168
    %v1416 = vunpack.c.0.s8 %v1415
    %v1417 = vlaneseq
    %v1418 = vshrl.u32 %v1417, 7
    %v1419 = vsub.s32 %v1416, %v1418
    %v1420 = vrot.slane %v1404, %v1419
    %v1422 = vunpack.c.l.s4 1966171168
    %v1423 = vunpack.c.0.s8 %v1422
    %v1424 = vlaneseq
    %v1425 = vshrl.u32 %v1424, 7
    %v1426 = vsub.s32 %v1423, %v1425
    %v1427 = vrot.slane %v1405, %v1426
    %v1429 = vunpack.c.l.s4 1966171168
    %v1430 = vunpack.c.0.s8 %v1429
    %v1431 = vlaneseq
    %v1432 = vshrl.u32 %v1431, 7
    %v1433 = vsub.s32 %v1430, %v1432
    %v1434 = vrot.slane %v1406, %v1433
    %v1435 = vcombine.high %v1413, %v1413
    %v1436 = vcombine.high %v1420, %v1420
    %v1437 = vcombine.high %v1427, %v1427
    %v1438 = vcombine.high %v1434, %v1434
    %v1439 = vlaneseq
    %v1440 = vshrl.u32 %v1439, 7
    %v1441 = vsub.s32 0, %v1440
    %v1442 = vrot.slane %v1070, %v1441
    %v1443 = vlaneseq
    %v1444 = vshrl.u32 %v1443, 7
    %v1445 = vsub.s32 0, %v1444
    %v1446 = vrot.slane %v1084, %v1445
    %v1447 = vlaneseq
    %v1448 = vshrl.u32 %v1447, 7
    %v1449 = vsub.s32 0, %v1448
    %v1450 = vrot.slane %v1092, %v1449
    %v1451 = vlaneseq
    %v1452 = vshrl.u32 %v1451, 7
    %v1453 = vsub.s32 0, %v1452
    %v1454 = vrot.slane %v1094, %v1453
    %v1455 = vlaneseq
    %v1456 = vshrl.u32 %v1455, 7
    %v1457 = vsub.s32 0, %v1456
    %v1458 = vrot.slane %v1077, %v1457
    %v1459 = vlaneseq
    %v1460 = vshrl.u32 %v1459, 7
    %v1461 = vsub.s32 0, %v1460
    %v1462 = vrot.slane %v1091, %v1461
    %v1463 = vlaneseq
    %v1464 = vshrl.u32 %v1463, 7
    %v1465 = vsub.s32 0, %v1464
    %v1466 = vrot.slane %v1093, %v1465
    %v1467 = vlaneseq
    %v1468 = vshrl.u32 %v1467, 7
    %v1469 = vsub.s32 0, %v1468
    %v1470 = vrot.slane %v1095, %v1469
    %v1471 = vlaneseq
    %v1472 = vshrl.u32 %v1471, 7
    %v1473 = vsub.s32 0, %v1472
    %v1474 = vrot.slane %v1119, %v1473
    %v1475 = vlaneseq
    %v1476 = vshrl.u32 %v1475, 7
    %v1477 = vsub.s32 0, %v1476
    %v1478 = vrot.slane %v1133, %v1477
    %v1479 = vlaneseq
    %v1480 = vshrl.u32 %v1479, 7
    %v1481 = vsub.s32 0, %v1480
    %v1482 = vrot.slane %v1141, %v1481
    %v1483 = vlaneseq
    %v1484 = vshrl.u32 %v1483, 7
    %v1485 = vsub.s32 0, %v1484
    %v1486 = vrot.slane %v1143, %v1485
    %v1487 = vlaneseq
    %v1488 = vshrl.u32 %v1487, 7
    %v1489 = vsub.s32 0, %v1488
    %v1490 = vrot.slane %v1126, %v1489
    %v1491 = vlaneseq
    %v1492 = vshrl.u32 %v1491, 7
    %v1493 = vsub.s32 0, %v1492
    %v1494 = vrot.slane %v1140, %v1493
    %v1495 = vlaneseq
    %v1496 = vshrl.u32 %v1495, 7
    %v1497 = vsub.s32 0, %v1496
    %v1498 = vrot.slane %v1142, %v1497
    %v1499 = vlaneseq
    %v1500 = vshrl.u32 %v1499, 7
    %v1501 = vsub.s32 0, %v1500
    %v1502 = vrot.slane %v1144, %v1501
    %v1503 = vlaneseq
    %v1504 = vshrl.u32 %v1503, 7
    %v1505 = vsub.s32 0, %v1504
    %v1506 = vrot.slane %v1168, %v1505
    %v1507 = vlaneseq
    %v1508 = vshrl.u32 %v1507, 7
    %v1509 = vsub.s32 0, %v1508
    %v1510 = vrot.slane %v1182, %v1509
    %v1511 = vlaneseq
    %v1512 = vshrl.u32 %v1511, 7
    %v1513 = vsub.s32 0, %v1512
    %v1514 = vrot.slane %v1190, %v1513
    %v1515 = vlaneseq
    %v1516 = vshrl.u32 %v1515, 7
    %v1517 = vsub.s32 0, %v1516
    %v1518 = vrot.slane %v1192, %v1517
    %v1519 = vlaneseq
    %v1520 = vshrl.u32 %v1519, 7
    %v1521 = vsub.s32 0, %v1520
    %v1522 = vrot.slane %v1175, %v1521
    %v1523 = vlaneseq
    %v1524 = vshrl.u32 %v1523, 7
    %v1525 = vsub.s32 0, %v1524
    %v1526 = vrot.slane %v1189, %v1525
    %v1527 = vlaneseq
    %v1528 = vshrl.u32 %v1527, 7
    %v1529 = vsub.s32 0, %v1528
    %v1530 = vrot.slane %v1191, %v1529
    %v1531 = vlaneseq
    %v1532 = vshrl.u32 %v1531, 7
    %v1533 = vsub.s32 0, %v1532
    %v1534 = vrot.slane %v1193, %v1533
    %v1535 = vlaneseq
    %v1536 = vshrl.u32 %v1535, 7
    %v1537 = vsub.s32 0, %v1536
    %v1538 = vrot.slane %v1217, %v1537
    %v1539 = vlaneseq
    %v1540 = vshrl.u32 %v1539, 7
    %v1541 = vsub.s32 0, %v1540
    %v1542 = vrot.slane %v1231, %v1541
    %v1543 = vlaneseq
    %v1544 = vshrl.u32 %v1543, 7
    %v1545 = vsub.s32 0, %v1544
    %v1546 = vrot.slane %v1239, %v1545
    %v1547 = vlaneseq
    %v1548 = vshrl.u32 %v1547, 7
    %v1549 = vsub.s32 0, %v1548
    %v1550 = vrot.slane %v1241, %v1549
    %v1551 = vlaneseq
    %v1552 = vshrl.u32 %v1551, 7
    %v1553 = vsub.s32 0, %v1552
    %v1554 = vrot.slane %v1224, %v1553
    %v1555 = vlaneseq
    %v1556 = vshrl.u32 %v1555, 7
    %v1557 = vsub.s32 0, %v1556
    %v1558 = vrot.slane %v1238, %v1557
    %v1559 = vlaneseq
    %v1560 = vshrl.u32 %v1559, 7
    %v1561 = vsub.s32 0, %v1560
    %v1562 = vrot.slane %v1240, %v1561
    %v1563 = vlaneseq
    %v1564 = vshrl.u32 %v1563, 7
    %v1565 = vsub.s32 0, %v1564
    %v1566 = vrot.slane %v1242, %v1565
    %v1567 = vlaneseq
    %v1568 = vshrl.u32 %v1567, 7
    %v1569 = vsub.s32 0, %v1568
    %v1570 = vrot.slane %v1266, %v1569
    %v1571 = vlaneseq
    %v1572 = vshrl.u32 %v1571, 7
    %v1573 = vsub.s32 0, %v1572
    %v1574 = vrot.slane %v1280, %v1573
    %v1575 = vlaneseq
    %v1576 = vshrl.u32 %v1575, 7
    %v1577 = vsub.s32 0, %v1576
    %v1578 = vrot.slane %v1288, %v1577
    %v1579 = vlaneseq
    %v1580 = vshrl.u32 %v1579, 7
    %v1581 = vsub.s32 0, %v1580
    %v1582 = vrot.slane %v1290, %v1581
    %v1583 = vlaneseq
    %v1584 = vshrl.u32 %v1583, 7
    %v1585 = vsub.s32 0, %v1584
    %v1586 = vrot.slane %v1273, %v1585
    %v1587 = vlaneseq
    %v1588 = vshrl.u32 %v1587, 7
    %v1589 = vsub.s32 0, %v1588
    %v1590 = vrot.slane %v1287, %v1589
    %v1591 = vlaneseq
    %v1592 = vshrl.u32 %v1591, 7
    %v1593 = vsub.s32 0, %v1592
    %v1594 = vrot.slane %v1289, %v1593
    %v1595 = vlaneseq
    %v1596 = vshrl.u32 %v1595, 7
    %v1597 = vsub.s32 0, %v1596
    %v1598 = vrot.slane %v1291, %v1597
    %v1599 = vlaneseq
    %v1600 = vshrl.u32 %v1599, 7
    %v1601 = vsub.s32 0, %v1600
    %v1602 = vrot.slane %v1315, %v1601
    %v1603 = vlaneseq
    %v1604 = vshrl.u32 %v1603, 7
    %v1605 = vsub.s32 0, %v1604
    %v1606 = vrot.slane %v1329, %v1605
    %v1607 = vlaneseq
    %v1608 = vshrl.u32 %v1607, 7
    %v1609 = vsub.s32 0, %v1608
    %v1610 = vrot.slane %v1337, %v1609
    %v1611 = vlaneseq
    %v1612 = vshrl.u32 %v1611, 7
    %v1613 = vsub.s32 0, %v1612
    %v1614 = vrot.slane %v1339, %v1613
    %v1615 = vlaneseq
    %v1616 = vshrl.u32 %v1615, 7
    %v1617 = vsub.s32 0, %v1616
    %v1618 = vrot.slane %v1322, %v1617
    %v1619 = vlaneseq
    %v1620 = vshrl.u32 %v1619, 7
    %v1621 = vsub.s32 0, %v1620
    %v1622 = vrot.slane %v1336, %v1621
    %v1623 = vlaneseq
    %v1624 = vshrl.u32 %v1623, 7
    %v1625 = vsub.s32 0, %v1624
    %v1626 = vrot.slane %v1338, %v1625
    %v1627 = vlaneseq
    %v1628 = vshrl.u32 %v1627, 7
    %v1629 = vsub.s32 0, %v1628
    %v1630 = vrot.slane %v1340, %v1629
    %v1631 = vlaneseq
    %v1632 = vshrl.u32 %v1631, 7
    %v1633 = vsub.s32 0, %v1632
    %v1634 = vrot.slane %v1364, %v1633
    %v1635 = vlaneseq
    %v1636 = vshrl.u32 %v1635, 7
    %v1637 = vsub.s32 0, %v1636
    %v1638 = vrot.slane %v1378, %v1637
    %v1639 = vlaneseq
    %v1640 = vshrl.u32 %v1639, 7
    %v1641 = vsub.s32 0, %v1640
    %v1642 = vrot.slane %v1386, %v1641
    %v1643 = vlaneseq
    %v1644 = vshrl.u32 %v1643, 7
    %v1645 = vsub.s32 0, %v1644
    %v1646 = vrot.slane %v1388, %v1645
    %v1647 = vlaneseq
    %v1648 = vshrl.u32 %v1647, 7
    %v1649 = vsub.s32 0, %v1648
    %v1650 = vrot.slane %v1371, %v1649
    %v1651 = vlaneseq
    %v1652 = vshrl.u32 %v1651, 7
    %v1653 = vsub.s32 0, %v1652
    %v1654 = vrot.slane %v1385, %v1653
    %v1655 = vlaneseq
    %v1656 = vshrl.u32 %v1655, 7
    %v1657 = vsub.s32 0, %v1656
    %v1658 = vrot.slane %v1387, %v1657
    %v1659 = vlaneseq
    %v1660 = vshrl.u32 %v1659, 7
    %v1661 = vsub.s32 0, %v1660
    %v1662 = vrot.slane %v1389, %v1661
    %v1663 = vlaneseq
    %v1664 = vshrl.u32 %v1663, 7
    %v1665 = vsub.s32 0, %v1664
    %v1666 = vrot.slane %v1413, %v1665
    %v1667 = vlaneseq
    %v1668 = vshrl.u32 %v1667, 7
    %v1669 = vsub.s32 0, %v1668
    %v1670 = vrot.slane %v1427, %v1669
    %v1671 = vlaneseq
    %v1672 = vshrl.u32 %v1671, 7
    %v1673 = vsub.s32 0, %v1672
    %v1674 = vrot.slane %v1435, %v1673
    %v1675 = vlaneseq
    %v1676 = vshrl.u32 %v1675, 7
    %v1677 = vsub.s32 0, %v1676
    %v1678 = vrot.slane %v1437, %v1677
    %v1679 = vlaneseq
    %v1680 = vshrl.u32 %v1679, 7
    %v1681 = vsub.s32 0, %v1680
    %v1682 = vrot.slane %v1420, %v1681
    %v1683 = vlaneseq
    %v1684 = vshrl.u32 %v1683, 7
    %v1685 = vsub.s32 0, %v1684
    %v1686 = vrot.slane %v1434, %v1685
    %v1687 = vlaneseq
    %v1688 = vshrl.u32 %v1687, 7
    %v1689 = vsub.s32 0, %v1688
    %v1690 = vrot.slane %v1436, %v1689
    %v1691 = vlaneseq
    %v1692 = vshrl.u32 %v1691, 7
    %v1693 = vsub.s32 0, %v1692
    %v1694 = vrot.slane %v1438, %v1693
    %v1759 = vmul.f32 %v1442, %v89
    %v1760 = vmul.f32 %v1446, %v90
    %v1761 = vmul.f32 %v1450, %v91
    %v1762 = vmul.f32 %v1454, %v92
    %v1763 = vmul.f32 %v1458, %v93
    %v1764 = vmul.f32 %v1462, %v94
    %v1765 = vmul.f32 %v1466, %v95
    %v1766 = vmul.f32 %v1470, %v96
    %v1767 = vmul.f32 %v1474, %v89
    %v1768 = vmul.f32 %v1478, %v90
    %v1769 = vmul.f32 %v1482, %v91
    %v1770 = vmul.f32 %v1486, %v92
    %v1771 = vmul.f32 %v1490, %v93
    %v1772 = vmul.f32 %v1494, %v94
    %v1773 = vmul.f32 %v1498, %v95
    %v1774 = vmul.f32 %v1502, %v96
    %v1775 = vmul.f32 %v1506, %v89
    %v1776 = vmul.f32 %v1510, %v90
    %v1777 = vmul.f32 %v1514, %v91
    %v1778 = vmul.f32 %v1518, %v92
    %v1779 = vmul.f32 %v1522, %v93
    %v1780 = vmul.f32 %v1526, %v94
    %v1781 = vmul.f32 %v1530, %v95
    %v1782 = vmul.f32 %v1534, %v96
    %v1783 = vmul.f32 %v1538, %v89
    %v1784 = vmul.f32 %v1542, %v90
    %v1785 = vmul.f32 %v1546, %v91
    %v1786 = vmul.f32 %v1550, %v92
    %v1787 = vmul.f32 %v1554, %v93
    %v1788 = vmul.f32 %v1558, %v94
    %v1789 = vmul.f32 %v1562, %v95
    %v1790 = vmul.f32 %v1566, %v96
    %v1791 = vmul.f32 %v1570, %v89
    %v1792 = vmul.f32 %v1574, %v90
    %v1793 = vmul.f32 %v1578, %v91
    %v1794 = vmul.f32 %v1582, %v92
    %v1795 = vmul.f32 %v1586, %v93
    %v1796 = vmul.f32 %v1590, %v94
    %v1797 = vmul.f32 %v1594, %v95
    %v1798 = vmul.f32 %v1598, %v96
    %v1799 = vmul.f32 %v1602, %v89
    %v1800 = vmul.f32 %v1606, %v90
    %v1801 = vmul.f32 %v1610, %v91
    %v1802 = vmul.f32 %v1614, %v92
    %v1803 = vmul.f32 %v1618, %v93
    %v1804 = vmul.f32 %v1622, %v94
    %v1805 = vmul.f32 %v1626, %v95
    %v1806 = vmul.f32 %v1630, %v96
    %v1807 = vmul.f32 %v1634, %v89
    %v1808 = vmul.f32 %v1638, %v90
    %v1809 = vmul.f32 %v1642, %v91
    %v1810 = vmul.f32 %v1646, %v92
    %v1811 = vmul.f32 %v1650, %v93
    %v1812 = vmul.f32 %v1654, %v94
    %v1813 = vmul.f32 %v1658, %v95
    %v1814 = vmul.f32 %v1662, %v96
    %v1815 = vmul.f32 %v1666, %v89
    %v1816 = vmul.f32 %v1670, %v90
    %v1817 = vmul.f32 %v1674, %v91
    %v1818 = vmul.f32 %v1678, %v92
    %v1819 = vmul.f32 %v1682, %v93
    %v1820 = vmul.f32 %v1686, %v94
    %v1821 = vmul.f32 %v1690, %v95
    %v1822 = vmul.f32 %v1694, %v96
    %vm1823 = vcmask 64512
    %v1824 = vsel %vm1823, %v1759, 0.0
    %1825 = vadd.xlane.f32.xlu0 %v1824
    %v1826 = vpop.xlane.xlu0 %1825
    %v1827 = vsel %vm1823, %v1760, 0.0
    %1828 = vadd.xlane.f32.xlu0 %v1827
    %v1829 = vpop.xlane.xlu0 %1828
    %v1830 = vsel %vm1823, %v1761, 0.0
    %1831 = vadd.xlane.f32.xlu0 %v1830
    %v1832 = vpop.xlane.xlu0 %1831
    %v1833 = vsel %vm1823, %v1762, 0.0
    %1834 = vadd.xlane.f32.xlu0 %v1833
    %v1835 = vpop.xlane.xlu0 %1834
    %v1836 = vsel %vm1823, %v1763, 0.0
    %1837 = vadd.xlane.f32.xlu0 %v1836
    %v1838 = vpop.xlane.xlu0 %1837
    %v1839 = vsel %vm1823, %v1764, 0.0
    %1840 = vadd.xlane.f32.xlu0 %v1839
    %v1841 = vpop.xlane.xlu0 %1840
    %v1842 = vsel %vm1823, %v1765, 0.0
    %1843 = vadd.xlane.f32.xlu0 %v1842
    %v1844 = vpop.xlane.xlu0 %1843
    %v1845 = vsel %vm1823, %v1766, 0.0
    %1846 = vadd.xlane.f32.xlu0 %v1845
    %v1847 = vpop.xlane.xlu0 %1846
    %v1848 = vsel %vm1823, %v1767, 0.0
    %1849 = vadd.xlane.f32.xlu0 %v1848
    %v1850 = vpop.xlane.xlu0 %1849
    %v1851 = vsel %vm1823, %v1768, 0.0
    %1852 = vadd.xlane.f32.xlu0 %v1851
    %v1853 = vpop.xlane.xlu0 %1852
    %v1854 = vsel %vm1823, %v1769, 0.0
    %1855 = vadd.xlane.f32.xlu0 %v1854
    %v1856 = vpop.xlane.xlu0 %1855
    %v1857 = vsel %vm1823, %v1770, 0.0
    %1858 = vadd.xlane.f32.xlu0 %v1857
    %v1859 = vpop.xlane.xlu0 %1858
    %v1860 = vsel %vm1823, %v1771, 0.0
    %1861 = vadd.xlane.f32.xlu0 %v1860
    %v1862 = vpop.xlane.xlu0 %1861
    %v1863 = vsel %vm1823, %v1772, 0.0
    %1864 = vadd.xlane.f32.xlu0 %v1863
    %v1865 = vpop.xlane.xlu0 %1864
    %v1866 = vsel %vm1823, %v1773, 0.0
    %1867 = vadd.xlane.f32.xlu0 %v1866
    %v1868 = vpop.xlane.xlu0 %1867
    %v1869 = vsel %vm1823, %v1774, 0.0
    %1870 = vadd.xlane.f32.xlu0 %v1869
    %v1871 = vpop.xlane.xlu0 %1870
    %v1872 = vsel %vm1823, %v1775, 0.0
    %1873 = vadd.xlane.f32.xlu0 %v1872
    %v1874 = vpop.xlane.xlu0 %1873
    %v1875 = vsel %vm1823, %v1776, 0.0
    %1876 = vadd.xlane.f32.xlu0 %v1875
    %v1877 = vpop.xlane.xlu0 %1876
    %v1878 = vsel %vm1823, %v1777, 0.0
    %1879 = vadd.xlane.f32.xlu0 %v1878
    %v1880 = vpop.xlane.xlu0 %1879
    %v1881 = vsel %vm1823, %v1778, 0.0
    %1882 = vadd.xlane.f32.xlu0 %v1881
    %v1883 = vpop.xlane.xlu0 %1882
    %v1884 = vsel %vm1823, %v1779, 0.0
    %1885 = vadd.xlane.f32.xlu0 %v1884
    %v1886 = vpop.xlane.xlu0 %1885
    %v1887 = vsel %vm1823, %v1780, 0.0
    %1888 = vadd.xlane.f32.xlu0 %v1887
    %v1889 = vpop.xlane.xlu0 %1888
    %v1890 = vsel %vm1823, %v1781, 0.0
    %1891 = vadd.xlane.f32.xlu0 %v1890
    %v1892 = vpop.xlane.xlu0 %1891
    %v1893 = vsel %vm1823, %v1782, 0.0
    %1894 = vadd.xlane.f32.xlu0 %v1893
    %v1895 = vpop.xlane.xlu0 %1894
    %v1896 = vsel %vm1823, %v1783, 0.0
    %1897 = vadd.xlane.f32.xlu0 %v1896
    %v1898 = vpop.xlane.xlu0 %1897
    %v1899 = vsel %vm1823, %v1784, 0.0
    %1900 = vadd.xlane.f32.xlu0 %v1899
    %v1901 = vpop.xlane.xlu0 %1900
    %v1902 = vsel %vm1823, %v1785, 0.0
    %1903 = vadd.xlane.f32.xlu0 %v1902
    %v1904 = vpop.xlane.xlu0 %1903
    %v1905 = vsel %vm1823, %v1786, 0.0
    %1906 = vadd.xlane.f32.xlu0 %v1905
    %v1907 = vpop.xlane.xlu0 %1906
    %v1908 = vsel %vm1823, %v1787, 0.0
    %1909 = vadd.xlane.f32.xlu0 %v1908
    %v1910 = vpop.xlane.xlu0 %1909
    %v1911 = vsel %vm1823, %v1788, 0.0
    %1912 = vadd.xlane.f32.xlu0 %v1911
    %v1913 = vpop.xlane.xlu0 %1912
    %v1914 = vsel %vm1823, %v1789, 0.0
    %1915 = vadd.xlane.f32.xlu0 %v1914
    %v1916 = vpop.xlane.xlu0 %1915
    %v1917 = vsel %vm1823, %v1790, 0.0
    %1918 = vadd.xlane.f32.xlu0 %v1917
    %v1919 = vpop.xlane.xlu0 %1918
    %v1920 = vsel %vm1823, %v1791, 0.0
    %1921 = vadd.xlane.f32.xlu0 %v1920
    %v1922 = vpop.xlane.xlu0 %1921
    %v1923 = vsel %vm1823, %v1792, 0.0
    %1924 = vadd.xlane.f32.xlu0 %v1923
    %v1925 = vpop.xlane.xlu0 %1924
    %v1926 = vsel %vm1823, %v1793, 0.0
    %1927 = vadd.xlane.f32.xlu0 %v1926
    %v1928 = vpop.xlane.xlu0 %1927
    %v1929 = vsel %vm1823, %v1794, 0.0
    %1930 = vadd.xlane.f32.xlu0 %v1929
    %v1931 = vpop.xlane.xlu0 %1930
    %v1932 = vsel %vm1823, %v1795, 0.0
    %1933 = vadd.xlane.f32.xlu0 %v1932
    %v1934 = vpop.xlane.xlu0 %1933
    %v1935 = vsel %vm1823, %v1796, 0.0
    %1936 = vadd.xlane.f32.xlu0 %v1935
    %v1937 = vpop.xlane.xlu0 %1936
    %v1938 = vsel %vm1823, %v1797, 0.0
    %1939 = vadd.xlane.f32.xlu0 %v1938
    %v1940 = vpop.xlane.xlu0 %1939
    %v1941 = vsel %vm1823, %v1798, 0.0
    %1942 = vadd.xlane.f32.xlu0 %v1941
    %v1943 = vpop.xlane.xlu0 %1942
    %v1944 = vsel %vm1823, %v1799, 0.0
    %1945 = vadd.xlane.f32.xlu0 %v1944
    %v1946 = vpop.xlane.xlu0 %1945
    %v1947 = vsel %vm1823, %v1800, 0.0
    %1948 = vadd.xlane.f32.xlu0 %v1947
    %v1949 = vpop.xlane.xlu0 %1948
    %v1950 = vsel %vm1823, %v1801, 0.0
    %1951 = vadd.xlane.f32.xlu0 %v1950
    %v1952 = vpop.xlane.xlu0 %1951
    %v1953 = vsel %vm1823, %v1802, 0.0
    %1954 = vadd.xlane.f32.xlu0 %v1953
    %v1955 = vpop.xlane.xlu0 %1954
    %v1956 = vsel %vm1823, %v1803, 0.0
    %1957 = vadd.xlane.f32.xlu0 %v1956
    %v1958 = vpop.xlane.xlu0 %1957
    %v1959 = vsel %vm1823, %v1804, 0.0
    %1960 = vadd.xlane.f32.xlu0 %v1959
    %v1961 = vpop.xlane.xlu0 %1960
    %v1962 = vsel %vm1823, %v1805, 0.0
    %1963 = vadd.xlane.f32.xlu0 %v1962
    %v1964 = vpop.xlane.xlu0 %1963
    %v1965 = vsel %vm1823, %v1806, 0.0
    %1966 = vadd.xlane.f32.xlu0 %v1965
    %v1967 = vpop.xlane.xlu0 %1966
    %v1968 = vsel %vm1823, %v1807, 0.0
    %1969 = vadd.xlane.f32.xlu0 %v1968
    %v1970 = vpop.xlane.xlu0 %1969
    %v1971 = vsel %vm1823, %v1808, 0.0
    %1972 = vadd.xlane.f32.xlu0 %v1971
    %v1973 = vpop.xlane.xlu0 %1972
    %v1974 = vsel %vm1823, %v1809, 0.0
    %1975 = vadd.xlane.f32.xlu0 %v1974
    %v1976 = vpop.xlane.xlu0 %1975
    %v1977 = vsel %vm1823, %v1810, 0.0
    %1978 = vadd.xlane.f32.xlu0 %v1977
    %v1979 = vpop.xlane.xlu0 %1978
    %v1980 = vsel %vm1823, %v1811, 0.0
    %1981 = vadd.xlane.f32.xlu0 %v1980
    %v1982 = vpop.xlane.xlu0 %1981
    %v1983 = vsel %vm1823, %v1812, 0.0
    %1984 = vadd.xlane.f32.xlu0 %v1983
    %v1985 = vpop.xlane.xlu0 %1984
    %v1986 = vsel %vm1823, %v1813, 0.0
    %1987 = vadd.xlane.f32.xlu0 %v1986
    %v1988 = vpop.xlane.xlu0 %1987
    %v1989 = vsel %vm1823, %v1814, 0.0
    %1990 = vadd.xlane.f32.xlu0 %v1989
    %v1991 = vpop.xlane.xlu0 %1990
    %v1992 = vsel %vm1823, %v1815, 0.0
    %1993 = vadd.xlane.f32.xlu0 %v1992
    %v1994 = vpop.xlane.xlu0 %1993
    %v1995 = vsel %vm1823, %v1816, 0.0
    %1996 = vadd.xlane.f32.xlu0 %v1995
    %v1997 = vpop.xlane.xlu0 %1996
    %v1998 = vsel %vm1823, %v1817, 0.0
    %1999 = vadd.xlane.f32.xlu0 %v1998
    %v2000 = vpop.xlane.xlu0 %1999
    %v2001 = vsel %vm1823, %v1818, 0.0
    %2002 = vadd.xlane.f32.xlu0 %v2001
    %v2003 = vpop.xlane.xlu0 %2002
    %v2004 = vsel %vm1823, %v1819, 0.0
    %2005 = vadd.xlane.f32.xlu0 %v2004
    %v2006 = vpop.xlane.xlu0 %2005
    %v2007 = vsel %vm1823, %v1820, 0.0
    %2008 = vadd.xlane.f32.xlu0 %v2007
    %v2009 = vpop.xlane.xlu0 %2008
    %v2010 = vsel %vm1823, %v1821, 0.0
    %2011 = vadd.xlane.f32.xlu0 %v2010
    %v2012 = vpop.xlane.xlu0 %2011
    %v2013 = vsel %vm1823, %v1822, 0.0
    %2014 = vadd.xlane.f32.xlu0 %v2013
    %v2015 = vpop.xlane.xlu0 %2014
    %v2024 = vlaneseq
    %v2025 = vand.u32 %v2024, 127
    %v2026 = vlaneseq
    %v2027 = vshrl.u32 %v2026, 7
    %v2028 = vsub.s32 %v2025, %v2027
    %v2029 = vrot.slane %v1826, %v2028
    %v2030 = vlaneseq
    %v2031 = vshrl.u32 %v2030, 7
    %v2032 = vsub.s32 %v2025, %v2031
    %v2033 = vrot.slane %v1829, %v2032
    %v2034 = vlaneseq
    %v2035 = vshrl.u32 %v2034, 7
    %v2036 = vsub.s32 %v2025, %v2035
    %v2037 = vrot.slane %v1832, %v2036
    %v2038 = vlaneseq
    %v2039 = vshrl.u32 %v2038, 7
    %v2040 = vsub.s32 %v2025, %v2039
    %v2041 = vrot.slane %v1835, %v2040
    %v2042 = vlaneseq
    %v2043 = vshrl.u32 %v2042, 7
    %v2044 = vsub.s32 %v2025, %v2043
    %v2045 = vrot.slane %v1838, %v2044
    %v2046 = vlaneseq
    %v2047 = vshrl.u32 %v2046, 7
    %v2048 = vsub.s32 %v2025, %v2047
    %v2049 = vrot.slane %v1841, %v2048
    %v2050 = vlaneseq
    %v2051 = vshrl.u32 %v2050, 7
    %v2052 = vsub.s32 %v2025, %v2051
    %v2053 = vrot.slane %v1844, %v2052
    %v2054 = vlaneseq
    %v2055 = vshrl.u32 %v2054, 7
    %v2056 = vsub.s32 %v2025, %v2055
    %v2057 = vrot.slane %v1847, %v2056
    %vm2058 = vcmask 1041409
    %v2059 = vsel %vm2058, %v2033, %v2029
    %vm2060 = vcmask 1042434
    %v2061 = vsel %vm2060, %v2037, %v2059
    %vm2062 = vcmask 1043459
    %v2063 = vsel %vm2062, %v2041, %v2061
    %vm2064 = vcmask 1044484
    %v2065 = vsel %vm2064, %v2045, %v2063
    %vm2066 = vcmask 1045509
    %v2067 = vsel %vm2066, %v2049, %v2065
    %vm2068 = vcmask 1046534
    %v2069 = vsel %vm2068, %v2053, %v2067
    %vm2070 = vcmask 1047559
    %v2071 = vsel %vm2070, %v2057, %v2069
    %v2073 = vsel %vm1823, %v206, 0
    %v2076 = vsel %vm1823, %v506, 0
    %2078 = vmatprep.subr.mxu0 0.0
    %2079 = vmatpush1.xpose.msra.mxu0 %v2076
    %2080 = vmatprep.subr.mxu0 0.0
    %2081 = vmatpush1.xpose.msra.mxu0 0.0
    %2082 = vmatprep.subr.mxu0 0.0
    %2083 = vmatpush1.xpose.msra.mxu0 0.0
    %2084 = vmatprep.subr.mxu0 0.0
    %2085 = vmatpush1.xpose.msra.mxu0 0.0
    %2086 = vmatprep.subr.mxu0 0.0
    %2087 = vmatpush1.xpose.msra.mxu0 0.0
    %2088 = vmatprep.subr.mxu0 0.0
    %2089 = vmatpush1.xpose.msra.mxu0 0.0
    %2090 = vmatprep.subr.mxu0 0.0
    %2091 = vmatpush1.xpose.msra.mxu0 0.0
    %2092 = vmatprep.subr.mxu0 0.0
    %2093 = vmatpush1.xpose.msra.mxu0 0.0
    %2094 = vmatprep.subr.mxu0 0.0
    %2095 = vmatpush1.xpose.msra.mxu0 0.0
    %2096 = vmatprep.subr.mxu0 0.0
    %2097 = vmatpush1.xpose.msra.mxu0 0.0
    %2098 = vmatprep.subr.mxu0 0.0
    %2099 = vmatpush1.xpose.msra.mxu0 0.0
    %2100 = vmatprep.subr.mxu0 0.0
    %2101 = vmatpush1.xpose.msra.mxu0 0.0
    %2102 = vmatprep.subr.mxu0 0.0
    %2103 = vmatpush1.xpose.msra.mxu0 0.0
    %2104 = vmatprep.subr.mxu0 0.0
    %2105 = vmatpush1.xpose.msra.mxu0 0.0
    %2106 = vmatprep.subr.mxu0 0.0
    %2107 = vmatpush1.xpose.msra.mxu0 0.0
    %2108 = vmatprep.subr.mxu0 0.0
    %2109 = vmatpush1.xpose.msra.mxu0 0.0
    %2110 = vmatprep.subr.mxu0 0.0
    %2111 = vmatpush1.xpose.msra.mxu0 0.0
    %2112 = vmatprep.subr.mxu0 0.0
    %2113 = vmatpush1.xpose.msra.mxu0 0.0
    %2114 = vmatprep.subr.mxu0 0.0
    %2115 = vmatpush1.xpose.msra.mxu0 0.0
    %2116 = vmatprep.subr.mxu0 0.0
    %2117 = vmatpush1.xpose.msra.mxu0 0.0
    %2118 = vmatprep.subr.mxu0 0.0
    %2119 = vmatpush1.xpose.msra.mxu0 0.0
    %2120 = vmatprep.subr.mxu0 0.0
    %2121 = vmatpush1.xpose.msra.mxu0 0.0
    %2122 = vmatprep.subr.mxu0 0.0
    %2123 = vmatpush1.xpose.msra.mxu0 0.0
    %2124 = vmatprep.subr.mxu0 0.0
    %2125 = vmatpush1.xpose.msra.mxu0 0.0
    %2126 = vmatprep.subr.mxu0 0.0
    %2127 = vmatpush1.xpose.msra.mxu0 0.0
    %2128 = vmatprep.subr.mxu0 0.0
    %2129 = vmatpush1.xpose.msra.mxu0 0.0
    %2130 = vmatprep.subr.mxu0 0.0
    %2131 = vmatpush1.xpose.msra.mxu0 0.0
    %2132 = vmatprep.subr.mxu0 0.0
    %2133 = vmatpush1.xpose.msra.mxu0 0.0
    %2134 = vmatprep.subr.mxu0 0.0
    %2135 = vmatpush1.xpose.msra.mxu0 0.0
    %2136 = vmatprep.subr.mxu0 0.0
    %2137 = vmatpush1.xpose.msra.mxu0 0.0
    %2138 = vmatprep.subr.mxu0 0.0
    %2139 = vmatpush1.xpose.msra.mxu0 0.0
    %2140 = vmatprep.subr.mxu0 0.0
    %2141 = vmatpush1.xpose.msra.mxu0 0.0
    %2142 = vmatprep.mubr.f32.mxu0 0.0
    %2143 = vmatmul.mubr.f32.gmra.mrb[0].mxu0 %v2073
    %v2144 = vpop.f32.mrb[0].mxu0
    %v2145 = vadd.f32 %v2071, %v2144
    %v2146 = vpop.f32.mrb[0].mxu0
    %2147 = vdwg.mxu0
    %v2156 = vlaneseq
    %v2157 = vshrl.u32 %v2156, 7
    %v2158 = vsub.s32 %v2025, %v2157
    %v2159 = vrot.slane %v1850, %v2158
    %v2160 = vlaneseq
    %v2161 = vshrl.u32 %v2160, 7
    %v2162 = vsub.s32 %v2025, %v2161
    %v2163 = vrot.slane %v1853, %v2162
    %v2164 = vlaneseq
    %v2165 = vshrl.u32 %v2164, 7
    %v2166 = vsub.s32 %v2025, %v2165
    %v2167 = vrot.slane %v1856, %v2166
    %v2168 = vlaneseq
    %v2169 = vshrl.u32 %v2168, 7
    %v2170 = vsub.s32 %v2025, %v2169
    %v2171 = vrot.slane %v1859, %v2170
    %v2172 = vlaneseq
    %v2173 = vshrl.u32 %v2172, 7
    %v2174 = vsub.s32 %v2025, %v2173
    %v2175 = vrot.slane %v1862, %v2174
    %v2176 = vlaneseq
    %v2177 = vshrl.u32 %v2176, 7
    %v2178 = vsub.s32 %v2025, %v2177
    %v2179 = vrot.slane %v1865, %v2178
    %v2180 = vlaneseq
    %v2181 = vshrl.u32 %v2180, 7
    %v2182 = vsub.s32 %v2025, %v2181
    %v2183 = vrot.slane %v1868, %v2182
    %v2184 = vlaneseq
    %v2185 = vshrl.u32 %v2184, 7
    %v2186 = vsub.s32 %v2025, %v2185
    %v2187 = vrot.slane %v1871, %v2186
    %v2188 = vsel %vm2058, %v2163, %v2159
    %v2189 = vsel %vm2060, %v2167, %v2188
    %v2190 = vsel %vm2062, %v2171, %v2189
    %v2191 = vsel %vm2064, %v2175, %v2190
    %v2192 = vsel %vm2066, %v2179, %v2191
    %v2193 = vsel %vm2068, %v2183, %v2192
    %v2194 = vsel %vm2070, %v2187, %v2193
    %v2196 = vsel %vm1823, %v211, 0
    %v2199 = vsel %vm1823, %v511, 0
    %2201 = vmatprep.subr.mxu0 0.0
    %2202 = vmatpush1.xpose.msra.mxu0 %v2199
    %2203 = vmatprep.subr.mxu0 0.0
    %2204 = vmatpush1.xpose.msra.mxu0 0.0
    %2205 = vmatprep.subr.mxu0 0.0
    %2206 = vmatpush1.xpose.msra.mxu0 0.0
    %2207 = vmatprep.subr.mxu0 0.0
    %2208 = vmatpush1.xpose.msra.mxu0 0.0
    %2209 = vmatprep.subr.mxu0 0.0
    %2210 = vmatpush1.xpose.msra.mxu0 0.0
    %2211 = vmatprep.subr.mxu0 0.0
    %2212 = vmatpush1.xpose.msra.mxu0 0.0
    %2213 = vmatprep.subr.mxu0 0.0
    %2214 = vmatpush1.xpose.msra.mxu0 0.0
    %2215 = vmatprep.subr.mxu0 0.0
    %2216 = vmatpush1.xpose.msra.mxu0 0.0
    %2217 = vmatprep.subr.mxu0 0.0
    %2218 = vmatpush1.xpose.msra.mxu0 0.0
    %2219 = vmatprep.subr.mxu0 0.0
    %2220 = vmatpush1.xpose.msra.mxu0 0.0
    %2221 = vmatprep.subr.mxu0 0.0
    %2222 = vmatpush1.xpose.msra.mxu0 0.0
    %2223 = vmatprep.subr.mxu0 0.0
    %2224 = vmatpush1.xpose.msra.mxu0 0.0
    %2225 = vmatprep.subr.mxu0 0.0
    %2226 = vmatpush1.xpose.msra.mxu0 0.0
    %2227 = vmatprep.subr.mxu0 0.0
    %2228 = vmatpush1.xpose.msra.mxu0 0.0
    %2229 = vmatprep.subr.mxu0 0.0
    %2230 = vmatpush1.xpose.msra.mxu0 0.0
    %2231 = vmatprep.subr.mxu0 0.0
    %2232 = vmatpush1.xpose.msra.mxu0 0.0
    %2233 = vmatprep.subr.mxu0 0.0
    %2234 = vmatpush1.xpose.msra.mxu0 0.0
    %2235 = vmatprep.subr.mxu0 0.0
    %2236 = vmatpush1.xpose.msra.mxu0 0.0
    %2237 = vmatprep.subr.mxu0 0.0
    %2238 = vmatpush1.xpose.msra.mxu0 0.0
    %2239 = vmatprep.subr.mxu0 0.0
    %2240 = vmatpush1.xpose.msra.mxu0 0.0
    %2241 = vmatprep.subr.mxu0 0.0
    %2242 = vmatpush1.xpose.msra.mxu0 0.0
    %2243 = vmatprep.subr.mxu0 0.0
    %2244 = vmatpush1.xpose.msra.mxu0 0.0
    %2245 = vmatprep.subr.mxu0 0.0
    %2246 = vmatpush1.xpose.msra.mxu0 0.0
    %2247 = vmatprep.subr.mxu0 0.0
    %2248 = vmatpush1.xpose.msra.mxu0 0.0
    %2249 = vmatprep.subr.mxu0 0.0
    %2250 = vmatpush1.xpose.msra.mxu0 0.0
    %2251 = vmatprep.subr.mxu0 0.0
    %2252 = vmatpush1.xpose.msra.mxu0 0.0
    %2253 = vmatprep.subr.mxu0 0.0
    %2254 = vmatpush1.xpose.msra.mxu0 0.0
    %2255 = vmatprep.subr.mxu0 0.0
    %2256 = vmatpush1.xpose.msra.mxu0 0.0
    %2257 = vmatprep.subr.mxu0 0.0
    %2258 = vmatpush1.xpose.msra.mxu0 0.0
    %2259 = vmatprep.subr.mxu0 0.0
    %2260 = vmatpush1.xpose.msra.mxu0 0.0
    %2261 = vmatprep.subr.mxu0 0.0
    %2262 = vmatpush1.xpose.msra.mxu0 0.0
    %2263 = vmatprep.subr.mxu0 0.0
    %2264 = vmatpush1.xpose.msra.mxu0 0.0
    %2265 = vmatprep.mubr.f32.mxu0 0.0
    %2266 = vmatmul.mubr.f32.gmra.mrb[0].mxu0 %v2196
    %v2267 = vpop.f32.mrb[0].mxu0
    %v2268 = vadd.f32 %v2194, %v2267
    %v2269 = vpop.f32.mrb[0].mxu0
    %2270 = vdwg.mxu0
    %v2279 = vlaneseq
    %v2280 = vshrl.u32 %v2279, 7
    %v2281 = vsub.s32 %v2025, %v2280
    %v2282 = vrot.slane %v1874, %v2281
    %v2283 = vlaneseq
    %v2284 = vshrl.u32 %v2283, 7
    %v2285 = vsub.s32 %v2025, %v2284
    %v2286 = vrot.slane %v1877, %v2285
    %v2287 = vlaneseq
    %v2288 = vshrl.u32 %v2287, 7
    %v2289 = vsub.s32 %v2025, %v2288
    %v2290 = vrot.slane %v1880, %v2289
    %v2291 = vlaneseq
    %v2292 = vshrl.u32 %v2291, 7
    %v2293 = vsub.s32 %v2025, %v2292
    %v2294 = vrot.slane %v1883, %v2293
    %v2295 = vlaneseq
    %v2296 = vshrl.u32 %v2295, 7
    %v2297 = vsub.s32 %v2025, %v2296
    %v2298 = vrot.slane %v1886, %v2297
    %v2299 = vlaneseq
    %v2300 = vshrl.u32 %v2299, 7
    %v2301 = vsub.s32 %v2025, %v2300
    %v2302 = vrot.slane %v1889, %v2301
    %v2303 = vlaneseq
    %v2304 = vshrl.u32 %v2303, 7
    %v2305 = vsub.s32 %v2025, %v2304
    %v2306 = vrot.slane %v1892, %v2305
    %v2307 = vlaneseq
    %v2308 = vshrl.u32 %v2307, 7
    %v2309 = vsub.s32 %v2025, %v2308
    %v2310 = vrot.slane %v1895, %v2309
    %v2311 = vsel %vm2058, %v2286, %v2282
    %v2312 = vsel %vm2060, %v2290, %v2311
    %v2313 = vsel %vm2062, %v2294, %v2312
    %v2314 = vsel %vm2064, %v2298, %v2313
    %v2315 = vsel %vm2066, %v2302, %v2314
    %v2316 = vsel %vm2068, %v2306, %v2315
    %v2317 = vsel %vm2070, %v2310, %v2316
    %v2319 = vsel %vm1823, %v281, 0
    %v2322 = vsel %vm1823, %v581, 0
    %2324 = vmatprep.subr.mxu0 0.0
    %2325 = vmatpush1.xpose.msra.mxu0 %v2322
    %2326 = vmatprep.subr.mxu0 0.0
    %2327 = vmatpush1.xpose.msra.mxu0 0.0
    %2328 = vmatprep.subr.mxu0 0.0
    %2329 = vmatpush1.xpose.msra.mxu0 0.0
    %2330 = vmatprep.subr.mxu0 0.0
    %2331 = vmatpush1.xpose.msra.mxu0 0.0
    %2332 = vmatprep.subr.mxu0 0.0
    %2333 = vmatpush1.xpose.msra.mxu0 0.0
    %2334 = vmatprep.subr.mxu0 0.0
    %2335 = vmatpush1.xpose.msra.mxu0 0.0
    %2336 = vmatprep.subr.mxu0 0.0
    %2337 = vmatpush1.xpose.msra.mxu0 0.0
    %2338 = vmatprep.subr.mxu0 0.0
    %2339 = vmatpush1.xpose.msra.mxu0 0.0
    %2340 = vmatprep.subr.mxu0 0.0
    %2341 = vmatpush1.xpose.msra.mxu0 0.0
    %2342 = vmatprep.subr.mxu0 0.0
    %2343 = vmatpush1.xpose.msra.mxu0 0.0
    %2344 = vmatprep.subr.mxu0 0.0
    %2345 = vmatpush1.xpose.msra.mxu0 0.0
    %2346 = vmatprep.subr.mxu0 0.0
    %2347 = vmatpush1.xpose.msra.mxu0 0.0
    %2348 = vmatprep.subr.mxu0 0.0
    %2349 = vmatpush1.xpose.msra.mxu0 0.0
    %2350 = vmatprep.subr.mxu0 0.0
    %2351 = vmatpush1.xpose.msra.mxu0 0.0
    %2352 = vmatprep.subr.mxu0 0.0
    %2353 = vmatpush1.xpose.msra.mxu0 0.0
    %2354 = vmatprep.subr.mxu0 0.0
    %2355 = vmatpush1.xpose.msra.mxu0 0.0
    %2356 = vmatprep.subr.mxu0 0.0
    %2357 = vmatpush1.xpose.msra.mxu0 0.0
    %2358 = vmatprep.subr.mxu0 0.0
    %2359 = vmatpush1.xpose.msra.mxu0 0.0
    %2360 = vmatprep.subr.mxu0 0.0
    %2361 = vmatpush1.xpose.msra.mxu0 0.0
    %2362 = vmatprep.subr.mxu0 0.0
    %2363 = vmatpush1.xpose.msra.mxu0 0.0
    %2364 = vmatprep.subr.mxu0 0.0
    %2365 = vmatpush1.xpose.msra.mxu0 0.0
    %2366 = vmatprep.subr.mxu0 0.0
    %2367 = vmatpush1.xpose.msra.mxu0 0.0
    %2368 = vmatprep.subr.mxu0 0.0
    %2369 = vmatpush1.xpose.msra.mxu0 0.0
    %2370 = vmatprep.subr.mxu0 0.0
    %2371 = vmatpush1.xpose.msra.mxu0 0.0
    %2372 = vmatprep.subr.mxu0 0.0
    %2373 = vmatpush1.xpose.msra.mxu0 0.0
    %2374 = vmatprep.subr.mxu0 0.0
    %2375 = vmatpush1.xpose.msra.mxu0 0.0
    %2376 = vmatprep.subr.mxu0 0.0
    %2377 = vmatpush1.xpose.msra.mxu0 0.0
    %2378 = vmatprep.subr.mxu0 0.0
    %2379 = vmatpush1.xpose.msra.mxu0 0.0
    %2380 = vmatprep.subr.mxu0 0.0
    %2381 = vmatpush1.xpose.msra.mxu0 0.0
    %2382 = vmatprep.subr.mxu0 0.0
    %2383 = vmatpush1.xpose.msra.mxu0 0.0
    %2384 = vmatprep.subr.mxu0 0.0
    %2385 = vmatpush1.xpose.msra.mxu0 0.0
    %2386 = vmatprep.subr.mxu0 0.0
    %2387 = vmatpush1.xpose.msra.mxu0 0.0
    %2388 = vmatprep.mubr.f32.mxu0 0.0
    %2389 = vmatmul.mubr.f32.gmra.mrb[0].mxu0 %v2319
    %v2390 = vpop.f32.mrb[0].mxu0
    %v2391 = vadd.f32 %v2317, %v2390
    %v2392 = vpop.f32.mrb[0].mxu0
    %2393 = vdwg.mxu0
    %v2402 = vlaneseq
    %v2403 = vshrl.u32 %v2402, 7
    %v2404 = vsub.s32 %v2025, %v2403
    %v2405 = vrot.slane %v1898, %v2404
    %v2406 = vlaneseq
    %v2407 = vshrl.u32 %v2406, 7
    %v2408 = vsub.s32 %v2025, %v2407
    %v2409 = vrot.slane %v1901, %v2408
    %v2410 = vlaneseq
    %v2411 = vshrl.u32 %v2410, 7
    %v2412 = vsub.s32 %v2025, %v2411
    %v2413 = vrot.slane %v1904, %v2412
    %v2414 = vlaneseq
    %v2415 = vshrl.u32 %v2414, 7
    %v2416 = vsub.s32 %v2025, %v2415
    %v2417 = vrot.slane %v1907, %v2416
    %v2418 = vlaneseq
    %v2419 = vshrl.u32 %v2418, 7
    %v2420 = vsub.s32 %v2025, %v2419
    %v2421 = vrot.slane %v1910, %v2420
    %v2422 = vlaneseq
    %v2423 = vshrl.u32 %v2422, 7
    %v2424 = vsub.s32 %v2025, %v2423
    %v2425 = vrot.slane %v1913, %v2424
    %v2426 = vlaneseq
    %v2427 = vshrl.u32 %v2426, 7
    %v2428 = vsub.s32 %v2025, %v2427
    %v2429 = vrot.slane %v1916, %v2428
    %v2430 = vlaneseq
    %v2431 = vshrl.u32 %v2430, 7
    %v2432 = vsub.s32 %v2025, %v2431
    %v2433 = vrot.slane %v1919, %v2432
    %v2434 = vsel %vm2058, %v2409, %v2405
    %v2435 = vsel %vm2060, %v2413, %v2434
    %v2436 = vsel %vm2062, %v2417, %v2435
    %v2437 = vsel %vm2064, %v2421, %v2436
    %v2438 = vsel %vm2066, %v2425, %v2437
    %v2439 = vsel %vm2068, %v2429, %v2438
    %v2440 = vsel %vm2070, %v2433, %v2439
    %v2442 = vsel %vm1823, %v286, 0
    %v2445 = vsel %vm1823, %v586, 0
    %2447 = vmatprep.subr.mxu0 0.0
    %2448 = vmatpush1.xpose.msra.mxu0 %v2445
    %2449 = vmatprep.subr.mxu0 0.0
    %2450 = vmatpush1.xpose.msra.mxu0 0.0
    %2451 = vmatprep.subr.mxu0 0.0
    %2452 = vmatpush1.xpose.msra.mxu0 0.0
    %2453 = vmatprep.subr.mxu0 0.0
    %2454 = vmatpush1.xpose.msra.mxu0 0.0
    %2455 = vmatprep.subr.mxu0 0.0
    %2456 = vmatpush1.xpose.msra.mxu0 0.0
    %2457 = vmatprep.subr.mxu0 0.0
    %2458 = vmatpush1.xpose.msra.mxu0 0.0
    %2459 = vmatprep.subr.mxu0 0.0
    %2460 = vmatpush1.xpose.msra.mxu0 0.0
    %2461 = vmatprep.subr.mxu0 0.0
    %2462 = vmatpush1.xpose.msra.mxu0 0.0
    %2463 = vmatprep.subr.mxu0 0.0
    %2464 = vmatpush1.xpose.msra.mxu0 0.0
    %2465 = vmatprep.subr.mxu0 0.0
    %2466 = vmatpush1.xpose.msra.mxu0 0.0
    %2467 = vmatprep.subr.mxu0 0.0
    %2468 = vmatpush1.xpose.msra.mxu0 0.0
    %2469 = vmatprep.subr.mxu0 0.0
    %2470 = vmatpush1.xpose.msra.mxu0 0.0
    %2471 = vmatprep.subr.mxu0 0.0
    %2472 = vmatpush1.xpose.msra.mxu0 0.0
    %2473 = vmatprep.subr.mxu0 0.0
    %2474 = vmatpush1.xpose.msra.mxu0 0.0
    %2475 = vmatprep.subr.mxu0 0.0
    %2476 = vmatpush1.xpose.msra.mxu0 0.0
    %2477 = vmatprep.subr.mxu0 0.0
    %2478 = vmatpush1.xpose.msra.mxu0 0.0
    %2479 = vmatprep.subr.mxu0 0.0
    %2480 = vmatpush1.xpose.msra.mxu0 0.0
    %2481 = vmatprep.subr.mxu0 0.0
    %2482 = vmatpush1.xpose.msra.mxu0 0.0
    %2483 = vmatprep.subr.mxu0 0.0
    %2484 = vmatpush1.xpose.msra.mxu0 0.0
    %2485 = vmatprep.subr.mxu0 0.0
    %2486 = vmatpush1.xpose.msra.mxu0 0.0
    %2487 = vmatprep.subr.mxu0 0.0
    %2488 = vmatpush1.xpose.msra.mxu0 0.0
    %2489 = vmatprep.subr.mxu0 0.0
    %2490 = vmatpush1.xpose.msra.mxu0 0.0
    %2491 = vmatprep.subr.mxu0 0.0
    %2492 = vmatpush1.xpose.msra.mxu0 0.0
    %2493 = vmatprep.subr.mxu0 0.0
    %2494 = vmatpush1.xpose.msra.mxu0 0.0
    %2495 = vmatprep.subr.mxu0 0.0
    %2496 = vmatpush1.xpose.msra.mxu0 0.0
    %2497 = vmatprep.subr.mxu0 0.0
    %2498 = vmatpush1.xpose.msra.mxu0 0.0
    %2499 = vmatprep.subr.mxu0 0.0
    %2500 = vmatpush1.xpose.msra.mxu0 0.0
    %2501 = vmatprep.subr.mxu0 0.0
    %2502 = vmatpush1.xpose.msra.mxu0 0.0
    %2503 = vmatprep.subr.mxu0 0.0
    %2504 = vmatpush1.xpose.msra.mxu0 0.0
    %2505 = vmatprep.subr.mxu0 0.0
    %2506 = vmatpush1.xpose.msra.mxu0 0.0
    %2507 = vmatprep.subr.mxu0 0.0
    %2508 = vmatpush1.xpose.msra.mxu0 0.0
    %2509 = vmatprep.subr.mxu0 0.0
    %2510 = vmatpush1.xpose.msra.mxu0 0.0
    %2511 = vmatprep.mubr.f32.mxu0 0.0
    %2512 = vmatmul.mubr.f32.gmra.mrb[0].mxu0 %v2442
    %v2513 = vpop.f32.mrb[0].mxu0
    %v2514 = vadd.f32 %v2440, %v2513
    %v2515 = vpop.f32.mrb[0].mxu0
    %2516 = vdwg.mxu0
    %v2525 = vlaneseq
    %v2526 = vshrl.u32 %v2525, 7
    %v2527 = vsub.s32 %v2025, %v2526
    %v2528 = vrot.slane %v1922, %v2527
    %v2529 = vlaneseq
    %v2530 = vshrl.u32 %v2529, 7
    %v2531 = vsub.s32 %v2025, %v2530
    %v2532 = vrot.slane %v1925, %v2531
    %v2533 = vlaneseq
    %v2534 = vshrl.u32 %v2533, 7
    %v2535 = vsub.s32 %v2025, %v2534
    %v2536 = vrot.slane %v1928, %v2535
    %v2537 = vlaneseq
    %v2538 = vshrl.u32 %v2537, 7
    %v2539 = vsub.s32 %v2025, %v2538
    %v2540 = vrot.slane %v1931, %v2539
    %v2541 = vlaneseq
    %v2542 = vshrl.u32 %v2541, 7
    %v2543 = vsub.s32 %v2025, %v2542
    %v2544 = vrot.slane %v1934, %v2543
    %v2545 = vlaneseq
    %v2546 = vshrl.u32 %v2545, 7
    %v2547 = vsub.s32 %v2025, %v2546
    %v2548 = vrot.slane %v1937, %v2547
    %v2549 = vlaneseq
    %v2550 = vshrl.u32 %v2549, 7
    %v2551 = vsub.s32 %v2025, %v2550
    %v2552 = vrot.slane %v1940, %v2551
    %v2553 = vlaneseq
    %v2554 = vshrl.u32 %v2553, 7
    %v2555 = vsub.s32 %v2025, %v2554
    %v2556 = vrot.slane %v1943, %v2555
    %v2557 = vsel %vm2058, %v2532, %v2528
    %v2558 = vsel %vm2060, %v2536, %v2557
    %v2559 = vsel %vm2062, %v2540, %v2558
    %v2560 = vsel %vm2064, %v2544, %v2559
    %v2561 = vsel %vm2066, %v2548, %v2560
    %v2562 = vsel %vm2068, %v2552, %v2561
    %v2563 = vsel %vm2070, %v2556, %v2562
    %v2565 = vsel %vm1823, %v356, 0
    %v2568 = vsel %vm1823, %v656, 0
    %2570 = vmatprep.subr.mxu0 0.0
    %2571 = vmatpush1.xpose.msra.mxu0 %v2568
    %2572 = vmatprep.subr.mxu0 0.0
    %2573 = vmatpush1.xpose.msra.mxu0 0.0
    %2574 = vmatprep.subr.mxu0 0.0
    %2575 = vmatpush1.xpose.msra.mxu0 0.0
    %2576 = vmatprep.subr.mxu0 0.0
    %2577 = vmatpush1.xpose.msra.mxu0 0.0
    %2578 = vmatprep.subr.mxu0 0.0
    %2579 = vmatpush1.xpose.msra.mxu0 0.0
    %2580 = vmatprep.subr.mxu0 0.0
    %2581 = vmatpush1.xpose.msra.mxu0 0.0
    %2582 = vmatprep.subr.mxu0 0.0
    %2583 = vmatpush1.xpose.msra.mxu0 0.0
    %2584 = vmatprep.subr.mxu0 0.0
    %2585 = vmatpush1.xpose.msra.mxu0 0.0
    %2586 = vmatprep.subr.mxu0 0.0
    %2587 = vmatpush1.xpose.msra.mxu0 0.0
    %2588 = vmatprep.subr.mxu0 0.0
    %2589 = vmatpush1.xpose.msra.mxu0 0.0
    %2590 = vmatprep.subr.mxu0 0.0
    %2591 = vmatpush1.xpose.msra.mxu0 0.0
    %2592 = vmatprep.subr.mxu0 0.0
    %2593 = vmatpush1.xpose.msra.mxu0 0.0
    %2594 = vmatprep.subr.mxu0 0.0
    %2595 = vmatpush1.xpose.msra.mxu0 0.0
    %2596 = vmatprep.subr.mxu0 0.0
    %2597 = vmatpush1.xpose.msra.mxu0 0.0
    %2598 = vmatprep.subr.mxu0 0.0
    %2599 = vmatpush1.xpose.msra.mxu0 0.0
    %2600 = vmatprep.subr.mxu0 0.0
    %2601 = vmatpush1.xpose.msra.mxu0 0.0
    %2602 = vmatprep.subr.mxu0 0.0
    %2603 = vmatpush1.xpose.msra.mxu0 0.0
    %2604 = vmatprep.subr.mxu0 0.0
    %2605 = vmatpush1.xpose.msra.mxu0 0.0
    %2606 = vmatprep.subr.mxu0 0.0
    %2607 = vmatpush1.xpose.msra.mxu0 0.0
    %2608 = vmatprep.subr.mxu0 0.0
    %2609 = vmatpush1.xpose.msra.mxu0 0.0
    %2610 = vmatprep.subr.mxu0 0.0
    %2611 = vmatpush1.xpose.msra.mxu0 0.0
    %2612 = vmatprep.subr.mxu0 0.0
    %2613 = vmatpush1.xpose.msra.mxu0 0.0
    %2614 = vmatprep.subr.mxu0 0.0
    %2615 = vmatpush1.xpose.msra.mxu0 0.0
    %2616 = vmatprep.subr.mxu0 0.0
    %2617 = vmatpush1.xpose.msra.mxu0 0.0
    %2618 = vmatprep.subr.mxu0 0.0
    %2619 = vmatpush1.xpose.msra.mxu0 0.0
    %2620 = vmatprep.subr.mxu0 0.0
    %2621 = vmatpush1.xpose.msra.mxu0 0.0
    %2622 = vmatprep.subr.mxu0 0.0
    %2623 = vmatpush1.xpose.msra.mxu0 0.0
    %2624 = vmatprep.subr.mxu0 0.0
    %2625 = vmatpush1.xpose.msra.mxu0 0.0
    %2626 = vmatprep.subr.mxu0 0.0
    %2627 = vmatpush1.xpose.msra.mxu0 0.0
    %2628 = vmatprep.subr.mxu0 0.0
    %2629 = vmatpush1.xpose.msra.mxu0 0.0
    %2630 = vmatprep.subr.mxu0 0.0
    %2631 = vmatpush1.xpose.msra.mxu0 0.0
    %2632 = vmatprep.subr.mxu0 0.0
    %2633 = vmatpush1.xpose.msra.mxu0 0.0
    %2634 = vmatprep.mubr.f32.mxu0 0.0
    %2635 = vmatmul.mubr.f32.gmra.mrb[0].mxu0 %v2565
    %v2636 = vpop.f32.mrb[0].mxu0
    %v2637 = vadd.f32 %v2563, %v2636
    %v2638 = vpop.f32.mrb[0].mxu0
    %2639 = vdwg.mxu0
    %v2648 = vlaneseq
    %v2649 = vshrl.u32 %v2648, 7
    %v2650 = vsub.s32 %v2025, %v2649
    %v2651 = vrot.slane %v1946, %v2650
    %v2652 = vlaneseq
    %v2653 = vshrl.u32 %v2652, 7
    %v2654 = vsub.s32 %v2025, %v2653
    %v2655 = vrot.slane %v1949, %v2654
    %v2656 = vlaneseq
    %v2657 = vshrl.u32 %v2656, 7
    %v2658 = vsub.s32 %v2025, %v2657
    %v2659 = vrot.slane %v1952, %v2658
    %v2660 = vlaneseq
    %v2661 = vshrl.u32 %v2660, 7
    %v2662 = vsub.s32 %v2025, %v2661
    %v2663 = vrot.slane %v1955, %v2662
    %v2664 = vlaneseq
    %v2665 = vshrl.u32 %v2664, 7
    %v2666 = vsub.s32 %v2025, %v2665
    %v2667 = vrot.slane %v1958, %v2666
    %v2668 = vlaneseq
    %v2669 = vshrl.u32 %v2668, 7
    %v2670 = vsub.s32 %v2025, %v2669
    %v2671 = vrot.slane %v1961, %v2670
    %v2672 = vlaneseq
    %v2673 = vshrl.u32 %v2672, 7
    %v2674 = vsub.s32 %v2025, %v2673
    %v2675 = vrot.slane %v1964, %v2674
    %v2676 = vlaneseq
    %v2677 = vshrl.u32 %v2676, 7
    %v2678 = vsub.s32 %v2025, %v2677
    %v2679 = vrot.slane %v1967, %v2678
    %v2680 = vsel %vm2058, %v2655, %v2651
    %v2681 = vsel %vm2060, %v2659, %v2680
    %v2682 = vsel %vm2062, %v2663, %v2681
    %v2683 = vsel %vm2064, %v2667, %v2682
    %v2684 = vsel %vm2066, %v2671, %v2683
    %v2685 = vsel %vm2068, %v2675, %v2684
    %v2686 = vsel %vm2070, %v2679, %v2685
    %v2688 = vsel %vm1823, %v361, 0
    %v2691 = vsel %vm1823, %v661, 0
    %2693 = vmatprep.subr.mxu0 0.0
    %2694 = vmatpush1.xpose.msra.mxu0 %v2691
    %2695 = vmatprep.subr.mxu0 0.0
    %2696 = vmatpush1.xpose.msra.mxu0 0.0
    %2697 = vmatprep.subr.mxu0 0.0
    %2698 = vmatpush1.xpose.msra.mxu0 0.0
    %2699 = vmatprep.subr.mxu0 0.0
    %2700 = vmatpush1.xpose.msra.mxu0 0.0
    %2701 = vmatprep.subr.mxu0 0.0
    %2702 = vmatpush1.xpose.msra.mxu0 0.0
    %2703 = vmatprep.subr.mxu0 0.0
    %2704 = vmatpush1.xpose.msra.mxu0 0.0
    %2705 = vmatprep.subr.mxu0 0.0
    %2706 = vmatpush1.xpose.msra.mxu0 0.0
    %2707 = vmatprep.subr.mxu0 0.0
    %2708 = vmatpush1.xpose.msra.mxu0 0.0
    %2709 = vmatprep.subr.mxu0 0.0
    %2710 = vmatpush1.xpose.msra.mxu0 0.0
    %2711 = vmatprep.subr.mxu0 0.0
    %2712 = vmatpush1.xpose.msra.mxu0 0.0
    %2713 = vmatprep.subr.mxu0 0.0
    %2714 = vmatpush1.xpose.msra.mxu0 0.0
    %2715 = vmatprep.subr.mxu0 0.0
    %2716 = vmatpush1.xpose.msra.mxu0 0.0
    %2717 = vmatprep.subr.mxu0 0.0
    %2718 = vmatpush1.xpose.msra.mxu0 0.0
    %2719 = vmatprep.subr.mxu0 0.0
    %2720 = vmatpush1.xpose.msra.mxu0 0.0
    %2721 = vmatprep.subr.mxu0 0.0
    %2722 = vmatpush1.xpose.msra.mxu0 0.0
    %2723 = vmatprep.subr.mxu0 0.0
    %2724 = vmatpush1.xpose.msra.mxu0 0.0
    %2725 = vmatprep.subr.mxu0 0.0
    %2726 = vmatpush1.xpose.msra.mxu0 0.0
    %2727 = vmatprep.subr.mxu0 0.0
    %2728 = vmatpush1.xpose.msra.mxu0 0.0
    %2729 = vmatprep.subr.mxu0 0.0
    %2730 = vmatpush1.xpose.msra.mxu0 0.0
    %2731 = vmatprep.subr.mxu0 0.0
    %2732 = vmatpush1.xpose.msra.mxu0 0.0
    %2733 = vmatprep.subr.mxu0 0.0
    %2734 = vmatpush1.xpose.msra.mxu0 0.0
    %2735 = vmatprep.subr.mxu0 0.0
    %2736 = vmatpush1.xpose.msra.mxu0 0.0
    %2737 = vmatprep.subr.mxu0 0.0
    %2738 = vmatpush1.xpose.msra.mxu0 0.0
    %2739 = vmatprep.subr.mxu0 0.0
    %2740 = vmatpush1.xpose.msra.mxu0 0.0
    %2741 = vmatprep.subr.mxu0 0.0
    %2742 = vmatpush1.xpose.msra.mxu0 0.0
    %2743 = vmatprep.subr.mxu0 0.0
    %2744 = vmatpush1.xpose.msra.mxu0 0.0
    %2745 = vmatprep.subr.mxu0 0.0
    %2746 = vmatpush1.xpose.msra.mxu0 0.0
    %2747 = vmatprep.subr.mxu0 0.0
    %2748 = vmatpush1.xpose.msra.mxu0 0.0
    %2749 = vmatprep.subr.mxu0 0.0
    %2750 = vmatpush1.xpose.msra.mxu0 0.0
    %2751 = vmatprep.subr.mxu0 0.0
    %2752 = vmatpush1.xpose.msra.mxu0 0.0
    %2753 = vmatprep.subr.mxu0 0.0
    %2754 = vmatpush1.xpose.msra.mxu0 0.0
    %2755 = vmatprep.subr.mxu0 0.0
    %2756 = vmatpush1.xpose.msra.mxu0 0.0
    %2757 = vmatprep.mubr.f32.mxu0 0.0
    %2758 = vmatmul.mubr.f32.gmra.mrb[0].mxu0 %v2688
    %v2759 = vpop.f32.mrb[0].mxu0
    %v2760 = vadd.f32 %v2686, %v2759
    %v2761 = vpop.f32.mrb[0].mxu0
    %2762 = vdwg.mxu0
    %v2771 = vlaneseq
    %v2772 = vshrl.u32 %v2771, 7
    %v2773 = vsub.s32 %v2025, %v2772
    %v2774 = vrot.slane %v1970, %v2773
    %v2775 = vlaneseq
    %v2776 = vshrl.u32 %v2775, 7
    %v2777 = vsub.s32 %v2025, %v2776
    %v2778 = vrot.slane %v1973, %v2777
    %v2779 = vlaneseq
    %v2780 = vshrl.u32 %v2779, 7
    %v2781 = vsub.s32 %v2025, %v2780
    %v2782 = vrot.slane %v1976, %v2781
    %v2783 = vlaneseq
    %v2784 = vshrl.u32 %v2783, 7
    %v2785 = vsub.s32 %v2025, %v2784
    %v2786 = vrot.slane %v1979, %v2785
    %v2787 = vlaneseq
    %v2788 = vshrl.u32 %v2787, 7
    %v2789 = vsub.s32 %v2025, %v2788
    %v2790 = vrot.slane %v1982, %v2789
    %v2791 = vlaneseq
    %v2792 = vshrl.u32 %v2791, 7
    %v2793 = vsub.s32 %v2025, %v2792
    %v2794 = vrot.slane %v1985, %v2793
    %v2795 = vlaneseq
    %v2796 = vshrl.u32 %v2795, 7
    %v2797 = vsub.s32 %v2025, %v2796
    %v2798 = vrot.slane %v1988, %v2797
    %v2799 = vlaneseq
    %v2800 = vshrl.u32 %v2799, 7
    %v2801 = vsub.s32 %v2025, %v2800
    %v2802 = vrot.slane %v1991, %v2801
    %v2803 = vsel %vm2058, %v2778, %v2774
    %v2804 = vsel %vm2060, %v2782, %v2803
    %v2805 = vsel %vm2062, %v2786, %v2804
    %v2806 = vsel %vm2064, %v2790, %v2805
    %v2807 = vsel %vm2066, %v2794, %v2806
    %v2808 = vsel %vm2068, %v2798, %v2807
    %v2809 = vsel %vm2070, %v2802, %v2808
    %v2811 = vsel %vm1823, %v431, 0
    %v2814 = vsel %vm1823, %v731, 0
    %2816 = vmatprep.subr.mxu0 0.0
    %2817 = vmatpush1.xpose.msra.mxu0 %v2814
    %2818 = vmatprep.subr.mxu0 0.0
    %2819 = vmatpush1.xpose.msra.mxu0 0.0
    %2820 = vmatprep.subr.mxu0 0.0
    %2821 = vmatpush1.xpose.msra.mxu0 0.0
    %2822 = vmatprep.subr.mxu0 0.0
    %2823 = vmatpush1.xpose.msra.mxu0 0.0
    %2824 = vmatprep.subr.mxu0 0.0
    %2825 = vmatpush1.xpose.msra.mxu0 0.0
    %2826 = vmatprep.subr.mxu0 0.0
    %2827 = vmatpush1.xpose.msra.mxu0 0.0
    %2828 = vmatprep.subr.mxu0 0.0
    %2829 = vmatpush1.xpose.msra.mxu0 0.0
    %2830 = vmatprep.subr.mxu0 0.0
    %2831 = vmatpush1.xpose.msra.mxu0 0.0
    %2832 = vmatprep.subr.mxu0 0.0
    %2833 = vmatpush1.xpose.msra.mxu0 0.0
    %2834 = vmatprep.subr.mxu0 0.0
    %2835 = vmatpush1.xpose.msra.mxu0 0.0
    %2836 = vmatprep.subr.mxu0 0.0
    %2837 = vmatpush1.xpose.msra.mxu0 0.0
    %2838 = vmatprep.subr.mxu0 0.0
    %2839 = vmatpush1.xpose.msra.mxu0 0.0
    %2840 = vmatprep.subr.mxu0 0.0
    %2841 = vmatpush1.xpose.msra.mxu0 0.0
    %2842 = vmatprep.subr.mxu0 0.0
    %2843 = vmatpush1.xpose.msra.mxu0 0.0
    %2844 = vmatprep.subr.mxu0 0.0
    %2845 = vmatpush1.xpose.msra.mxu0 0.0
    %2846 = vmatprep.subr.mxu0 0.0
    %2847 = vmatpush1.xpose.msra.mxu0 0.0
    %2848 = vmatprep.subr.mxu0 0.0
    %2849 = vmatpush1.xpose.msra.mxu0 0.0
    %2850 = vmatprep.subr.mxu0 0.0
    %2851 = vmatpush1.xpose.msra.mxu0 0.0
    %2852 = vmatprep.subr.mxu0 0.0
    %2853 = vmatpush1.xpose.msra.mxu0 0.0
    %2854 = vmatprep.subr.mxu0 0.0
    %2855 = vmatpush1.xpose.msra.mxu0 0.0
    %2856 = vmatprep.subr.mxu0 0.0
    %2857 = vmatpush1.xpose.msra.mxu0 0.0
    %2858 = vmatprep.subr.mxu0 0.0
    %2859 = vmatpush1.xpose.msra.mxu0 0.0
    %2860 = vmatprep.subr.mxu0 0.0
    %2861 = vmatpush1.xpose.msra.mxu0 0.0
    %2862 = vmatprep.subr.mxu0 0.0
    %2863 = vmatpush1.xpose.msra.mxu0 0.0
    %2864 = vmatprep.subr.mxu0 0.0
    %2865 = vmatpush1.xpose.msra.mxu0 0.0
    %2866 = vmatprep.subr.mxu0 0.0
    %2867 = vmatpush1.xpose.msra.mxu0 0.0
    %2868 = vmatprep.subr.mxu0 0.0
    %2869 = vmatpush1.xpose.msra.mxu0 0.0
    %2870 = vmatprep.subr.mxu0 0.0
    %2871 = vmatpush1.xpose.msra.mxu0 0.0
    %2872 = vmatprep.subr.mxu0 0.0
    %2873 = vmatpush1.xpose.msra.mxu0 0.0
    %2874 = vmatprep.subr.mxu0 0.0
    %2875 = vmatpush1.xpose.msra.mxu0 0.0
    %2876 = vmatprep.subr.mxu0 0.0
    %2877 = vmatpush1.xpose.msra.mxu0 0.0
    %2878 = vmatprep.subr.mxu0 0.0
    %2879 = vmatpush1.xpose.msra.mxu0 0.0
    %2880 = vmatprep.mubr.f32.mxu0 0.0
    %2881 = vmatmul.mubr.f32.gmra.mrb[0].mxu0 %v2811
    %v2882 = vpop.f32.mrb[0].mxu0
    %v2883 = vadd.f32 %v2809, %v2882
    %v2884 = vpop.f32.mrb[0].mxu0
    %2885 = vdwg.mxu0
    %v2894 = vlaneseq
    %v2895 = vshrl.u32 %v2894, 7
    %v2896 = vsub.s32 %v2025, %v2895
    %v2897 = vrot.slane %v1994, %v2896
    %v2898 = vlaneseq
    %v2899 = vshrl.u32 %v2898, 7
    %v2900 = vsub.s32 %v2025, %v2899
    %v2901 = vrot.slane %v1997, %v2900
    %v2902 = vlaneseq
    %v2903 = vshrl.u32 %v2902, 7
    %v2904 = vsub.s32 %v2025, %v2903
    %v2905 = vrot.slane %v2000, %v2904
    %v2906 = vlaneseq
    %v2907 = vshrl.u32 %v2906, 7
    %v2908 = vsub.s32 %v2025, %v2907
    %v2909 = vrot.slane %v2003, %v2908
    %v2910 = vlaneseq
    %v2911 = vshrl.u32 %v2910, 7
    %v2912 = vsub.s32 %v2025, %v2911
    %v2913 = vrot.slane %v2006, %v2912
    %v2914 = vlaneseq
    %v2915 = vshrl.u32 %v2914, 7
    %v2916 = vsub.s32 %v2025, %v2915
    %v2917 = vrot.slane %v2009, %v2916
    %v2918 = vlaneseq
    %v2919 = vshrl.u32 %v2918, 7
    %v2920 = vsub.s32 %v2025, %v2919
    %v2921 = vrot.slane %v2012, %v2920
    %v2922 = vlaneseq
    %v2923 = vshrl.u32 %v2922, 7
    %v2924 = vsub.s32 %v2025, %v2923
    %v2925 = vrot.slane %v2015, %v2924
    %v2926 = vsel %vm2058, %v2901, %v2897
    %v2927 = vsel %vm2060, %v2905, %v2926
    %v2928 = vsel %vm2062, %v2909, %v2927
    %v2929 = vsel %vm2064, %v2913, %v2928
    %v2930 = vsel %vm2066, %v2917, %v2929
    %v2931 = vsel %vm2068, %v2921, %v2930
    %v2932 = vsel %vm2070, %v2925, %v2931
    %v2934 = vsel %vm1823, %v436, 0
    %v2937 = vsel %vm1823, %v736, 0
    %2939 = vmatprep.subr.mxu0 0.0
    %2940 = vmatpush1.xpose.msra.mxu0 %v2937
    %2941 = vmatprep.subr.mxu0 0.0
    %2942 = vmatpush1.xpose.msra.mxu0 0.0
    %2943 = vmatprep.subr.mxu0 0.0
    %2944 = vmatpush1.xpose.msra.mxu0 0.0
    %2945 = vmatprep.subr.mxu0 0.0
    %2946 = vmatpush1.xpose.msra.mxu0 0.0
    %2947 = vmatprep.subr.mxu0 0.0
    %2948 = vmatpush1.xpose.msra.mxu0 0.0
    %2949 = vmatprep.subr.mxu0 0.0
    %2950 = vmatpush1.xpose.msra.mxu0 0.0
    %2951 = vmatprep.subr.mxu0 0.0
    %2952 = vmatpush1.xpose.msra.mxu0 0.0
    %2953 = vmatprep.subr.mxu0 0.0
    %2954 = vmatpush1.xpose.msra.mxu0 0.0
    %2955 = vmatprep.subr.mxu0 0.0
    %2956 = vmatpush1.xpose.msra.mxu0 0.0
    %2957 = vmatprep.subr.mxu0 0.0
    %2958 = vmatpush1.xpose.msra.mxu0 0.0
    %2959 = vmatprep.subr.mxu0 0.0
    %2960 = vmatpush1.xpose.msra.mxu0 0.0
    %2961 = vmatprep.subr.mxu0 0.0
    %2962 = vmatpush1.xpose.msra.mxu0 0.0
    %2963 = vmatprep.subr.mxu0 0.0
    %2964 = vmatpush1.xpose.msra.mxu0 0.0
    %2965 = vmatprep.subr.mxu0 0.0
    %2966 = vmatpush1.xpose.msra.mxu0 0.0
    %2967 = vmatprep.subr.mxu0 0.0
    %2968 = vmatpush1.xpose.msra.mxu0 0.0
    %2969 = vmatprep.subr.mxu0 0.0
    %2970 = vmatpush1.xpose.msra.mxu0 0.0
    %2971 = vmatprep.subr.mxu0 0.0
    %2972 = vmatpush1.xpose.msra.mxu0 0.0
    %2973 = vmatprep.subr.mxu0 0.0
    %2974 = vmatpush1.xpose.msra.mxu0 0.0
    %2975 = vmatprep.subr.mxu0 0.0
    %2976 = vmatpush1.xpose.msra.mxu0 0.0
    %2977 = vmatprep.subr.mxu0 0.0
    %2978 = vmatpush1.xpose.msra.mxu0 0.0
    %2979 = vmatprep.subr.mxu0 0.0
    %2980 = vmatpush1.xpose.msra.mxu0 0.0
    %2981 = vmatprep.subr.mxu0 0.0
    %2982 = vmatpush1.xpose.msra.mxu0 0.0
    %2983 = vmatprep.subr.mxu0 0.0
    %2984 = vmatpush1.xpose.msra.mxu0 0.0
    %2985 = vmatprep.subr.mxu0 0.0
    %2986 = vmatpush1.xpose.msra.mxu0 0.0
    %2987 = vmatprep.subr.mxu0 0.0
    %2988 = vmatpush1.xpose.msra.mxu0 0.0
    %2989 = vmatprep.subr.mxu0 0.0
    %2990 = vmatpush1.xpose.msra.mxu0 0.0
    %2991 = vmatprep.subr.mxu0 0.0
    %2992 = vmatpush1.xpose.msra.mxu0 0.0
    %2993 = vmatprep.subr.mxu0 0.0
    %2994 = vmatpush1.xpose.msra.mxu0 0.0
    %2995 = vmatprep.subr.mxu0 0.0
    %2996 = vmatpush1.xpose.msra.mxu0 0.0
    %2997 = vmatprep.subr.mxu0 0.0
    %2998 = vmatpush1.xpose.msra.mxu0 0.0
    %2999 = vmatprep.subr.mxu0 0.0
    %3000 = vmatpush1.xpose.msra.mxu0 0.0
    %3001 = vmatprep.subr.mxu0 0.0
    %3002 = vmatpush1.xpose.msra.mxu0 0.0
    %3003 = vmatprep.mubr.f32.mxu0 0.0
    %3004 = vmatmul.mubr.f32.gmra.mrb[0].mxu0 %v2934
    %v3005 = vpop.f32.mrb[0].mxu0
    %v3006 = vadd.f32 %v2932, %v3005
    %v3007 = vpop.f32.mrb[0].mxu0
    %3008 = vdwg.mxu0
    %v3009 = vmul.f32 %v2145, 0.35355338
    %v3010 = vmul.f32 %v2268, 0.35355338
    %v3011 = vmul.f32 %v2391, 0.35355338
    %v3012 = vmul.f32 %v2514, 0.35355338
    %v3013 = vmul.f32 %v2637, 0.35355338
    %v3014 = vmul.f32 %v2760, 0.35355338
    %v3015 = vmul.f32 %v2883, 0.35355338
    %v3016 = vmul.f32 %v3006, 0.35355338
    %v3017 = vsel %vm1823, %v3009, -inf
    %3018 = vmax.xlane.f32.xlu0 %v3017
    %v3019 = vpop.xlane.xlu0 %3018
    %v3020 = vsel %vm1823, %v3010, -inf
    %3021 = vmax.xlane.f32.xlu0 %v3020
    %v3022 = vpop.xlane.xlu0 %3021
    %v3023 = vsel %vm1823, %v3011, -inf
    %3024 = vmax.xlane.f32.xlu0 %v3023
    %v3025 = vpop.xlane.xlu0 %3024
    %v3026 = vsel %vm1823, %v3012, -inf
    %3027 = vmax.xlane.f32.xlu0 %v3026
    %v3028 = vpop.xlane.xlu0 %3027
    %v3029 = vsel %vm1823, %v3013, -inf
    %3030 = vmax.xlane.f32.xlu0 %v3029
    %v3031 = vpop.xlane.xlu0 %3030
    %v3032 = vsel %vm1823, %v3014, -inf
    %3033 = vmax.xlane.f32.xlu0 %v3032
    %v3034 = vpop.xlane.xlu0 %3033
    %v3035 = vsel %vm1823, %v3015, -inf
    %3036 = vmax.xlane.f32.xlu0 %v3035
    %v3037 = vpop.xlane.xlu0 %3036
    %v3038 = vsel %vm1823, %v3016, -inf
    %3039 = vmax.xlane.f32.xlu0 %v3038
    %v3040 = vpop.xlane.xlu0 %3039
    %v3041 = vsub.f32 %v3009, %v3019
    %v3042 = vsub.f32 %v3010, %v3022
    %v3043 = vsub.f32 %v3011, %v3025
    %v3044 = vsub.f32 %v3012, %v3028
    %v3045 = vsub.f32 %v3013, %v3031
    %v3046 = vsub.f32 %v3014, %v3034
    %v3047 = vsub.f32 %v3015, %v3037
    %v3048 = vsub.f32 %v3016, %v3040
    %v3049 = vmul.f32 %v3041, 1.442695
    %v3050 = vpow.pop %v3049
    %v3051 = vmul.f32 %v3042, 1.442695
    %v3052 = vpow.pop %v3051
    %v3053 = vmul.f32 %v3043, 1.442695
    %v3054 = vpow.pop %v3053
    %v3055 = vmul.f32 %v3044, 1.442695
    %v3056 = vpow.pop %v3055
    %v3057 = vmul.f32 %v3045, 1.442695
    %v3058 = vpow.pop %v3057
    %v3059 = vmul.f32 %v3046, 1.442695
    %v3060 = vpow.pop %v3059
    %v3061 = vmul.f32 %v3047, 1.442695
    %v3062 = vpow.pop %v3061
    %v3063 = vmul.f32 %v3048, 1.442695
    %v3064 = vpow.pop %v3063
    %v3065 = vsel %vm1823, %v3050, 0.0
    %3066 = vadd.xlane.f32.xlu0 %v3065
    %v3067 = vpop.xlane.xlu0 %3066
    %v3068 = vsel %vm1823, %v3052, 0.0
    %3069 = vadd.xlane.f32.xlu0 %v3068
    %v3070 = vpop.xlane.xlu0 %3069
    %v3071 = vsel %vm1823, %v3054, 0.0
    %3072 = vadd.xlane.f32.xlu0 %v3071
    %v3073 = vpop.xlane.xlu0 %3072
    %v3074 = vsel %vm1823, %v3056, 0.0
    %3075 = vadd.xlane.f32.xlu0 %v3074
    %v3076 = vpop.xlane.xlu0 %3075
    %v3077 = vsel %vm1823, %v3058, 0.0
    %3078 = vadd.xlane.f32.xlu0 %v3077
    %v3079 = vpop.xlane.xlu0 %3078
    %v3080 = vsel %vm1823, %v3060, 0.0
    %3081 = vadd.xlane.f32.xlu0 %v3080
    %v3082 = vpop.xlane.xlu0 %3081
    %v3083 = vsel %vm1823, %v3062, 0.0
    %3084 = vadd.xlane.f32.xlu0 %v3083
    %v3085 = vpop.xlane.xlu0 %3084
    %v3086 = vsel %vm1823, %v3064, 0.0
    %3087 = vadd.xlane.f32.xlu0 %v3086
    %v3088 = vpop.xlane.xlu0 %3087
    %v3089 = vrcp.pop %v3067
    %v3090 = vmul.f32 %v3050, %v3089
    %v3091 = vrcp.pop %v3070
    %v3092 = vmul.f32 %v3052, %v3091
    %v3093 = vrcp.pop %v3073
    %v3094 = vmul.f32 %v3054, %v3093
    %v3095 = vrcp.pop %v3076
    %v3096 = vmul.f32 %v3056, %v3095
    %v3097 = vrcp.pop %v3079
    %v3098 = vmul.f32 %v3058, %v3097
    %v3099 = vrcp.pop %v3082
    %v3100 = vmul.f32 %v3060, %v3099
    %v3101 = vrcp.pop %v3085
    %v3102 = vmul.f32 %v3062, %v3101
    %v3103 = vrcp.pop %v3088
    %v3104 = vmul.f32 %v3064, %v3103
    %v3105 = vlaneseq
    %v3106 = vshrl.u32 %v3105, 7
    %v3107 = vsub.s32 0, %v3106
    %v3108 = vrot.slane %v3090, %v3107
    %3110 = vbcast.lane.b32.xlu0 %v3108, 256
    %v3111 = vpop.permute.xlu0 %3110
    %v3112 = vlaneseq
    %v3113 = vshrl.u32 %v3112, 7
    %v3114 = vsub.s32 1, %v3113
    %v3115 = vrot.slane %v3090, %v3114
    %3117 = vbcast.lane.b32.xlu0 %v3115, 256
    %v3118 = vpop.permute.xlu0 %3117
    %v3119 = vlaneseq
    %v3120 = vshrl.u32 %v3119, 7
    %v3121 = vsub.s32 2, %v3120
    %v3122 = vrot.slane %v3090, %v3121
    %3124 = vbcast.lane.b32.xlu0 %v3122, 256
    %v3125 = vpop.permute.xlu0 %3124
    %v3126 = vlaneseq
    %v3127 = vshrl.u32 %v3126, 7
    %v3128 = vsub.s32 3, %v3127
    %v3129 = vrot.slane %v3090, %v3128
    %3131 = vbcast.lane.b32.xlu0 %v3129, 256
    %v3132 = vpop.permute.xlu0 %3131
    %v3133 = vlaneseq
    %v3134 = vshrl.u32 %v3133, 7
    %v3135 = vsub.s32 4, %v3134
    %v3136 = vrot.slane %v3090, %v3135
    %3138 = vbcast.lane.b32.xlu0 %v3136, 256
    %v3139 = vpop.permute.xlu0 %3138
    %v3140 = vlaneseq
    %v3141 = vshrl.u32 %v3140, 7
    %v3142 = vsub.s32 5, %v3141
    %v3143 = vrot.slane %v3090, %v3142
    %3145 = vbcast.lane.b32.xlu0 %v3143, 256
    %v3146 = vpop.permute.xlu0 %3145
    %v3147 = vlaneseq
    %v3148 = vshrl.u32 %v3147, 7
    %v3149 = vsub.s32 6, %v3148
    %v3150 = vrot.slane %v3090, %v3149
    %3152 = vbcast.lane.b32.xlu0 %v3150, 256
    %v3153 = vpop.permute.xlu0 %3152
    %v3154 = vlaneseq
    %v3155 = vshrl.u32 %v3154, 7
    %v3156 = vsub.s32 7, %v3155
    %v3157 = vrot.slane %v3090, %v3156
    %3159 = vbcast.lane.b32.xlu0 %v3157, 256
    %v3160 = vpop.permute.xlu0 %3159
    %v3161 = vlaneseq
    %v3162 = vshrl.u32 %v3161, 7
    %v3163 = vsub.s32 0, %v3162
    %v3164 = vrot.slane %v3092, %v3163
    %3166 = vbcast.lane.b32.xlu0 %v3164, 256
    %v3167 = vpop.permute.xlu0 %3166
    %v3168 = vlaneseq
    %v3169 = vshrl.u32 %v3168, 7
    %v3170 = vsub.s32 1, %v3169
    %v3171 = vrot.slane %v3092, %v3170
    %3173 = vbcast.lane.b32.xlu0 %v3171, 256
    %v3174 = vpop.permute.xlu0 %3173
    %v3175 = vlaneseq
    %v3176 = vshrl.u32 %v3175, 7
    %v3177 = vsub.s32 2, %v3176
    %v3178 = vrot.slane %v3092, %v3177
    %3180 = vbcast.lane.b32.xlu0 %v3178, 256
    %v3181 = vpop.permute.xlu0 %3180
    %v3182 = vlaneseq
    %v3183 = vshrl.u32 %v3182, 7
    %v3184 = vsub.s32 3, %v3183
    %v3185 = vrot.slane %v3092, %v3184
    %3187 = vbcast.lane.b32.xlu0 %v3185, 256
    %v3188 = vpop.permute.xlu0 %3187
    %v3189 = vlaneseq
    %v3190 = vshrl.u32 %v3189, 7
    %v3191 = vsub.s32 4, %v3190
    %v3192 = vrot.slane %v3092, %v3191
    %3194 = vbcast.lane.b32.xlu0 %v3192, 256
    %v3195 = vpop.permute.xlu0 %3194
    %v3196 = vlaneseq
    %v3197 = vshrl.u32 %v3196, 7
    %v3198 = vsub.s32 5, %v3197
    %v3199 = vrot.slane %v3092, %v3198
    %3201 = vbcast.lane.b32.xlu0 %v3199, 256
    %v3202 = vpop.permute.xlu0 %3201
    %v3203 = vlaneseq
    %v3204 = vshrl.u32 %v3203, 7
    %v3205 = vsub.s32 6, %v3204
    %v3206 = vrot.slane %v3092, %v3205
    %3208 = vbcast.lane.b32.xlu0 %v3206, 256
    %v3209 = vpop.permute.xlu0 %3208
    %v3210 = vlaneseq
    %v3211 = vshrl.u32 %v3210, 7
    %v3212 = vsub.s32 7, %v3211
    %v3213 = vrot.slane %v3092, %v3212
    %3215 = vbcast.lane.b32.xlu0 %v3213, 256
    %v3216 = vpop.permute.xlu0 %3215
    %v3217 = vlaneseq
    %v3218 = vshrl.u32 %v3217, 7
    %v3219 = vsub.s32 0, %v3218
    %v3220 = vrot.slane %v3094, %v3219
    %3222 = vbcast.lane.b32.xlu0 %v3220, 256
    %v3223 = vpop.permute.xlu0 %3222
    %v3224 = vlaneseq
    %v3225 = vshrl.u32 %v3224, 7
    %v3226 = vsub.s32 1, %v3225
    %v3227 = vrot.slane %v3094, %v3226
    %3229 = vbcast.lane.b32.xlu0 %v3227, 256
    %v3230 = vpop.permute.xlu0 %3229
    %v3231 = vlaneseq
    %v3232 = vshrl.u32 %v3231, 7
    %v3233 = vsub.s32 2, %v3232
    %v3234 = vrot.slane %v3094, %v3233
    %3236 = vbcast.lane.b32.xlu0 %v3234, 256
    %v3237 = vpop.permute.xlu0 %3236
    %v3238 = vlaneseq
    %v3239 = vshrl.u32 %v3238, 7
    %v3240 = vsub.s32 3, %v3239
    %v3241 = vrot.slane %v3094, %v3240
    %3243 = vbcast.lane.b32.xlu0 %v3241, 256
    %v3244 = vpop.permute.xlu0 %3243
    %v3245 = vlaneseq
    %v3246 = vshrl.u32 %v3245, 7
    %v3247 = vsub.s32 4, %v3246
    %v3248 = vrot.slane %v3094, %v3247
    %3250 = vbcast.lane.b32.xlu0 %v3248, 256
    %v3251 = vpop.permute.xlu0 %3250
    %v3252 = vlaneseq
    %v3253 = vshrl.u32 %v3252, 7
    %v3254 = vsub.s32 5, %v3253
    %v3255 = vrot.slane %v3094, %v3254
    %3257 = vbcast.lane.b32.xlu0 %v3255, 256
    %v3258 = vpop.permute.xlu0 %3257
    %v3259 = vlaneseq
    %v3260 = vshrl.u32 %v3259, 7
    %v3261 = vsub.s32 6, %v3260
    %v3262 = vrot.slane %v3094, %v3261
    %3264 = vbcast.lane.b32.xlu0 %v3262, 256
    %v3265 = vpop.permute.xlu0 %3264
    %v3266 = vlaneseq
    %v3267 = vshrl.u32 %v3266, 7
    %v3268 = vsub.s32 7, %v3267
    %v3269 = vrot.slane %v3094, %v3268
    %3271 = vbcast.lane.b32.xlu0 %v3269, 256
    %v3272 = vpop.permute.xlu0 %3271
    %v3273 = vlaneseq
    %v3274 = vshrl.u32 %v3273, 7
    %v3275 = vsub.s32 0, %v3274
    %v3276 = vrot.slane %v3096, %v3275
    %3278 = vbcast.lane.b32.xlu0 %v3276, 256
    %v3279 = vpop.permute.xlu0 %3278
    %v3280 = vlaneseq
    %v3281 = vshrl.u32 %v3280, 7
    %v3282 = vsub.s32 1, %v3281
    %v3283 = vrot.slane %v3096, %v3282
    %3285 = vbcast.lane.b32.xlu0 %v3283, 256
    %v3286 = vpop.permute.xlu0 %3285
    %v3287 = vlaneseq
    %v3288 = vshrl.u32 %v3287, 7
    %v3289 = vsub.s32 2, %v3288
    %v3290 = vrot.slane %v3096, %v3289
    %3292 = vbcast.lane.b32.xlu0 %v3290, 256
    %v3293 = vpop.permute.xlu0 %3292
    %v3294 = vlaneseq
    %v3295 = vshrl.u32 %v3294, 7
    %v3296 = vsub.s32 3, %v3295
    %v3297 = vrot.slane %v3096, %v3296
    %3299 = vbcast.lane.b32.xlu0 %v3297, 256
    %v3300 = vpop.permute.xlu0 %3299
    %v3301 = vlaneseq
    %v3302 = vshrl.u32 %v3301, 7
    %v3303 = vsub.s32 4, %v3302
    %v3304 = vrot.slane %v3096, %v3303
    %3306 = vbcast.lane.b32.xlu0 %v3304, 256
    %v3307 = vpop.permute.xlu0 %3306
    %v3308 = vlaneseq
    %v3309 = vshrl.u32 %v3308, 7
    %v3310 = vsub.s32 5, %v3309
    %v3311 = vrot.slane %v3096, %v3310
    %3313 = vbcast.lane.b32.xlu0 %v3311, 256
    %v3314 = vpop.permute.xlu0 %3313
    %v3315 = vlaneseq
    %v3316 = vshrl.u32 %v3315, 7
    %v3317 = vsub.s32 6, %v3316
    %v3318 = vrot.slane %v3096, %v3317
    %3320 = vbcast.lane.b32.xlu0 %v3318, 256
    %v3321 = vpop.permute.xlu0 %3320
    %v3322 = vlaneseq
    %v3323 = vshrl.u32 %v3322, 7
    %v3324 = vsub.s32 7, %v3323
    %v3325 = vrot.slane %v3096, %v3324
    %3327 = vbcast.lane.b32.xlu0 %v3325, 256
    %v3328 = vpop.permute.xlu0 %3327
    %v3329 = vlaneseq
    %v3330 = vshrl.u32 %v3329, 7
    %v3331 = vsub.s32 0, %v3330
    %v3332 = vrot.slane %v3098, %v3331
    %3334 = vbcast.lane.b32.xlu0 %v3332, 256
    %v3335 = vpop.permute.xlu0 %3334
    %v3336 = vlaneseq
    %v3337 = vshrl.u32 %v3336, 7
    %v3338 = vsub.s32 1, %v3337
    %v3339 = vrot.slane %v3098, %v3338
    %3341 = vbcast.lane.b32.xlu0 %v3339, 256
    %v3342 = vpop.permute.xlu0 %3341
    %v3343 = vlaneseq
    %v3344 = vshrl.u32 %v3343, 7
    %v3345 = vsub.s32 2, %v3344
    %v3346 = vrot.slane %v3098, %v3345
    %3348 = vbcast.lane.b32.xlu0 %v3346, 256
    %v3349 = vpop.permute.xlu0 %3348
    %v3350 = vlaneseq
    %v3351 = vshrl.u32 %v3350, 7
    %v3352 = vsub.s32 3, %v3351
    %v3353 = vrot.slane %v3098, %v3352
    %3355 = vbcast.lane.b32.xlu0 %v3353, 256
    %v3356 = vpop.permute.xlu0 %3355
    %v3357 = vlaneseq
    %v3358 = vshrl.u32 %v3357, 7
    %v3359 = vsub.s32 4, %v3358
    %v3360 = vrot.slane %v3098, %v3359
    %3362 = vbcast.lane.b32.xlu0 %v3360, 256
    %v3363 = vpop.permute.xlu0 %3362
    %v3364 = vlaneseq
    %v3365 = vshrl.u32 %v3364, 7
    %v3366 = vsub.s32 5, %v3365
    %v3367 = vrot.slane %v3098, %v3366
    %3369 = vbcast.lane.b32.xlu0 %v3367, 256
    %v3370 = vpop.permute.xlu0 %3369
    %v3371 = vlaneseq
    %v3372 = vshrl.u32 %v3371, 7
    %v3373 = vsub.s32 6, %v3372
    %v3374 = vrot.slane %v3098, %v3373
    %3376 = vbcast.lane.b32.xlu0 %v3374, 256
    %v3377 = vpop.permute.xlu0 %3376
    %v3378 = vlaneseq
    %v3379 = vshrl.u32 %v3378, 7
    %v3380 = vsub.s32 7, %v3379
    %v3381 = vrot.slane %v3098, %v3380
    %3383 = vbcast.lane.b32.xlu0 %v3381, 256
    %v3384 = vpop.permute.xlu0 %3383
    %v3385 = vlaneseq
    %v3386 = vshrl.u32 %v3385, 7
    %v3387 = vsub.s32 0, %v3386
    %v3388 = vrot.slane %v3100, %v3387
    %3390 = vbcast.lane.b32.xlu0 %v3388, 256
    %v3391 = vpop.permute.xlu0 %3390
    %v3392 = vlaneseq
    %v3393 = vshrl.u32 %v3392, 7
    %v3394 = vsub.s32 1, %v3393
    %v3395 = vrot.slane %v3100, %v3394
    %3397 = vbcast.lane.b32.xlu0 %v3395, 256
    %v3398 = vpop.permute.xlu0 %3397
    %v3399 = vlaneseq
    %v3400 = vshrl.u32 %v3399, 7
    %v3401 = vsub.s32 2, %v3400
    %v3402 = vrot.slane %v3100, %v3401
    %3404 = vbcast.lane.b32.xlu0 %v3402, 256
    %v3405 = vpop.permute.xlu0 %3404
    %v3406 = vlaneseq
    %v3407 = vshrl.u32 %v3406, 7
    %v3408 = vsub.s32 3, %v3407
    %v3409 = vrot.slane %v3100, %v3408
    %3411 = vbcast.lane.b32.xlu0 %v3409, 256
    %v3412 = vpop.permute.xlu0 %3411
    %v3413 = vlaneseq
    %v3414 = vshrl.u32 %v3413, 7
    %v3415 = vsub.s32 4, %v3414
    %v3416 = vrot.slane %v3100, %v3415
    %3418 = vbcast.lane.b32.xlu0 %v3416, 256
    %v3419 = vpop.permute.xlu0 %3418
    %v3420 = vlaneseq
    %v3421 = vshrl.u32 %v3420, 7
    %v3422 = vsub.s32 5, %v3421
    %v3423 = vrot.slane %v3100, %v3422
    %3425 = vbcast.lane.b32.xlu0 %v3423, 256
    %v3426 = vpop.permute.xlu0 %3425
    %v3427 = vlaneseq
    %v3428 = vshrl.u32 %v3427, 7
    %v3429 = vsub.s32 6, %v3428
    %v3430 = vrot.slane %v3100, %v3429
    %3432 = vbcast.lane.b32.xlu0 %v3430, 256
    %v3433 = vpop.permute.xlu0 %3432
    %v3434 = vlaneseq
    %v3435 = vshrl.u32 %v3434, 7
    %v3436 = vsub.s32 7, %v3435
    %v3437 = vrot.slane %v3100, %v3436
    %3439 = vbcast.lane.b32.xlu0 %v3437, 256
    %v3440 = vpop.permute.xlu0 %3439
    %v3441 = vlaneseq
    %v3442 = vshrl.u32 %v3441, 7
    %v3443 = vsub.s32 0, %v3442
    %v3444 = vrot.slane %v3102, %v3443
    %3446 = vbcast.lane.b32.xlu0 %v3444, 256
    %v3447 = vpop.permute.xlu0 %3446
    %v3448 = vlaneseq
    %v3449 = vshrl.u32 %v3448, 7
    %v3450 = vsub.s32 1, %v3449
    %v3451 = vrot.slane %v3102, %v3450
    %3453 = vbcast.lane.b32.xlu0 %v3451, 256
    %v3454 = vpop.permute.xlu0 %3453
    %v3455 = vlaneseq
    %v3456 = vshrl.u32 %v3455, 7
    %v3457 = vsub.s32 2, %v3456
    %v3458 = vrot.slane %v3102, %v3457
    %3460 = vbcast.lane.b32.xlu0 %v3458, 256
    %v3461 = vpop.permute.xlu0 %3460
    %v3462 = vlaneseq
    %v3463 = vshrl.u32 %v3462, 7
    %v3464 = vsub.s32 3, %v3463
    %v3465 = vrot.slane %v3102, %v3464
    %3467 = vbcast.lane.b32.xlu0 %v3465, 256
    %v3468 = vpop.permute.xlu0 %3467
    %v3469 = vlaneseq
    %v3470 = vshrl.u32 %v3469, 7
    %v3471 = vsub.s32 4, %v3470
    %v3472 = vrot.slane %v3102, %v3471
    %3474 = vbcast.lane.b32.xlu0 %v3472, 256
    %v3475 = vpop.permute.xlu0 %3474
    %v3476 = vlaneseq
    %v3477 = vshrl.u32 %v3476, 7
    %v3478 = vsub.s32 5, %v3477
    %v3479 = vrot.slane %v3102, %v3478
    %3481 = vbcast.lane.b32.xlu0 %v3479, 256
    %v3482 = vpop.permute.xlu0 %3481
    %v3483 = vlaneseq
    %v3484 = vshrl.u32 %v3483, 7
    %v3485 = vsub.s32 6, %v3484
    %v3486 = vrot.slane %v3102, %v3485
    %3488 = vbcast.lane.b32.xlu0 %v3486, 256
    %v3489 = vpop.permute.xlu0 %3488
    %v3490 = vlaneseq
    %v3491 = vshrl.u32 %v3490, 7
    %v3492 = vsub.s32 7, %v3491
    %v3493 = vrot.slane %v3102, %v3492
    %3495 = vbcast.lane.b32.xlu0 %v3493, 256
    %v3496 = vpop.permute.xlu0 %3495
    %v3497 = vlaneseq
    %v3498 = vshrl.u32 %v3497, 7
    %v3499 = vsub.s32 0, %v3498
    %v3500 = vrot.slane %v3104, %v3499
    %3502 = vbcast.lane.b32.xlu0 %v3500, 256
    %v3503 = vpop.permute.xlu0 %3502
    %v3504 = vlaneseq
    %v3505 = vshrl.u32 %v3504, 7
    %v3506 = vsub.s32 1, %v3505
    %v3507 = vrot.slane %v3104, %v3506
    %3509 = vbcast.lane.b32.xlu0 %v3507, 256
    %v3510 = vpop.permute.xlu0 %3509
    %v3511 = vlaneseq
    %v3512 = vshrl.u32 %v3511, 7
    %v3513 = vsub.s32 2, %v3512
    %v3514 = vrot.slane %v3104, %v3513
    %3516 = vbcast.lane.b32.xlu0 %v3514, 256
    %v3517 = vpop.permute.xlu0 %3516
    %v3518 = vlaneseq
    %v3519 = vshrl.u32 %v3518, 7
    %v3520 = vsub.s32 3, %v3519
    %v3521 = vrot.slane %v3104, %v3520
    %3523 = vbcast.lane.b32.xlu0 %v3521, 256
    %v3524 = vpop.permute.xlu0 %3523
    %v3525 = vlaneseq
    %v3526 = vshrl.u32 %v3525, 7
    %v3527 = vsub.s32 4, %v3526
    %v3528 = vrot.slane %v3104, %v3527
    %3530 = vbcast.lane.b32.xlu0 %v3528, 256
    %v3531 = vpop.permute.xlu0 %3530
    %v3532 = vlaneseq
    %v3533 = vshrl.u32 %v3532, 7
    %v3534 = vsub.s32 5, %v3533
    %v3535 = vrot.slane %v3104, %v3534
    %3537 = vbcast.lane.b32.xlu0 %v3535, 256
    %v3538 = vpop.permute.xlu0 %3537
    %v3539 = vlaneseq
    %v3540 = vshrl.u32 %v3539, 7
    %v3541 = vsub.s32 6, %v3540
    %v3542 = vrot.slane %v3104, %v3541
    %3544 = vbcast.lane.b32.xlu0 %v3542, 256
    %v3545 = vpop.permute.xlu0 %3544
    %v3546 = vlaneseq
    %v3547 = vshrl.u32 %v3546, 7
    %v3548 = vsub.s32 7, %v3547
    %v3549 = vrot.slane %v3104, %v3548
    %3551 = vbcast.lane.b32.xlu0 %v3549, 256
    %v3552 = vpop.permute.xlu0 %3551
    %v3553 = vmul.f32 %v3111, %v97
    %v3554 = vmul.f32 %v3118, %v98
    %v3555 = vmul.f32 %v3125, %v99
    %v3556 = vmul.f32 %v3132, %v100
    %v3557 = vmul.f32 %v3139, %v101
    %v3558 = vmul.f32 %v3146, %v102
    %v3559 = vmul.f32 %v3153, %v103
    %v3560 = vmul.f32 %v3160, %v104
    %v3561 = vmul.f32 %v3167, %v97
    %v3562 = vmul.f32 %v3174, %v98
    %v3563 = vmul.f32 %v3181, %v99
    %v3564 = vmul.f32 %v3188, %v100
    %v3565 = vmul.f32 %v3195, %v101
    %v3566 = vmul.f32 %v3202, %v102
    %v3567 = vmul.f32 %v3209, %v103
    %v3568 = vmul.f32 %v3216, %v104
    %v3569 = vmul.f32 %v3223, %v97
    %v3570 = vmul.f32 %v3230, %v98
    %v3571 = vmul.f32 %v3237, %v99
    %v3572 = vmul.f32 %v3244, %v100
    %v3573 = vmul.f32 %v3251, %v101
    %v3574 = vmul.f32 %v3258, %v102
    %v3575 = vmul.f32 %v3265, %v103
    %v3576 = vmul.f32 %v3272, %v104
    %v3577 = vmul.f32 %v3279, %v97
    %v3578 = vmul.f32 %v3286, %v98
    %v3579 = vmul.f32 %v3293, %v99
    %v3580 = vmul.f32 %v3300, %v100
    %v3581 = vmul.f32 %v3307, %v101
    %v3582 = vmul.f32 %v3314, %v102
    %v3583 = vmul.f32 %v3321, %v103
    %v3584 = vmul.f32 %v3328, %v104
    %v3585 = vmul.f32 %v3335, %v97
    %v3586 = vmul.f32 %v3342, %v98
    %v3587 = vmul.f32 %v3349, %v99
    %v3588 = vmul.f32 %v3356, %v100
    %v3589 = vmul.f32 %v3363, %v101
    %v3590 = vmul.f32 %v3370, %v102
    %v3591 = vmul.f32 %v3377, %v103
    %v3592 = vmul.f32 %v3384, %v104
    %v3593 = vmul.f32 %v3391, %v97
    %v3594 = vmul.f32 %v3398, %v98
    %v3595 = vmul.f32 %v3405, %v99
    %v3596 = vmul.f32 %v3412, %v100
    %v3597 = vmul.f32 %v3419, %v101
    %v3598 = vmul.f32 %v3426, %v102
    %v3599 = vmul.f32 %v3433, %v103
    %v3600 = vmul.f32 %v3440, %v104
    %v3601 = vmul.f32 %v3447, %v97
    %v3602 = vmul.f32 %v3454, %v98
    %v3603 = vmul.f32 %v3461, %v99
    %v3604 = vmul.f32 %v3468, %v100
    %v3605 = vmul.f32 %v3475, %v101
    %v3606 = vmul.f32 %v3482, %v102
    %v3607 = vmul.f32 %v3489, %v103
    %v3608 = vmul.f32 %v3496, %v104
    %v3609 = vmul.f32 %v3503, %v97
    %v3610 = vmul.f32 %v3510, %v98
    %v3611 = vmul.f32 %v3517, %v99
    %v3612 = vmul.f32 %v3524, %v100
    %v3613 = vmul.f32 %v3531, %v101
    %v3614 = vmul.f32 %v3538, %v102
    %v3615 = vmul.f32 %v3545, %v103
    %v3616 = vmul.f32 %v3552, %v104
    %v3617 = vsel %vm1823, %v3553, 0.0
    %v3618 = vrot.slane %v3617, 4
    %v3619 = vadd.f32 %v3617, %v3618
    %v3620 = vrot.slane %v3619, 2
    %v3621 = vadd.f32 %v3619, %v3620
    %v3622 = vrot.slane %v3621, 1
    %v3623 = vadd.f32 %v3621, %v3622
    %v3624 = vsel %vm1823, %v3554, 0.0
    %v3625 = vrot.slane %v3624, 4
    %v3626 = vadd.f32 %v3624, %v3625
    %v3627 = vrot.slane %v3626, 2
    %v3628 = vadd.f32 %v3626, %v3627
    %v3629 = vrot.slane %v3628, 1
    %v3630 = vadd.f32 %v3628, %v3629
    %v3631 = vsel %vm1823, %v3555, 0.0
    %v3632 = vrot.slane %v3631, 4
    %v3633 = vadd.f32 %v3631, %v3632
    %v3634 = vrot.slane %v3633, 2
    %v3635 = vadd.f32 %v3633, %v3634
    %v3636 = vrot.slane %v3635, 1
    %v3637 = vadd.f32 %v3635, %v3636
    %v3638 = vsel %vm1823, %v3556, 0.0
    %v3639 = vrot.slane %v3638, 4
    %v3640 = vadd.f32 %v3638, %v3639
    %v3641 = vrot.slane %v3640, 2
    %v3642 = vadd.f32 %v3640, %v3641
    %v3643 = vrot.slane %v3642, 1
    %v3644 = vadd.f32 %v3642, %v3643
    %v3645 = vsel %vm1823, %v3557, 0.0
    %v3646 = vrot.slane %v3645, 4
    %v3647 = vadd.f32 %v3645, %v3646
    %v3648 = vrot.slane %v3647, 2
    %v3649 = vadd.f32 %v3647, %v3648
    %v3650 = vrot.slane %v3649, 1
    %v3651 = vadd.f32 %v3649, %v3650
    %v3652 = vsel %vm1823, %v3558, 0.0
    %v3653 = vrot.slane %v3652, 4
    %v3654 = vadd.f32 %v3652, %v3653
    %v3655 = vrot.slane %v3654, 2
    %v3656 = vadd.f32 %v3654, %v3655
    %v3657 = vrot.slane %v3656, 1
    %v3658 = vadd.f32 %v3656, %v3657
    %v3659 = vsel %vm1823, %v3559, 0.0
    %v3660 = vrot.slane %v3659, 4
    %v3661 = vadd.f32 %v3659, %v3660
    %v3662 = vrot.slane %v3661, 2
    %v3663 = vadd.f32 %v3661, %v3662
    %v3664 = vrot.slane %v3663, 1
    %v3665 = vadd.f32 %v3663, %v3664
    %v3666 = vsel %vm1823, %v3560, 0.0
    %v3667 = vrot.slane %v3666, 4
    %v3668 = vadd.f32 %v3666, %v3667
    %v3669 = vrot.slane %v3668, 2
    %v3670 = vadd.f32 %v3668, %v3669
    %v3671 = vrot.slane %v3670, 1
    %v3672 = vadd.f32 %v3670, %v3671
    %v3673 = vsel %vm1823, %v3561, 0.0
    %v3674 = vrot.slane %v3673, 4
    %v3675 = vadd.f32 %v3673, %v3674
    %v3676 = vrot.slane %v3675, 2
    %v3677 = vadd.f32 %v3675, %v3676
    %v3678 = vrot.slane %v3677, 1
    %v3679 = vadd.f32 %v3677, %v3678
    %v3680 = vsel %vm1823, %v3562, 0.0
    %v3681 = vrot.slane %v3680, 4
    %v3682 = vadd.f32 %v3680, %v3681
    %v3683 = vrot.slane %v3682, 2
    %v3684 = vadd.f32 %v3682, %v3683
    %v3685 = vrot.slane %v3684, 1
    %v3686 = vadd.f32 %v3684, %v3685
    %v3687 = vsel %vm1823, %v3563, 0.0
    %v3688 = vrot.slane %v3687, 4
    %v3689 = vadd.f32 %v3687, %v3688
    %v3690 = vrot.slane %v3689, 2
    %v3691 = vadd.f32 %v3689, %v3690
    %v3692 = vrot.slane %v3691, 1
    %v3693 = vadd.f32 %v3691, %v3692
    %v3694 = vsel %vm1823, %v3564, 0.0
    %v3695 = vrot.slane %v3694, 4
    %v3696 = vadd.f32 %v3694, %v3695
    %v3697 = vrot.slane %v3696, 2
    %v3698 = vadd.f32 %v3696, %v3697
    %v3699 = vrot.slane %v3698, 1
    %v3700 = vadd.f32 %v3698, %v3699
    %v3701 = vsel %vm1823, %v3565, 0.0
    %v3702 = vrot.slane %v3701, 4
    %v3703 = vadd.f32 %v3701, %v3702
    %v3704 = vrot.slane %v3703, 2
    %v3705 = vadd.f32 %v3703, %v3704
    %v3706 = vrot.slane %v3705, 1
    %v3707 = vadd.f32 %v3705, %v3706
    %v3708 = vsel %vm1823, %v3566, 0.0
    %v3709 = vrot.slane %v3708, 4
    %v3710 = vadd.f32 %v3708, %v3709
    %v3711 = vrot.slane %v3710, 2
    %v3712 = vadd.f32 %v3710, %v3711
    %v3713 = vrot.slane %v3712, 1
    %v3714 = vadd.f32 %v3712, %v3713
    %v3715 = vsel %vm1823, %v3567, 0.0
    %v3716 = vrot.slane %v3715, 4
    %v3717 = vadd.f32 %v3715, %v3716
    %v3718 = vrot.slane %v3717, 2
    %v3719 = vadd.f32 %v3717, %v3718
    %v3720 = vrot.slane %v3719, 1
    %v3721 = vadd.f32 %v3719, %v3720
    %v3722 = vsel %vm1823, %v3568, 0.0
    %v3723 = vrot.slane %v3722, 4
    %v3724 = vadd.f32 %v3722, %v3723
    %v3725 = vrot.slane %v3724, 2
    %v3726 = vadd.f32 %v3724, %v3725
    %v3727 = vrot.slane %v3726, 1
    %v3728 = vadd.f32 %v3726, %v3727
    %v3729 = vsel %vm1823, %v3569, 0.0
    %v3730 = vrot.slane %v3729, 4
    %v3731 = vadd.f32 %v3729, %v3730
    %v3732 = vrot.slane %v3731, 2
    %v3733 = vadd.f32 %v3731, %v3732
    %v3734 = vrot.slane %v3733, 1
    %v3735 = vadd.f32 %v3733, %v3734
    %v3736 = vsel %vm1823, %v3570, 0.0
    %v3737 = vrot.slane %v3736, 4
    %v3738 = vadd.f32 %v3736, %v3737
    %v3739 = vrot.slane %v3738, 2
    %v3740 = vadd.f32 %v3738, %v3739
    %v3741 = vrot.slane %v3740, 1
    %v3742 = vadd.f32 %v3740, %v3741
    %v3743 = vsel %vm1823, %v3571, 0.0
    %v3744 = vrot.slane %v3743, 4
    %v3745 = vadd.f32 %v3743, %v3744
    %v3746 = vrot.slane %v3745, 2
    %v3747 = vadd.f32 %v3745, %v3746
    %v3748 = vrot.slane %v3747, 1
    %v3749 = vadd.f32 %v3747, %v3748
    %v3750 = vsel %vm1823, %v3572, 0.0
    %v3751 = vrot.slane %v3750, 4
    %v3752 = vadd.f32 %v3750, %v3751
    %v3753 = vrot.slane %v3752, 2
    %v3754 = vadd.f32 %v3752, %v3753
    %v3755 = vrot.slane %v3754, 1
    %v3756 = vadd.f32 %v3754, %v3755
    %v3757 = vsel %vm1823, %v3573, 0.0
    %v3758 = vrot.slane %v3757, 4
    %v3759 = vadd.f32 %v3757, %v3758
    %v3760 = vrot.slane %v3759, 2
    %v3761 = vadd.f32 %v3759, %v3760
    %v3762 = vrot.slane %v3761, 1
    %v3763 = vadd.f32 %v3761, %v3762
    %v3764 = vsel %vm1823, %v3574, 0.0
    %v3765 = vrot.slane %v3764, 4
    %v3766 = vadd.f32 %v3764, %v3765
    %v3767 = vrot.slane %v3766, 2
    %v3768 = vadd.f32 %v3766, %v3767
    %v3769 = vrot.slane %v3768, 1
    %v3770 = vadd.f32 %v3768, %v3769
    %v3771 = vsel %vm1823, %v3575, 0.0
    %v3772 = vrot.slane %v3771, 4
    %v3773 = vadd.f32 %v3771, %v3772
    %v3774 = vrot.slane %v3773, 2
    %v3775 = vadd.f32 %v3773, %v3774
    %v3776 = vrot.slane %v3775, 1
    %v3777 = vadd.f32 %v3775, %v3776
    %v3778 = vsel %vm1823, %v3576, 0.0
    %v3779 = vrot.slane %v3778, 4
    %v3780 = vadd.f32 %v3778, %v3779
    %v3781 = vrot.slane %v3780, 2
    %v3782 = vadd.f32 %v3780, %v3781
    %v3783 = vrot.slane %v3782, 1
    %v3784 = vadd.f32 %v3782, %v3783
    %v3785 = vsel %vm1823, %v3577, 0.0
    %v3786 = vrot.slane %v3785, 4
    %v3787 = vadd.f32 %v3785, %v3786
    %v3788 = vrot.slane %v3787, 2
    %v3789 = vadd.f32 %v3787, %v3788
    %v3790 = vrot.slane %v3789, 1
    %v3791 = vadd.f32 %v3789, %v3790
    %v3792 = vsel %vm1823, %v3578, 0.0
    %v3793 = vrot.slane %v3792, 4
    %v3794 = vadd.f32 %v3792, %v3793
    %v3795 = vrot.slane %v3794, 2
    %v3796 = vadd.f32 %v3794, %v3795
    %v3797 = vrot.slane %v3796, 1
    %v3798 = vadd.f32 %v3796, %v3797
    %v3799 = vsel %vm1823, %v3579, 0.0
    %v3800 = vrot.slane %v3799, 4
    %v3801 = vadd.f32 %v3799, %v3800
    %v3802 = vrot.slane %v3801, 2
    %v3803 = vadd.f32 %v3801, %v3802
    %v3804 = vrot.slane %v3803, 1
    %v3805 = vadd.f32 %v3803, %v3804
    %v3806 = vsel %vm1823, %v3580, 0.0
    %v3807 = vrot.slane %v3806, 4
    %v3808 = vadd.f32 %v3806, %v3807
    %v3809 = vrot.slane %v3808, 2
    %v3810 = vadd.f32 %v3808, %v3809
    %v3811 = vrot.slane %v3810, 1
    %v3812 = vadd.f32 %v3810, %v3811
    %v3813 = vsel %vm1823, %v3581, 0.0
    %v3814 = vrot.slane %v3813, 4
    %v3815 = vadd.f32 %v3813, %v3814
    %v3816 = vrot.slane %v3815, 2
    %v3817 = vadd.f32 %v3815, %v3816
    %v3818 = vrot.slane %v3817, 1
    %v3819 = vadd.f32 %v3817, %v3818
    %v3820 = vsel %vm1823, %v3582, 0.0
    %v3821 = vrot.slane %v3820, 4
    %v3822 = vadd.f32 %v3820, %v3821
    %v3823 = vrot.slane %v3822, 2
    %v3824 = vadd.f32 %v3822, %v3823
    %v3825 = vrot.slane %v3824, 1
    %v3826 = vadd.f32 %v3824, %v3825
    %v3827 = vsel %vm1823, %v3583, 0.0
    %v3828 = vrot.slane %v3827, 4
    %v3829 = vadd.f32 %v3827, %v3828
    %v3830 = vrot.slane %v3829, 2
    %v3831 = vadd.f32 %v3829, %v3830
    %v3832 = vrot.slane %v3831, 1
    %v3833 = vadd.f32 %v3831, %v3832
    %v3834 = vsel %vm1823, %v3584, 0.0
    %v3835 = vrot.slane %v3834, 4
    %v3836 = vadd.f32 %v3834, %v3835
    %v3837 = vrot.slane %v3836, 2
    %v3838 = vadd.f32 %v3836, %v3837
    %v3839 = vrot.slane %v3838, 1
    %v3840 = vadd.f32 %v3838, %v3839
    %v3841 = vsel %vm1823, %v3585, 0.0
    %v3842 = vrot.slane %v3841, 4
    %v3843 = vadd.f32 %v3841, %v3842
    %v3844 = vrot.slane %v3843, 2
    %v3845 = vadd.f32 %v3843, %v3844
    %v3846 = vrot.slane %v3845, 1
    %v3847 = vadd.f32 %v3845, %v3846
    %v3848 = vsel %vm1823, %v3586, 0.0
    %v3849 = vrot.slane %v3848, 4
    %v3850 = vadd.f32 %v3848, %v3849
    %v3851 = vrot.slane %v3850, 2
    %v3852 = vadd.f32 %v3850, %v3851
    %v3853 = vrot.slane %v3852, 1
    %v3854 = vadd.f32 %v3852, %v3853
    %v3855 = vsel %vm1823, %v3587, 0.0
    %v3856 = vrot.slane %v3855, 4
    %v3857 = vadd.f32 %v3855, %v3856
    %v3858 = vrot.slane %v3857, 2
    %v3859 = vadd.f32 %v3857, %v3858
    %v3860 = vrot.slane %v3859, 1
    %v3861 = vadd.f32 %v3859, %v3860
    %v3862 = vsel %vm1823, %v3588, 0.0
    %v3863 = vrot.slane %v3862, 4
    %v3864 = vadd.f32 %v3862, %v3863
    %v3865 = vrot.slane %v3864, 2
    %v3866 = vadd.f32 %v3864, %v3865
    %v3867 = vrot.slane %v3866, 1
    %v3868 = vadd.f32 %v3866, %v3867
    %v3869 = vsel %vm1823, %v3589, 0.0
    %v3870 = vrot.slane %v3869, 4
    %v3871 = vadd.f32 %v3869, %v3870
    %v3872 = vrot.slane %v3871, 2
    %v3873 = vadd.f32 %v3871, %v3872
    %v3874 = vrot.slane %v3873, 1
    %v3875 = vadd.f32 %v3873, %v3874
    %v3876 = vsel %vm1823, %v3590, 0.0
    %v3877 = vrot.slane %v3876, 4
    %v3878 = vadd.f32 %v3876, %v3877
    %v3879 = vrot.slane %v3878, 2
    %v3880 = vadd.f32 %v3878, %v3879
    %v3881 = vrot.slane %v3880, 1
    %v3882 = vadd.f32 %v3880, %v3881
    %v3883 = vsel %vm1823, %v3591, 0.0
    %v3884 = vrot.slane %v3883, 4
    %v3885 = vadd.f32 %v3883, %v3884
    %v3886 = vrot.slane %v3885, 2
    %v3887 = vadd.f32 %v3885, %v3886
    %v3888 = vrot.slane %v3887, 1
    %v3889 = vadd.f32 %v3887, %v3888
    %v3890 = vsel %vm1823, %v3592, 0.0
    %v3891 = vrot.slane %v3890, 4
    %v3892 = vadd.f32 %v3890, %v3891
    %v3893 = vrot.slane %v3892, 2
    %v3894 = vadd.f32 %v3892, %v3893
    %v3895 = vrot.slane %v3894, 1
    %v3896 = vadd.f32 %v3894, %v3895
    %v3897 = vsel %vm1823, %v3593, 0.0
    %v3898 = vrot.slane %v3897, 4
    %v3899 = vadd.f32 %v3897, %v3898
    %v3900 = vrot.slane %v3899, 2
    %v3901 = vadd.f32 %v3899, %v3900
    %v3902 = vrot.slane %v3901, 1
    %v3903 = vadd.f32 %v3901, %v3902
    %v3904 = vsel %vm1823, %v3594, 0.0
    %v3905 = vrot.slane %v3904, 4
    %v3906 = vadd.f32 %v3904, %v3905
    %v3907 = vrot.slane %v3906, 2
    %v3908 = vadd.f32 %v3906, %v3907
    %v3909 = vrot.slane %v3908, 1
    %v3910 = vadd.f32 %v3908, %v3909
    %v3911 = vsel %vm1823, %v3595, 0.0
    %v3912 = vrot.slane %v3911, 4
    %v3913 = vadd.f32 %v3911, %v3912
    %v3914 = vrot.slane %v3913, 2
    %v3915 = vadd.f32 %v3913, %v3914
    %v3916 = vrot.slane %v3915, 1
    %v3917 = vadd.f32 %v3915, %v3916
    %v3918 = vsel %vm1823, %v3596, 0.0
    %v3919 = vrot.slane %v3918, 4
    %v3920 = vadd.f32 %v3918, %v3919
    %v3921 = vrot.slane %v3920, 2
    %v3922 = vadd.f32 %v3920, %v3921
    %v3923 = vrot.slane %v3922, 1
    %v3924 = vadd.f32 %v3922, %v3923
    %v3925 = vsel %vm1823, %v3597, 0.0
    %v3926 = vrot.slane %v3925, 4
    %v3927 = vadd.f32 %v3925, %v3926
    %v3928 = vrot.slane %v3927, 2
    %v3929 = vadd.f32 %v3927, %v3928
    %v3930 = vrot.slane %v3929, 1
    %v3931 = vadd.f32 %v3929, %v3930
    %v3932 = vsel %vm1823, %v3598, 0.0
    %v3933 = vrot.slane %v3932, 4
    %v3934 = vadd.f32 %v3932, %v3933
    %v3935 = vrot.slane %v3934, 2
    %v3936 = vadd.f32 %v3934, %v3935
    %v3937 = vrot.slane %v3936, 1
    %v3938 = vadd.f32 %v3936, %v3937
    %v3939 = vsel %vm1823, %v3599, 0.0
    %v3940 = vrot.slane %v3939, 4
    %v3941 = vadd.f32 %v3939, %v3940
    %v3942 = vrot.slane %v3941, 2
    %v3943 = vadd.f32 %v3941, %v3942
    %v3944 = vrot.slane %v3943, 1
    %v3945 = vadd.f32 %v3943, %v3944
    %v3946 = vsel %vm1823, %v3600, 0.0
    %v3947 = vrot.slane %v3946, 4
    %v3948 = vadd.f32 %v3946, %v3947
    %v3949 = vrot.slane %v3948, 2
    %v3950 = vadd.f32 %v3948, %v3949
    %v3951 = vrot.slane %v3950, 1
    %v3952 = vadd.f32 %v3950, %v3951
    %v3953 = vsel %vm1823, %v3601, 0.0
    %v3954 = vrot.slane %v3953, 4
    %v3955 = vadd.f32 %v3953, %v3954
    %v3956 = vrot.slane %v3955, 2
    %v3957 = vadd.f32 %v3955, %v3956
    %v3958 = vrot.slane %v3957, 1
    %v3959 = vadd.f32 %v3957, %v3958
    %v3960 = vsel %vm1823, %v3602, 0.0
    %v3961 = vrot.slane %v3960, 4
    %v3962 = vadd.f32 %v3960, %v3961
    %v3963 = vrot.slane %v3962, 2
    %v3964 = vadd.f32 %v3962, %v3963
    %v3965 = vrot.slane %v3964, 1
    %v3966 = vadd.f32 %v3964, %v3965
    %v3967 = vsel %vm1823, %v3603, 0.0
    %v3968 = vrot.slane %v3967, 4
    %v3969 = vadd.f32 %v3967, %v3968
    %v3970 = vrot.slane %v3969, 2
    %v3971 = vadd.f32 %v3969, %v3970
    %v3972 = vrot.slane %v3971, 1
    %v3973 = vadd.f32 %v3971, %v3972
    %v3974 = vsel %vm1823, %v3604, 0.0
    %v3975 = vrot.slane %v3974, 4
    %v3976 = vadd.f32 %v3974, %v3975
    %v3977 = vrot.slane %v3976, 2
    %v3978 = vadd.f32 %v3976, %v3977
    %v3979 = vrot.slane %v3978, 1
    %v3980 = vadd.f32 %v3978, %v3979
    %v3981 = vsel %vm1823, %v3605, 0.0
    %v3982 = vrot.slane %v3981, 4
    %v3983 = vadd.f32 %v3981, %v3982
    %v3984 = vrot.slane %v3983, 2
    %v3985 = vadd.f32 %v3983, %v3984
    %v3986 = vrot.slane %v3985, 1
    %v3987 = vadd.f32 %v3985, %v3986
    %v3988 = vsel %vm1823, %v3606, 0.0
    %v3989 = vrot.slane %v3988, 4
    %v3990 = vadd.f32 %v3988, %v3989
    %v3991 = vrot.slane %v3990, 2
    %v3992 = vadd.f32 %v3990, %v3991
    %v3993 = vrot.slane %v3992, 1
    %v3994 = vadd.f32 %v3992, %v3993
    %v3995 = vsel %vm1823, %v3607, 0.0
    %v3996 = vrot.slane %v3995, 4
    %v3997 = vadd.f32 %v3995, %v3996
    %v3998 = vrot.slane %v3997, 2
    %v3999 = vadd.f32 %v3997, %v3998
    %v4000 = vrot.slane %v3999, 1
    %v4001 = vadd.f32 %v3999, %v4000
    %v4002 = vsel %vm1823, %v3608, 0.0
    %v4003 = vrot.slane %v4002, 4
    %v4004 = vadd.f32 %v4002, %v4003
    %v4005 = vrot.slane %v4004, 2
    %v4006 = vadd.f32 %v4004, %v4005
    %v4007 = vrot.slane %v4006, 1
    %v4008 = vadd.f32 %v4006, %v4007
    %v4009 = vsel %vm1823, %v3609, 0.0
    %v4010 = vrot.slane %v4009, 4
    %v4011 = vadd.f32 %v4009, %v4010
    %v4012 = vrot.slane %v4011, 2
    %v4013 = vadd.f32 %v4011, %v4012
    %v4014 = vrot.slane %v4013, 1
    %v4015 = vadd.f32 %v4013, %v4014
    %v4016 = vsel %vm1823, %v3610, 0.0
    %v4017 = vrot.slane %v4016, 4
    %v4018 = vadd.f32 %v4016, %v4017
    %v4019 = vrot.slane %v4018, 2
    %v4020 = vadd.f32 %v4018, %v4019
    %v4021 = vrot.slane %v4020, 1
    %v4022 = vadd.f32 %v4020, %v4021
    %v4023 = vsel %vm1823, %v3611, 0.0
    %v4024 = vrot.slane %v4023, 4
    %v4025 = vadd.f32 %v4023, %v4024
    %v4026 = vrot.slane %v4025, 2
    %v4027 = vadd.f32 %v4025, %v4026
    %v4028 = vrot.slane %v4027, 1
    %v4029 = vadd.f32 %v4027, %v4028
    %v4030 = vsel %vm1823, %v3612, 0.0
    %v4031 = vrot.slane %v4030, 4
    %v4032 = vadd.f32 %v4030, %v4031
    %v4033 = vrot.slane %v4032, 2
    %v4034 = vadd.f32 %v4032, %v4033
    %v4035 = vrot.slane %v4034, 1
    %v4036 = vadd.f32 %v4034, %v4035
    %v4037 = vsel %vm1823, %v3613, 0.0
    %v4038 = vrot.slane %v4037, 4
    %v4039 = vadd.f32 %v4037, %v4038
    %v4040 = vrot.slane %v4039, 2
    %v4041 = vadd.f32 %v4039, %v4040
    %v4042 = vrot.slane %v4041, 1
    %v4043 = vadd.f32 %v4041, %v4042
    %v4044 = vsel %vm1823, %v3614, 0.0
    %v4045 = vrot.slane %v4044, 4
    %v4046 = vadd.f32 %v4044, %v4045
    %v4047 = vrot.slane %v4046, 2
    %v4048 = vadd.f32 %v4046, %v4047
    %v4049 = vrot.slane %v4048, 1
    %v4050 = vadd.f32 %v4048, %v4049
    %v4051 = vsel %vm1823, %v3615, 0.0
    %v4052 = vrot.slane %v4051, 4
    %v4053 = vadd.f32 %v4051, %v4052
    %v4054 = vrot.slane %v4053, 2
    %v4055 = vadd.f32 %v4053, %v4054
    %v4056 = vrot.slane %v4055, 1
    %v4057 = vadd.f32 %v4055, %v4056
    %v4058 = vsel %vm1823, %v3616, 0.0
    %v4059 = vrot.slane %v4058, 4
    %v4060 = vadd.f32 %v4058, %v4059
    %v4061 = vrot.slane %v4060, 2
    %v4062 = vadd.f32 %v4060, %v4061
    %v4063 = vrot.slane %v4062, 1
    %v4064 = vadd.f32 %v4062, %v4063
    %v4073 = vsel %vm2058, %v3630, %v3623
    %v4074 = vsel %vm2060, %v3637, %v4073
    %v4075 = vsel %vm2062, %v3644, %v4074
    %v4076 = vsel %vm2064, %v3651, %v4075
    %v4077 = vsel %vm2066, %v3658, %v4076
    %v4078 = vsel %vm2068, %v3665, %v4077
    %v4079 = vsel %vm2070, %v3672, %v4078
    %v4082 = vsel %vm1823, %v3090, 0
    %4084 = vmatprep.subr.mxu0 0.0
    %4085 = vmatpush1.msra.mxu0 %v806
    %4086 = vmatprep.subr.mxu0 0.0
    %4087 = vmatpush1.msra.mxu0 0.0
    %4088 = vmatprep.subr.mxu0 0.0
    %4089 = vmatpush1.msra.mxu0 0.0
    %4090 = vmatprep.subr.mxu0 0.0
    %4091 = vmatpush1.msra.mxu0 0.0
    %4092 = vmatprep.subr.mxu0 0.0
    %4093 = vmatpush1.msra.mxu0 0.0
    %4094 = vmatprep.subr.mxu0 0.0
    %4095 = vmatpush1.msra.mxu0 0.0
    %4096 = vmatprep.subr.mxu0 0.0
    %4097 = vmatpush1.msra.mxu0 0.0
    %4098 = vmatprep.subr.mxu0 0.0
    %4099 = vmatpush1.msra.mxu0 0.0
    %4100 = vmatprep.subr.mxu0 0.0
    %4101 = vmatpush1.msra.mxu0 0.0
    %4102 = vmatprep.subr.mxu0 0.0
    %4103 = vmatpush1.msra.mxu0 0.0
    %4104 = vmatprep.subr.mxu0 0.0
    %4105 = vmatpush1.msra.mxu0 0.0
    %4106 = vmatprep.subr.mxu0 0.0
    %4107 = vmatpush1.msra.mxu0 0.0
    %4108 = vmatprep.subr.mxu0 0.0
    %4109 = vmatpush1.msra.mxu0 0.0
    %4110 = vmatprep.subr.mxu0 0.0
    %4111 = vmatpush1.msra.mxu0 0.0
    %4112 = vmatprep.subr.mxu0 0.0
    %4113 = vmatpush1.msra.mxu0 0.0
    %4114 = vmatprep.subr.mxu0 0.0
    %4115 = vmatpush1.msra.mxu0 0.0
    %4116 = vmatprep.subr.mxu0 0.0
    %4117 = vmatpush1.msra.mxu0 0.0
    %4118 = vmatprep.subr.mxu0 0.0
    %4119 = vmatpush1.msra.mxu0 0.0
    %4120 = vmatprep.subr.mxu0 0.0
    %4121 = vmatpush1.msra.mxu0 0.0
    %4122 = vmatprep.subr.mxu0 0.0
    %4123 = vmatpush1.msra.mxu0 0.0
    %4124 = vmatprep.subr.mxu0 0.0
    %4125 = vmatpush1.msra.mxu0 0.0
    %4126 = vmatprep.subr.mxu0 0.0
    %4127 = vmatpush1.msra.mxu0 0.0
    %4128 = vmatprep.subr.mxu0 0.0
    %4129 = vmatpush1.msra.mxu0 0.0
    %4130 = vmatprep.subr.mxu0 0.0
    %4131 = vmatpush1.msra.mxu0 0.0
    %4132 = vmatprep.subr.mxu0 0.0
    %4133 = vmatpush1.msra.mxu0 0.0
    %4134 = vmatprep.subr.mxu0 0.0
    %4135 = vmatpush1.msra.mxu0 0.0
    %4136 = vmatprep.subr.mxu0 0.0
    %4137 = vmatpush1.msra.mxu0 0.0
    %4138 = vmatprep.subr.mxu0 0.0
    %4139 = vmatpush1.msra.mxu0 0.0
    %4140 = vmatprep.subr.mxu0 0.0
    %4141 = vmatpush1.msra.mxu0 0.0
    %4142 = vmatprep.subr.mxu0 0.0
    %4143 = vmatpush1.msra.mxu0 0.0
    %4144 = vmatprep.subr.mxu0 0.0
    %4145 = vmatpush1.msra.mxu0 0.0
    %4146 = vmatprep.subr.mxu0 0.0
    %4147 = vmatpush1.msra.mxu0 0.0
    %4148 = vmatprep.mubr.f32.mxu0 0.0
    %4149 = vmatmul.mubr.f32.gmra.mrb[0].mxu0 %v4082
    %v4150 = vpop.f32.mrb[0].mxu0
    %v4151 = vadd.f32 %v4079, %v4150
    %v4152 = vpop.f32.mrb[0].mxu0
    %4153 = vdwg.mxu0
    %v4162 = vsel %vm2058, %v3686, %v3679
    %v4163 = vsel %vm2060, %v3693, %v4162
    %v4164 = vsel %vm2062, %v3700, %v4163
    %v4165 = vsel %vm2064, %v3707, %v4164
    %v4166 = vsel %vm2066, %v3714, %v4165
    %v4167 = vsel %vm2068, %v3721, %v4166
    %v4168 = vsel %vm2070, %v3728, %v4167
    %v4171 = vsel %vm1823, %v3092, 0
    %4173 = vmatprep.subr.mxu0 0.0
    %4174 = vmatpush1.msra.mxu0 %v811
    %4175 = vmatprep.subr.mxu0 0.0
    %4176 = vmatpush1.msra.mxu0 0.0
    %4177 = vmatprep.subr.mxu0 0.0
    %4178 = vmatpush1.msra.mxu0 0.0
    %4179 = vmatprep.subr.mxu0 0.0
    %4180 = vmatpush1.msra.mxu0 0.0
    %4181 = vmatprep.subr.mxu0 0.0
    %4182 = vmatpush1.msra.mxu0 0.0
    %4183 = vmatprep.subr.mxu0 0.0
    %4184 = vmatpush1.msra.mxu0 0.0
    %4185 = vmatprep.subr.mxu0 0.0
    %4186 = vmatpush1.msra.mxu0 0.0
    %4187 = vmatprep.subr.mxu0 0.0
    %4188 = vmatpush1.msra.mxu0 0.0
    %4189 = vmatprep.subr.mxu0 0.0
    %4190 = vmatpush1.msra.mxu0 0.0
    %4191 = vmatprep.subr.mxu0 0.0
    %4192 = vmatpush1.msra.mxu0 0.0
    %4193 = vmatprep.subr.mxu0 0.0
    %4194 = vmatpush1.msra.mxu0 0.0
    %4195 = vmatprep.subr.mxu0 0.0
    %4196 = vmatpush1.msra.mxu0 0.0
    %4197 = vmatprep.subr.mxu0 0.0
    %4198 = vmatpush1.msra.mxu0 0.0
    %4199 = vmatprep.subr.mxu0 0.0
    %4200 = vmatpush1.msra.mxu0 0.0
    %4201 = vmatprep.subr.mxu0 0.0
    %4202 = vmatpush1.msra.mxu0 0.0
    %4203 = vmatprep.subr.mxu0 0.0
    %4204 = vmatpush1.msra.mxu0 0.0
    %4205 = vmatprep.subr.mxu0 0.0
    %4206 = vmatpush1.msra.mxu0 0.0
    %4207 = vmatprep.subr.mxu0 0.0
    %4208 = vmatpush1.msra.mxu0 0.0
    %4209 = vmatprep.subr.mxu0 0.0
    %4210 = vmatpush1.msra.mxu0 0.0
    %4211 = vmatprep.subr.mxu0 0.0
    %4212 = vmatpush1.msra.mxu0 0.0
    %4213 = vmatprep.subr.mxu0 0.0
    %4214 = vmatpush1.msra.mxu0 0.0
    %4215 = vmatprep.subr.mxu0 0.0
    %4216 = vmatpush1.msra.mxu0 0.0
    %4217 = vmatprep.subr.mxu0 0.0
    %4218 = vmatpush1.msra.mxu0 0.0
    %4219 = vmatprep.subr.mxu0 0.0
    %4220 = vmatpush1.msra.mxu0 0.0
    %4221 = vmatprep.subr.mxu0 0.0
    %4222 = vmatpush1.msra.mxu0 0.0
    %4223 = vmatprep.subr.mxu0 0.0
    %4224 = vmatpush1.msra.mxu0 0.0
    %4225 = vmatprep.subr.mxu0 0.0
    %4226 = vmatpush1.msra.mxu0 0.0
    %4227 = vmatprep.subr.mxu0 0.0
    %4228 = vmatpush1.msra.mxu0 0.0
    %4229 = vmatprep.subr.mxu0 0.0
    %4230 = vmatpush1.msra.mxu0 0.0
    %4231 = vmatprep.subr.mxu0 0.0
    %4232 = vmatpush1.msra.mxu0 0.0
    %4233 = vmatprep.subr.mxu0 0.0
    %4234 = vmatpush1.msra.mxu0 0.0
    %4235 = vmatprep.subr.mxu0 0.0
    %4236 = vmatpush1.msra.mxu0 0.0
    %4237 = vmatprep.mubr.f32.mxu0 0.0
    %4238 = vmatmul.mubr.f32.gmra.mrb[0].mxu0 %v4171
    %v4239 = vpop.f32.mrb[0].mxu0
    %v4240 = vadd.f32 %v4168, %v4239
    %v4241 = vpop.f32.mrb[0].mxu0
    %4242 = vdwg.mxu0
    %v4251 = vsel %vm2058, %v3742, %v3735
    %v4252 = vsel %vm2060, %v3749, %v4251
    %v4253 = vsel %vm2062, %v3756, %v4252
    %v4254 = vsel %vm2064, %v3763, %v4253
    %v4255 = vsel %vm2066, %v3770, %v4254
    %v4256 = vsel %vm2068, %v3777, %v4255
    %v4257 = vsel %vm2070, %v3784, %v4256
    %v4260 = vsel %vm1823, %v3094, 0
    %4262 = vmatprep.subr.mxu0 0.0
    %4263 = vmatpush1.msra.mxu0 %v881
    %4264 = vmatprep.subr.mxu0 0.0
    %4265 = vmatpush1.msra.mxu0 0.0
    %4266 = vmatprep.subr.mxu0 0.0
    %4267 = vmatpush1.msra.mxu0 0.0
    %4268 = vmatprep.subr.mxu0 0.0
    %4269 = vmatpush1.msra.mxu0 0.0
    %4270 = vmatprep.subr.mxu0 0.0
    %4271 = vmatpush1.msra.mxu0 0.0
    %4272 = vmatprep.subr.mxu0 0.0
    %4273 = vmatpush1.msra.mxu0 0.0
    %4274 = vmatprep.subr.mxu0 0.0
    %4275 = vmatpush1.msra.mxu0 0.0
    %4276 = vmatprep.subr.mxu0 0.0
    %4277 = vmatpush1.msra.mxu0 0.0
    %4278 = vmatprep.subr.mxu0 0.0
    %4279 = vmatpush1.msra.mxu0 0.0
    %4280 = vmatprep.subr.mxu0 0.0
    %4281 = vmatpush1.msra.mxu0 0.0
    %4282 = vmatprep.subr.mxu0 0.0
    %4283 = vmatpush1.msra.mxu0 0.0
    %4284 = vmatprep.subr.mxu0 0.0
    %4285 = vmatpush1.msra.mxu0 0.0
    %4286 = vmatprep.subr.mxu0 0.0
    %4287 = vmatpush1.msra.mxu0 0.0
    %4288 = vmatprep.subr.mxu0 0.0
    %4289 = vmatpush1.msra.mxu0 0.0
    %4290 = vmatprep.subr.mxu0 0.0
    %4291 = vmatpush1.msra.mxu0 0.0
    %4292 = vmatprep.subr.mxu0 0.0
    %4293 = vmatpush1.msra.mxu0 0.0
    %4294 = vmatprep.subr.mxu0 0.0
    %4295 = vmatpush1.msra.mxu0 0.0
    %4296 = vmatprep.subr.mxu0 0.0
    %4297 = vmatpush1.msra.mxu0 0.0
    %4298 = vmatprep.subr.mxu0 0.0
    %4299 = vmatpush1.msra.mxu0 0.0
    %4300 = vmatprep.subr.mxu0 0.0
    %4301 = vmatpush1.msra.mxu0 0.0
    %4302 = vmatprep.subr.mxu0 0.0
    %4303 = vmatpush1.msra.mxu0 0.0
    %4304 = vmatprep.subr.mxu0 0.0
    %4305 = vmatpush1.msra.mxu0 0.0
    %4306 = vmatprep.subr.mxu0 0.0
    %4307 = vmatpush1.msra.mxu0 0.0
    %4308 = vmatprep.subr.mxu0 0.0
    %4309 = vmatpush1.msra.mxu0 0.0
    %4310 = vmatprep.subr.mxu0 0.0
    %4311 = vmatpush1.msra.mxu0 0.0
    %4312 = vmatprep.subr.mxu0 0.0
    %4313 = vmatpush1.msra.mxu0 0.0
    %4314 = vmatprep.subr.mxu0 0.0
    %4315 = vmatpush1.msra.mxu0 0.0
    %4316 = vmatprep.subr.mxu0 0.0
    %4317 = vmatpush1.msra.mxu0 0.0
    %4318 = vmatprep.subr.mxu0 0.0
    %4319 = vmatpush1.msra.mxu0 0.0
    %4320 = vmatprep.subr.mxu0 0.0
    %4321 = vmatpush1.msra.mxu0 0.0
    %4322 = vmatprep.subr.mxu0 0.0
    %4323 = vmatpush1.msra.mxu0 0.0
    %4324 = vmatprep.subr.mxu0 0.0
    %4325 = vmatpush1.msra.mxu0 0.0
    %4326 = vmatprep.mubr.f32.mxu0 0.0
    %4327 = vmatmul.mubr.f32.gmra.mrb[0].mxu0 %v4260
    %v4328 = vpop.f32.mrb[0].mxu0
    %v4329 = vadd.f32 %v4257, %v4328
    %v4330 = vpop.f32.mrb[0].mxu0
    %4331 = vdwg.mxu0
    %v4340 = vsel %vm2058, %v3798, %v3791
    %v4341 = vsel %vm2060, %v3805, %v4340
    %v4342 = vsel %vm2062, %v3812, %v4341
    %v4343 = vsel %vm2064, %v3819, %v4342
    %v4344 = vsel %vm2066, %v3826, %v4343
    %v4345 = vsel %vm2068, %v3833, %v4344
    %v4346 = vsel %vm2070, %v3840, %v4345
    %v4349 = vsel %vm1823, %v3096, 0
    %4351 = vmatprep.subr.mxu0 0.0
    %4352 = vmatpush1.msra.mxu0 %v886
    %4353 = vmatprep.subr.mxu0 0.0
    %4354 = vmatpush1.msra.mxu0 0.0
    %4355 = vmatprep.subr.mxu0 0.0
    %4356 = vmatpush1.msra.mxu0 0.0
    %4357 = vmatprep.subr.mxu0 0.0
    %4358 = vmatpush1.msra.mxu0 0.0
    %4359 = vmatprep.subr.mxu0 0.0
    %4360 = vmatpush1.msra.mxu0 0.0
    %4361 = vmatprep.subr.mxu0 0.0
    %4362 = vmatpush1.msra.mxu0 0.0
    %4363 = vmatprep.subr.mxu0 0.0
    %4364 = vmatpush1.msra.mxu0 0.0
    %4365 = vmatprep.subr.mxu0 0.0
    %4366 = vmatpush1.msra.mxu0 0.0
    %4367 = vmatprep.subr.mxu0 0.0
    %4368 = vmatpush1.msra.mxu0 0.0
    %4369 = vmatprep.subr.mxu0 0.0
    %4370 = vmatpush1.msra.mxu0 0.0
    %4371 = vmatprep.subr.mxu0 0.0
    %4372 = vmatpush1.msra.mxu0 0.0
    %4373 = vmatprep.subr.mxu0 0.0
    %4374 = vmatpush1.msra.mxu0 0.0
    %4375 = vmatprep.subr.mxu0 0.0
    %4376 = vmatpush1.msra.mxu0 0.0
    %4377 = vmatprep.subr.mxu0 0.0
    %4378 = vmatpush1.msra.mxu0 0.0
    %4379 = vmatprep.subr.mxu0 0.0
    %4380 = vmatpush1.msra.mxu0 0.0
    %4381 = vmatprep.subr.mxu0 0.0
    %4382 = vmatpush1.msra.mxu0 0.0
    %4383 = vmatprep.subr.mxu0 0.0
    %4384 = vmatpush1.msra.mxu0 0.0
    %4385 = vmatprep.subr.mxu0 0.0
    %4386 = vmatpush1.msra.mxu0 0.0
    %4387 = vmatprep.subr.mxu0 0.0
    %4388 = vmatpush1.msra.mxu0 0.0
    %4389 = vmatprep.subr.mxu0 0.0
    %4390 = vmatpush1.msra.mxu0 0.0
    %4391 = vmatprep.subr.mxu0 0.0
    %4392 = vmatpush1.msra.mxu0 0.0
    %4393 = vmatprep.subr.mxu0 0.0
    %4394 = vmatpush1.msra.mxu0 0.0
    %4395 = vmatprep.subr.mxu0 0.0
    %4396 = vmatpush1.msra.mxu0 0.0
    %4397 = vmatprep.subr.mxu0 0.0
    %4398 = vmatpush1.msra.mxu0 0.0
    %4399 = vmatprep.subr.mxu0 0.0
    %4400 = vmatpush1.msra.mxu0 0.0
    %4401 = vmatprep.subr.mxu0 0.0
    %4402 = vmatpush1.msra.mxu0 0.0
    %4403 = vmatprep.subr.mxu0 0.0
    %4404 = vmatpush1.msra.mxu0 0.0
    %4405 = vmatprep.subr.mxu0 0.0
    %4406 = vmatpush1.msra.mxu0 0.0
    %4407 = vmatprep.subr.mxu0 0.0
    %4408 = vmatpush1.msra.mxu0 0.0
    %4409 = vmatprep.subr.mxu0 0.0
    %4410 = vmatpush1.msra.mxu0 0.0
    %4411 = vmatprep.subr.mxu0 0.0
    %4412 = vmatpush1.msra.mxu0 0.0
    %4413 = vmatprep.subr.mxu0 0.0
    %4414 = vmatpush1.msra.mxu0 0.0
    %4415 = vmatprep.mubr.f32.mxu0 0.0
    %4416 = vmatmul.mubr.f32.gmra.mrb[0].mxu0 %v4349
    %v4417 = vpop.f32.mrb[0].mxu0
    %v4418 = vadd.f32 %v4346, %v4417
    %v4419 = vpop.f32.mrb[0].mxu0
    %4420 = vdwg.mxu0
    %v4429 = vsel %vm2058, %v3854, %v3847
    %v4430 = vsel %vm2060, %v3861, %v4429
    %v4431 = vsel %vm2062, %v3868, %v4430
    %v4432 = vsel %vm2064, %v3875, %v4431
    %v4433 = vsel %vm2066, %v3882, %v4432
    %v4434 = vsel %vm2068, %v3889, %v4433
    %v4435 = vsel %vm2070, %v3896, %v4434
    %v4438 = vsel %vm1823, %v3098, 0
    %4440 = vmatprep.subr.mxu0 0.0
    %4441 = vmatpush1.msra.mxu0 %v956
    %4442 = vmatprep.subr.mxu0 0.0
    %4443 = vmatpush1.msra.mxu0 0.0
    %4444 = vmatprep.subr.mxu0 0.0
    %4445 = vmatpush1.msra.mxu0 0.0
    %4446 = vmatprep.subr.mxu0 0.0
    %4447 = vmatpush1.msra.mxu0 0.0
    %4448 = vmatprep.subr.mxu0 0.0
    %4449 = vmatpush1.msra.mxu0 0.0
    %4450 = vmatprep.subr.mxu0 0.0
    %4451 = vmatpush1.msra.mxu0 0.0
    %4452 = vmatprep.subr.mxu0 0.0
    %4453 = vmatpush1.msra.mxu0 0.0
    %4454 = vmatprep.subr.mxu0 0.0
    %4455 = vmatpush1.msra.mxu0 0.0
    %4456 = vmatprep.subr.mxu0 0.0
    %4457 = vmatpush1.msra.mxu0 0.0
    %4458 = vmatprep.subr.mxu0 0.0
    %4459 = vmatpush1.msra.mxu0 0.0
    %4460 = vmatprep.subr.mxu0 0.0
    %4461 = vmatpush1.msra.mxu0 0.0
    %4462 = vmatprep.subr.mxu0 0.0
    %4463 = vmatpush1.msra.mxu0 0.0
    %4464 = vmatprep.subr.mxu0 0.0
    %4465 = vmatpush1.msra.mxu0 0.0
    %4466 = vmatprep.subr.mxu0 0.0
    %4467 = vmatpush1.msra.mxu0 0.0
    %4468 = vmatprep.subr.mxu0 0.0
    %4469 = vmatpush1.msra.mxu0 0.0
    %4470 = vmatprep.subr.mxu0 0.0
    %4471 = vmatpush1.msra.mxu0 0.0
    %4472 = vmatprep.subr.mxu0 0.0
    %4473 = vmatpush1.msra.mxu0 0.0
    %4474 = vmatprep.subr.mxu0 0.0
    %4475 = vmatpush1.msra.mxu0 0.0
    %4476 = vmatprep.subr.mxu0 0.0
    %4477 = vmatpush1.msra.mxu0 0.0
    %4478 = vmatprep.subr.mxu0 0.0
    %4479 = vmatpush1.msra.mxu0 0.0
    %4480 = vmatprep.subr.mxu0 0.0
    %4481 = vmatpush1.msra.mxu0 0.0
    %4482 = vmatprep.subr.mxu0 0.0
    %4483 = vmatpush1.msra.mxu0 0.0
    %4484 = vmatprep.subr.mxu0 0.0
    %4485 = vmatpush1.msra.mxu0 0.0
    %4486 = vmatprep.subr.mxu0 0.0
    %4487 = vmatpush1.msra.mxu0 0.0
    %4488 = vmatprep.subr.mxu0 0.0
    %4489 = vmatpush1.msra.mxu0 0.0
    %4490 = vmatprep.subr.mxu0 0.0
    %4491 = vmatpush1.msra.mxu0 0.0
    %4492 = vmatprep.subr.mxu0 0.0
    %4493 = vmatpush1.msra.mxu0 0.0
    %4494 = vmatprep.subr.mxu0 0.0
    %4495 = vmatpush1.msra.mxu0 0.0
    %4496 = vmatprep.subr.mxu0 0.0
    %4497 = vmatpush1.msra.mxu0 0.0
    %4498 = vmatprep.subr.mxu0 0.0
    %4499 = vmatpush1.msra.mxu0 0.0
    %4500 = vmatprep.subr.mxu0 0.0
    %4501 = vmatpush1.msra.mxu0 0.0
    %4502 = vmatprep.subr.mxu0 0.0
    %4503 = vmatpush1.msra.mxu0 0.0
    %4504 = vmatprep.mubr.f32.mxu0 0.0
    %4505 = vmatmul.mubr.f32.gmra.mrb[0].mxu0 %v4438
    %v4506 = vpop.f32.mrb[0].mxu0
    %v4507 = vadd.f32 %v4435, %v4506
    %v4508 = vpop.f32.mrb[0].mxu0
    %4509 = vdwg.mxu0
    %v4518 = vsel %vm2058, %v3910, %v3903
    %v4519 = vsel %vm2060, %v3917, %v4518
    %v4520 = vsel %vm2062, %v3924, %v4519
    %v4521 = vsel %vm2064, %v3931, %v4520
    %v4522 = vsel %vm2066, %v3938, %v4521
    %v4523 = vsel %vm2068, %v3945, %v4522
    %v4524 = vsel %vm2070, %v3952, %v4523
    %v4527 = vsel %vm1823, %v3100, 0
    %4529 = vmatprep.subr.mxu0 0.0
    %4530 = vmatpush1.msra.mxu0 %v961
    %4531 = vmatprep.subr.mxu0 0.0
    %4532 = vmatpush1.msra.mxu0 0.0
    %4533 = vmatprep.subr.mxu0 0.0
    %4534 = vmatpush1.msra.mxu0 0.0
    %4535 = vmatprep.subr.mxu0 0.0
    %4536 = vmatpush1.msra.mxu0 0.0
    %4537 = vmatprep.subr.mxu0 0.0
    %4538 = vmatpush1.msra.mxu0 0.0
    %4539 = vmatprep.subr.mxu0 0.0
    %4540 = vmatpush1.msra.mxu0 0.0
    %4541 = vmatprep.subr.mxu0 0.0
    %4542 = vmatpush1.msra.mxu0 0.0
    %4543 = vmatprep.subr.mxu0 0.0
    %4544 = vmatpush1.msra.mxu0 0.0
    %4545 = vmatprep.subr.mxu0 0.0
    %4546 = vmatpush1.msra.mxu0 0.0
    %4547 = vmatprep.subr.mxu0 0.0
    %4548 = vmatpush1.msra.mxu0 0.0
    %4549 = vmatprep.subr.mxu0 0.0
    %4550 = vmatpush1.msra.mxu0 0.0
    %4551 = vmatprep.subr.mxu0 0.0
    %4552 = vmatpush1.msra.mxu0 0.0
    %4553 = vmatprep.subr.mxu0 0.0
    %4554 = vmatpush1.msra.mxu0 0.0
    %4555 = vmatprep.subr.mxu0 0.0
    %4556 = vmatpush1.msra.mxu0 0.0
    %4557 = vmatprep.subr.mxu0 0.0
    %4558 = vmatpush1.msra.mxu0 0.0
    %4559 = vmatprep.subr.mxu0 0.0
    %4560 = vmatpush1.msra.mxu0 0.0
    %4561 = vmatprep.subr.mxu0 0.0
    %4562 = vmatpush1.msra.mxu0 0.0
    %4563 = vmatprep.subr.mxu0 0.0
    %4564 = vmatpush1.msra.mxu0 0.0
    %4565 = vmatprep.subr.mxu0 0.0
    %4566 = vmatpush1.msra.mxu0 0.0
    %4567 = vmatprep.subr.mxu0 0.0
    %4568 = vmatpush1.msra.mxu0 0.0
    %4569 = vmatprep.subr.mxu0 0.0
    %4570 = vmatpush1.msra.mxu0 0.0
    %4571 = vmatprep.subr.mxu0 0.0
    %4572 = vmatpush1.msra.mxu0 0.0
    %4573 = vmatprep.subr.mxu0 0.0
    %4574 = vmatpush1.msra.mxu0 0.0
    %4575 = vmatprep.subr.mxu0 0.0
    %4576 = vmatpush1.msra.mxu0 0.0
    %4577 = vmatprep.subr.mxu0 0.0
    %4578 = vmatpush1.msra.mxu0 0.0
    %4579 = vmatprep.subr.mxu0 0.0
    %4580 = vmatpush1.msra.mxu0 0.0
    %4581 = vmatprep.subr.mxu0 0.0
    %4582 = vmatpush1.msra.mxu0 0.0
    %4583 = vmatprep.subr.mxu0 0.0
    %4584 = vmatpush1.msra.mxu0 0.0
    %4585 = vmatprep.subr.mxu0 0.0
    %4586 = vmatpush1.msra.mxu0 0.0
    %4587 = vmatprep.subr.mxu0 0.0
    %4588 = vmatpush1.msra.mxu0 0.0
    %4589 = vmatprep.subr.mxu0 0.0
    %4590 = vmatpush1.msra.mxu0 0.0
    %4591 = vmatprep.subr.mxu0 0.0
    %4592 = vmatpush1.msra.mxu0 0.0
    %4593 = vmatprep.mubr.f32.mxu0 0.0
    %4594 = vmatmul.mubr.f32.gmra.mrb[0].mxu0 %v4527
    %v4595 = vpop.f32.mrb[0].mxu0
    %v4596 = vadd.f32 %v4524, %v4595
    %v4597 = vpop.f32.mrb[0].mxu0
    %4598 = vdwg.mxu0
    %v4607 = vsel %vm2058, %v3966, %v3959
    %v4608 = vsel %vm2060, %v3973, %v4607
    %v4609 = vsel %vm2062, %v3980, %v4608
    %v4610 = vsel %vm2064, %v3987, %v4609
    %v4611 = vsel %vm2066, %v3994, %v4610
    %v4612 = vsel %vm2068, %v4001, %v4611
    %v4613 = vsel %vm2070, %v4008, %v4612
    %v4616 = vsel %vm1823, %v3102, 0
    %4618 = vmatprep.subr.mxu0 0.0
    %4619 = vmatpush1.msra.mxu0 %v1031
    %4620 = vmatprep.subr.mxu0 0.0
    %4621 = vmatpush1.msra.mxu0 0.0
    %4622 = vmatprep.subr.mxu0 0.0
    %4623 = vmatpush1.msra.mxu0 0.0
    %4624 = vmatprep.subr.mxu0 0.0
    %4625 = vmatpush1.msra.mxu0 0.0
    %4626 = vmatprep.subr.mxu0 0.0
    %4627 = vmatpush1.msra.mxu0 0.0
    %4628 = vmatprep.subr.mxu0 0.0
    %4629 = vmatpush1.msra.mxu0 0.0
    %4630 = vmatprep.subr.mxu0 0.0
    %4631 = vmatpush1.msra.mxu0 0.0
    %4632 = vmatprep.subr.mxu0 0.0
    %4633 = vmatpush1.msra.mxu0 0.0
    %4634 = vmatprep.subr.mxu0 0.0
    %4635 = vmatpush1.msra.mxu0 0.0
    %4636 = vmatprep.subr.mxu0 0.0
    %4637 = vmatpush1.msra.mxu0 0.0
    %4638 = vmatprep.subr.mxu0 0.0
    %4639 = vmatpush1.msra.mxu0 0.0
    %4640 = vmatprep.subr.mxu0 0.0
    %4641 = vmatpush1.msra.mxu0 0.0
    %4642 = vmatprep.subr.mxu0 0.0
    %4643 = vmatpush1.msra.mxu0 0.0
    %4644 = vmatprep.subr.mxu0 0.0
    %4645 = vmatpush1.msra.mxu0 0.0
    %4646 = vmatprep.subr.mxu0 0.0
    %4647 = vmatpush1.msra.mxu0 0.0
    %4648 = vmatprep.subr.mxu0 0.0
    %4649 = vmatpush1.msra.mxu0 0.0
    %4650 = vmatprep.subr.mxu0 0.0
    %4651 = vmatpush1.msra.mxu0 0.0
    %4652 = vmatprep.subr.mxu0 0.0
    %4653 = vmatpush1.msra.mxu0 0.0
    %4654 = vmatprep.subr.mxu0 0.0
    %4655 = vmatpush1.msra.mxu0 0.0
    %4656 = vmatprep.subr.mxu0 0.0
    %4657 = vmatpush1.msra.mxu0 0.0
    %4658 = vmatprep.subr.mxu0 0.0
    %4659 = vmatpush1.msra.mxu0 0.0
    %4660 = vmatprep.subr.mxu0 0.0
    %4661 = vmatpush1.msra.mxu0 0.0
    %4662 = vmatprep.subr.mxu0 0.0
    %4663 = vmatpush1.msra.mxu0 0.0
    %4664 = vmatprep.subr.mxu0 0.0
    %4665 = vmatpush1.msra.mxu0 0.0
    %4666 = vmatprep.subr.mxu0 0.0
    %4667 = vmatpush1.msra.mxu0 0.0
    %4668 = vmatprep.subr.mxu0 0.0
    %4669 = vmatpush1.msra.mxu0 0.0
    %4670 = vmatprep.subr.mxu0 0.0
    %4671 = vmatpush1.msra.mxu0 0.0
    %4672 = vmatprep.subr.mxu0 0.0
    %4673 = vmatpush1.msra.mxu0 0.0
    %4674 = vmatprep.subr.mxu0 0.0
    %4675 = vmatpush1.msra.mxu0 0.0
    %4676 = vmatprep.subr.mxu0 0.0
    %4677 = vmatpush1.msra.mxu0 0.0
    %4678 = vmatprep.subr.mxu0 0.0
    %4679 = vmatpush1.msra.mxu0 0.0
    %4680 = vmatprep.subr.mxu0 0.0
    %4681 = vmatpush1.msra.mxu0 0.0
    %4682 = vmatprep.mubr.f32.mxu0 0.0
    %4683 = vmatmul.mubr.f32.gmra.mrb[0].mxu0 %v4616
    %v4684 = vpop.f32.mrb[0].mxu0
    %v4685 = vadd.f32 %v4613, %v4684
    %v4686 = vpop.f32.mrb[0].mxu0
    %4687 = vdwg.mxu0
    %v4696 = vsel %vm2058, %v4022, %v4015
    %v4697 = vsel %vm2060, %v4029, %v4696
    %v4698 = vsel %vm2062, %v4036, %v4697
    %v4699 = vsel %vm2064, %v4043, %v4698
    %v4700 = vsel %vm2066, %v4050, %v4699
    %v4701 = vsel %vm2068, %v4057, %v4700
    %v4702 = vsel %vm2070, %v4064, %v4701
    %v4705 = vsel %vm1823, %v3104, 0
    %4707 = vmatprep.subr.mxu0 0.0
    %4708 = vmatpush1.msra.mxu0 %v1036
    %4709 = vmatprep.subr.mxu0 0.0
    %4710 = vmatpush1.msra.mxu0 0.0
    %4711 = vmatprep.subr.mxu0 0.0
    %4712 = vmatpush1.msra.mxu0 0.0
    %4713 = vmatprep.subr.mxu0 0.0
    %4714 = vmatpush1.msra.mxu0 0.0
    %4715 = vmatprep.subr.mxu0 0.0
    %4716 = vmatpush1.msra.mxu0 0.0
    %4717 = vmatprep.subr.mxu0 0.0
    %4718 = vmatpush1.msra.mxu0 0.0
    %4719 = vmatprep.subr.mxu0 0.0
    %4720 = vmatpush1.msra.mxu0 0.0
    %4721 = vmatprep.subr.mxu0 0.0
    %4722 = vmatpush1.msra.mxu0 0.0
    %4723 = vmatprep.subr.mxu0 0.0
    %4724 = vmatpush1.msra.mxu0 0.0
    %4725 = vmatprep.subr.mxu0 0.0
    %4726 = vmatpush1.msra.mxu0 0.0
    %4727 = vmatprep.subr.mxu0 0.0
    %4728 = vmatpush1.msra.mxu0 0.0
    %4729 = vmatprep.subr.mxu0 0.0
    %4730 = vmatpush1.msra.mxu0 0.0
    %4731 = vmatprep.subr.mxu0 0.0
    %4732 = vmatpush1.msra.mxu0 0.0
    %4733 = vmatprep.subr.mxu0 0.0
    %4734 = vmatpush1.msra.mxu0 0.0
    %4735 = vmatprep.subr.mxu0 0.0
    %4736 = vmatpush1.msra.mxu0 0.0
    %4737 = vmatprep.subr.mxu0 0.0
    %4738 = vmatpush1.msra.mxu0 0.0
    %4739 = vmatprep.subr.mxu0 0.0
    %4740 = vmatpush1.msra.mxu0 0.0
    %4741 = vmatprep.subr.mxu0 0.0
    %4742 = vmatpush1.msra.mxu0 0.0
    %4743 = vmatprep.subr.mxu0 0.0
    %4744 = vmatpush1.msra.mxu0 0.0
    %4745 = vmatprep.subr.mxu0 0.0
    %4746 = vmatpush1.msra.mxu0 0.0
    %4747 = vmatprep.subr.mxu0 0.0
    %4748 = vmatpush1.msra.mxu0 0.0
    %4749 = vmatprep.subr.mxu0 0.0
    %4750 = vmatpush1.msra.mxu0 0.0
    %4751 = vmatprep.subr.mxu0 0.0
    %4752 = vmatpush1.msra.mxu0 0.0
    %4753 = vmatprep.subr.mxu0 0.0
    %4754 = vmatpush1.msra.mxu0 0.0
    %4755 = vmatprep.subr.mxu0 0.0
    %4756 = vmatpush1.msra.mxu0 0.0
    %4757 = vmatprep.subr.mxu0 0.0
    %4758 = vmatpush1.msra.mxu0 0.0
    %4759 = vmatprep.subr.mxu0 0.0
    %4760 = vmatpush1.msra.mxu0 0.0
    %4761 = vmatprep.subr.mxu0 0.0
    %4762 = vmatpush1.msra.mxu0 0.0
    %4763 = vmatprep.subr.mxu0 0.0
    %4764 = vmatpush1.msra.mxu0 0.0
    %4765 = vmatprep.subr.mxu0 0.0
    %4766 = vmatpush1.msra.mxu0 0.0
    %4767 = vmatprep.subr.mxu0 0.0
    %4768 = vmatpush1.msra.mxu0 0.0
    %4769 = vmatprep.subr.mxu0 0.0
    %4770 = vmatpush1.msra.mxu0 0.0
    %4771 = vmatprep.mubr.f32.mxu0 0.0
    %4772 = vmatmul.mubr.f32.gmra.mrb[0].mxu0 %v4705
    %v4773 = vpop.f32.mrb[0].mxu0
    %v4774 = vadd.f32 %v4702, %v4773
    %v4775 = vpop.f32.mrb[0].mxu0
    %4776 = vdwg.mxu0
    %v4778 = vsel %vm1823, %v4151, 0
    %4780 = vmatprep.subr.mxu0 0.0
    %4781 = vmatpush1.msra.mxu0 %v105
    %4782 = vmatprep.subr.mxu0 0.0
    %4783 = vmatpush1.msra.mxu0 0.0
    %4784 = vmatprep.subr.mxu0 0.0
    %4785 = vmatpush1.msra.mxu0 0.0
    %4786 = vmatprep.subr.mxu0 0.0
    %4787 = vmatpush1.msra.mxu0 0.0
    %4788 = vmatprep.subr.mxu0 0.0
    %4789 = vmatpush1.msra.mxu0 0.0
    %4790 = vmatprep.subr.mxu0 0.0
    %4791 = vmatpush1.msra.mxu0 0.0
    %4792 = vmatprep.subr.mxu0 0.0
    %4793 = vmatpush1.msra.mxu0 0.0
    %4794 = vmatprep.subr.mxu0 0.0
    %4795 = vmatpush1.msra.mxu0 0.0
    %4796 = vmatprep.subr.mxu0 0.0
    %4797 = vmatpush1.msra.mxu0 0.0
    %4798 = vmatprep.subr.mxu0 0.0
    %4799 = vmatpush1.msra.mxu0 0.0
    %4800 = vmatprep.subr.mxu0 0.0
    %4801 = vmatpush1.msra.mxu0 0.0
    %4802 = vmatprep.subr.mxu0 0.0
    %4803 = vmatpush1.msra.mxu0 0.0
    %4804 = vmatprep.subr.mxu0 0.0
    %4805 = vmatpush1.msra.mxu0 0.0
    %4806 = vmatprep.subr.mxu0 0.0
    %4807 = vmatpush1.msra.mxu0 0.0
    %4808 = vmatprep.subr.mxu0 0.0
    %4809 = vmatpush1.msra.mxu0 0.0
    %4810 = vmatprep.subr.mxu0 0.0
    %4811 = vmatpush1.msra.mxu0 0.0
    %4812 = vmatprep.subr.mxu0 0.0
    %4813 = vmatpush1.msra.mxu0 0.0
    %4814 = vmatprep.subr.mxu0 0.0
    %4815 = vmatpush1.msra.mxu0 0.0
    %4816 = vmatprep.subr.mxu0 0.0
    %4817 = vmatpush1.msra.mxu0 0.0
    %4818 = vmatprep.subr.mxu0 0.0
    %4819 = vmatpush1.msra.mxu0 0.0
    %4820 = vmatprep.subr.mxu0 0.0
    %4821 = vmatpush1.msra.mxu0 0.0
    %4822 = vmatprep.subr.mxu0 0.0
    %4823 = vmatpush1.msra.mxu0 0.0
    %4824 = vmatprep.subr.mxu0 0.0
    %4825 = vmatpush1.msra.mxu0 0.0
    %4826 = vmatprep.subr.mxu0 0.0
    %4827 = vmatpush1.msra.mxu0 0.0
    %4828 = vmatprep.subr.mxu0 0.0
    %4829 = vmatpush1.msra.mxu0 0.0
    %4830 = vmatprep.subr.mxu0 0.0
    %4831 = vmatpush1.msra.mxu0 0.0
    %4832 = vmatprep.subr.mxu0 0.0
    %4833 = vmatpush1.msra.mxu0 0.0
    %4834 = vmatprep.subr.mxu0 0.0
    %4835 = vmatpush1.msra.mxu0 0.0
    %4836 = vmatprep.subr.mxu0 0.0
    %4837 = vmatpush1.msra.mxu0 0.0
    %4838 = vmatprep.subr.mxu0 0.0
    %4839 = vmatpush1.msra.mxu0 0.0
    %4840 = vmatprep.subr.mxu0 0.0
    %4841 = vmatpush1.msra.mxu0 0.0
    %4842 = vmatprep.subr.mxu0 0.0
    %4843 = vmatpush1.msra.mxu0 0.0
    %4844 = vmatprep.mubr.f32.mxu0 0.0
    %4845 = vmatmul.mubr.f32.gmra.mrb[0].mxu0 %v4778
    %v4846 = vpop.f32.mrb[0].mxu0
    %v4847 = vadd.f32 0.0, %v4846
    %v4848 = vpop.f32.mrb[0].mxu0
    %4849 = vdwg.mxu0
    %v4851 = vsel %vm1823, %v4240, 0
    %4853 = vmatprep.subr.mxu0 0.0
    %4854 = vmatpush1.msra.mxu0 %v106
    %4855 = vmatprep.subr.mxu0 0.0
    %4856 = vmatpush1.msra.mxu0 0.0
    %4857 = vmatprep.subr.mxu0 0.0
    %4858 = vmatpush1.msra.mxu0 0.0
    %4859 = vmatprep.subr.mxu0 0.0
    %4860 = vmatpush1.msra.mxu0 0.0
    %4861 = vmatprep.subr.mxu0 0.0
    %4862 = vmatpush1.msra.mxu0 0.0
    %4863 = vmatprep.subr.mxu0 0.0
    %4864 = vmatpush1.msra.mxu0 0.0
    %4865 = vmatprep.subr.mxu0 0.0
    %4866 = vmatpush1.msra.mxu0 0.0
    %4867 = vmatprep.subr.mxu0 0.0
    %4868 = vmatpush1.msra.mxu0 0.0
    %4869 = vmatprep.subr.mxu0 0.0
    %4870 = vmatpush1.msra.mxu0 0.0
    %4871 = vmatprep.subr.mxu0 0.0
    %4872 = vmatpush1.msra.mxu0 0.0
    %4873 = vmatprep.subr.mxu0 0.0
    %4874 = vmatpush1.msra.mxu0 0.0
    %4875 = vmatprep.subr.mxu0 0.0
    %4876 = vmatpush1.msra.mxu0 0.0
    %4877 = vmatprep.subr.mxu0 0.0
    %4878 = vmatpush1.msra.mxu0 0.0
    %4879 = vmatprep.subr.mxu0 0.0
    %4880 = vmatpush1.msra.mxu0 0.0
    %4881 = vmatprep.subr.mxu0 0.0
    %4882 = vmatpush1.msra.mxu0 0.0
    %4883 = vmatprep.subr.mxu0 0.0
    %4884 = vmatpush1.msra.mxu0 0.0
    %4885 = vmatprep.subr.mxu0 0.0
    %4886 = vmatpush1.msra.mxu0 0.0
    %4887 = vmatprep.subr.mxu0 0.0
    %4888 = vmatpush1.msra.mxu0 0.0
    %4889 = vmatprep.subr.mxu0 0.0
    %4890 = vmatpush1.msra.mxu0 0.0
    %4891 = vmatprep.subr.mxu0 0.0
    %4892 = vmatpush1.msra.mxu0 0.0
    %4893 = vmatprep.subr.mxu0 0.0
    %4894 = vmatpush1.msra.mxu0 0.0
    %4895 = vmatprep.subr.mxu0 0.0
    %4896 = vmatpush1.msra.mxu0 0.0
    %4897 = vmatprep.subr.mxu0 0.0
    %4898 = vmatpush1.msra.mxu0 0.0
    %4899 = vmatprep.subr.mxu0 0.0
    %4900 = vmatpush1.msra.mxu0 0.0
    %4901 = vmatprep.subr.mxu0 0.0
    %4902 = vmatpush1.msra.mxu0 0.0
    %4903 = vmatprep.subr.mxu0 0.0
    %4904 = vmatpush1.msra.mxu0 0.0
    %4905 = vmatprep.subr.mxu0 0.0
    %4906 = vmatpush1.msra.mxu0 0.0
    %4907 = vmatprep.subr.mxu0 0.0
    %4908 = vmatpush1.msra.mxu0 0.0
    %4909 = vmatprep.subr.mxu0 0.0
    %4910 = vmatpush1.msra.mxu0 0.0
    %4911 = vmatprep.subr.mxu0 0.0
    %4912 = vmatpush1.msra.mxu0 0.0
    %4913 = vmatprep.subr.mxu0 0.0
    %4914 = vmatpush1.msra.mxu0 0.0
    %4915 = vmatprep.subr.mxu0 0.0
    %4916 = vmatpush1.msra.mxu0 0.0
    %4917 = vmatprep.mubr.f32.mxu0 0.0
    %4918 = vmatmul.mubr.f32.gmra.mrb[0].mxu0 %v4851
    %v4919 = vpop.f32.mrb[0].mxu0
    %v4920 = vadd.f32 0.0, %v4919
    %v4921 = vpop.f32.mrb[0].mxu0
    %4922 = vdwg.mxu0
    %v4924 = vsel %vm1823, %v4329, 0
    %4926 = vmatprep.subr.mxu0 0.0
    %4927 = vmatpush1.msra.mxu0 %v107
    %4928 = vmatprep.subr.mxu0 0.0
    %4929 = vmatpush1.msra.mxu0 0.0
    %4930 = vmatprep.subr.mxu0 0.0
    %4931 = vmatpush1.msra.mxu0 0.0
    %4932 = vmatprep.subr.mxu0 0.0
    %4933 = vmatpush1.msra.mxu0 0.0
    %4934 = vmatprep.subr.mxu0 0.0
    %4935 = vmatpush1.msra.mxu0 0.0
    %4936 = vmatprep.subr.mxu0 0.0
    %4937 = vmatpush1.msra.mxu0 0.0
    %4938 = vmatprep.subr.mxu0 0.0
    %4939 = vmatpush1.msra.mxu0 0.0
    %4940 = vmatprep.subr.mxu0 0.0
    %4941 = vmatpush1.msra.mxu0 0.0
    %4942 = vmatprep.subr.mxu0 0.0
    %4943 = vmatpush1.msra.mxu0 0.0
    %4944 = vmatprep.subr.mxu0 0.0
    %4945 = vmatpush1.msra.mxu0 0.0
    %4946 = vmatprep.subr.mxu0 0.0
    %4947 = vmatpush1.msra.mxu0 0.0
    %4948 = vmatprep.subr.mxu0 0.0
    %4949 = vmatpush1.msra.mxu0 0.0
    %4950 = vmatprep.subr.mxu0 0.0
    %4951 = vmatpush1.msra.mxu0 0.0
    %4952 = vmatprep.subr.mxu0 0.0
    %4953 = vmatpush1.msra.mxu0 0.0
    %4954 = vmatprep.subr.mxu0 0.0
    %4955 = vmatpush1.msra.mxu0 0.0
    %4956 = vmatprep.subr.mxu0 0.0
    %4957 = vmatpush1.msra.mxu0 0.0
    %4958 = vmatprep.subr.mxu0 0.0
    %4959 = vmatpush1.msra.mxu0 0.0
    %4960 = vmatprep.subr.mxu0 0.0
    %4961 = vmatpush1.msra.mxu0 0.0
    %4962 = vmatprep.subr.mxu0 0.0
    %4963 = vmatpush1.msra.mxu0 0.0
    %4964 = vmatprep.subr.mxu0 0.0
    %4965 = vmatpush1.msra.mxu0 0.0
    %4966 = vmatprep.subr.mxu0 0.0
    %4967 = vmatpush1.msra.mxu0 0.0
    %4968 = vmatprep.subr.mxu0 0.0
    %4969 = vmatpush1.msra.mxu0 0.0
    %4970 = vmatprep.subr.mxu0 0.0
    %4971 = vmatpush1.msra.mxu0 0.0
    %4972 = vmatprep.subr.mxu0 0.0
    %4973 = vmatpush1.msra.mxu0 0.0
    %4974 = vmatprep.subr.mxu0 0.0
    %4975 = vmatpush1.msra.mxu0 0.0
    %4976 = vmatprep.subr.mxu0 0.0
    %4977 = vmatpush1.msra.mxu0 0.0
    %4978 = vmatprep.subr.mxu0 0.0
    %4979 = vmatpush1.msra.mxu0 0.0
    %4980 = vmatprep.subr.mxu0 0.0
    %4981 = vmatpush1.msra.mxu0 0.0
    %4982 = vmatprep.subr.mxu0 0.0
    %4983 = vmatpush1.msra.mxu0 0.0
    %4984 = vmatprep.subr.mxu0 0.0
    %4985 = vmatpush1.msra.mxu0 0.0
    %4986 = vmatprep.subr.mxu0 0.0
    %4987 = vmatpush1.msra.mxu0 0.0
    %4988 = vmatprep.subr.mxu0 0.0
    %4989 = vmatpush1.msra.mxu0 0.0
    %4990 = vmatprep.mubr.f32.mxu0 0.0
    %4991 = vmatmul.mubr.f32.gmra.mrb[0].mxu0 %v4924
    %v4992 = vpop.f32.mrb[0].mxu0
    %v4993 = vadd.f32 0.0, %v4992
    %v4994 = vpop.f32.mrb[0].mxu0
    %4995 = vdwg.mxu0
    %v4997 = vsel %vm1823, %v4418, 0
    %4999 = vmatprep.subr.mxu0 0.0
    %5000 = vmatpush1.msra.mxu0 %v108
    %5001 = vmatprep.subr.mxu0 0.0
    %5002 = vmatpush1.msra.mxu0 0.0
    %5003 = vmatprep.subr.mxu0 0.0
    %5004 = vmatpush1.msra.mxu0 0.0
    %5005 = vmatprep.subr.mxu0 0.0
    %5006 = vmatpush1.msra.mxu0 0.0
    %5007 = vmatprep.subr.mxu0 0.0
    %5008 = vmatpush1.msra.mxu0 0.0
    %5009 = vmatprep.subr.mxu0 0.0
    %5010 = vmatpush1.msra.mxu0 0.0
    %5011 = vmatprep.subr.mxu0 0.0
    %5012 = vmatpush1.msra.mxu0 0.0
    %5013 = vmatprep.subr.mxu0 0.0
    %5014 = vmatpush1.msra.mxu0 0.0
    %5015 = vmatprep.subr.mxu0 0.0
    %5016 = vmatpush1.msra.mxu0 0.0
    %5017 = vmatprep.subr.mxu0 0.0
    %5018 = vmatpush1.msra.mxu0 0.0
    %5019 = vmatprep.subr.mxu0 0.0
    %5020 = vmatpush1.msra.mxu0 0.0
    %5021 = vmatprep.subr.mxu0 0.0
    %5022 = vmatpush1.msra.mxu0 0.0
    %5023 = vmatprep.subr.mxu0 0.0
    %5024 = vmatpush1.msra.mxu0 0.0
    %5025 = vmatprep.subr.mxu0 0.0
    %5026 = vmatpush1.msra.mxu0 0.0
    %5027 = vmatprep.subr.mxu0 0.0
    %5028 = vmatpush1.msra.mxu0 0.0
    %5029 = vmatprep.subr.mxu0 0.0
    %5030 = vmatpush1.msra.mxu0 0.0
    %5031 = vmatprep.subr.mxu0 0.0
    %5032 = vmatpush1.msra.mxu0 0.0
    %5033 = vmatprep.subr.mxu0 0.0
    %5034 = vmatpush1.msra.mxu0 0.0
    %5035 = vmatprep.subr.mxu0 0.0
    %5036 = vmatpush1.msra.mxu0 0.0
    %5037 = vmatprep.subr.mxu0 0.0
    %5038 = vmatpush1.msra.mxu0 0.0
    %5039 = vmatprep.subr.mxu0 0.0
    %5040 = vmatpush1.msra.mxu0 0.0
    %5041 = vmatprep.subr.mxu0 0.0
    %5042 = vmatpush1.msra.mxu0 0.0
    %5043 = vmatprep.subr.mxu0 0.0
    %5044 = vmatpush1.msra.mxu0 0.0
    %5045 = vmatprep.subr.mxu0 0.0
    %5046 = vmatpush1.msra.mxu0 0.0
    %5047 = vmatprep.subr.mxu0 0.0
    %5048 = vmatpush1.msra.mxu0 0.0
    %5049 = vmatprep.subr.mxu0 0.0
    %5050 = vmatpush1.msra.mxu0 0.0
    %5051 = vmatprep.subr.mxu0 0.0
    %5052 = vmatpush1.msra.mxu0 0.0
    %5053 = vmatprep.subr.mxu0 0.0
    %5054 = vmatpush1.msra.mxu0 0.0
    %5055 = vmatprep.subr.mxu0 0.0
    %5056 = vmatpush1.msra.mxu0 0.0
    %5057 = vmatprep.subr.mxu0 0.0
    %5058 = vmatpush1.msra.mxu0 0.0
    %5059 = vmatprep.subr.mxu0 0.0
    %5060 = vmatpush1.msra.mxu0 0.0
    %5061 = vmatprep.subr.mxu0 0.0
    %5062 = vmatpush1.msra.mxu0 0.0
    %5063 = vmatprep.mubr.f32.mxu0 0.0
    %5064 = vmatmul.mubr.f32.gmra.mrb[0].mxu0 %v4997
    %v5065 = vpop.f32.mrb[0].mxu0
    %v5066 = vadd.f32 0.0, %v5065
    %v5067 = vpop.f32.mrb[0].mxu0
    %5068 = vdwg.mxu0
    %v5070 = vsel %vm1823, %v4507, 0
    %5072 = vmatprep.subr.mxu0 0.0
    %5073 = vmatpush1.msra.mxu0 %v109
    %5074 = vmatprep.subr.mxu0 0.0
    %5075 = vmatpush1.msra.mxu0 0.0
    %5076 = vmatprep.subr.mxu0 0.0
    %5077 = vmatpush1.msra.mxu0 0.0
    %5078 = vmatprep.subr.mxu0 0.0
    %5079 = vmatpush1.msra.mxu0 0.0
    %5080 = vmatprep.subr.mxu0 0.0
    %5081 = vmatpush1.msra.mxu0 0.0
    %5082 = vmatprep.subr.mxu0 0.0
    %5083 = vmatpush1.msra.mxu0 0.0
    %5084 = vmatprep.subr.mxu0 0.0
    %5085 = vmatpush1.msra.mxu0 0.0
    %5086 = vmatprep.subr.mxu0 0.0
    %5087 = vmatpush1.msra.mxu0 0.0
    %5088 = vmatprep.subr.mxu0 0.0
    %5089 = vmatpush1.msra.mxu0 0.0
    %5090 = vmatprep.subr.mxu0 0.0
    %5091 = vmatpush1.msra.mxu0 0.0
    %5092 = vmatprep.subr.mxu0 0.0
    %5093 = vmatpush1.msra.mxu0 0.0
    %5094 = vmatprep.subr.mxu0 0.0
    %5095 = vmatpush1.msra.mxu0 0.0
    %5096 = vmatprep.subr.mxu0 0.0
    %5097 = vmatpush1.msra.mxu0 0.0
    %5098 = vmatprep.subr.mxu0 0.0
    %5099 = vmatpush1.msra.mxu0 0.0
    %5100 = vmatprep.subr.mxu0 0.0
    %5101 = vmatpush1.msra.mxu0 0.0
    %5102 = vmatprep.subr.mxu0 0.0
    %5103 = vmatpush1.msra.mxu0 0.0
    %5104 = vmatprep.subr.mxu0 0.0
    %5105 = vmatpush1.msra.mxu0 0.0
    %5106 = vmatprep.subr.mxu0 0.0
    %5107 = vmatpush1.msra.mxu0 0.0
    %5108 = vmatprep.subr.mxu0 0.0
    %5109 = vmatpush1.msra.mxu0 0.0
    %5110 = vmatprep.subr.mxu0 0.0
    %5111 = vmatpush1.msra.mxu0 0.0
    %5112 = vmatprep.subr.mxu0 0.0
    %5113 = vmatpush1.msra.mxu0 0.0
    %5114 = vmatprep.subr.mxu0 0.0
    %5115 = vmatpush1.msra.mxu0 0.0
    %5116 = vmatprep.subr.mxu0 0.0
    %5117 = vmatpush1.msra.mxu0 0.0
    %5118 = vmatprep.subr.mxu0 0.0
    %5119 = vmatpush1.msra.mxu0 0.0
    %5120 = vmatprep.subr.mxu0 0.0
    %5121 = vmatpush1.msra.mxu0 0.0
    %5122 = vmatprep.subr.mxu0 0.0
    %5123 = vmatpush1.msra.mxu0 0.0
    %5124 = vmatprep.subr.mxu0 0.0
    %5125 = vmatpush1.msra.mxu0 0.0
    %5126 = vmatprep.subr.mxu0 0.0
    %5127 = vmatpush1.msra.mxu0 0.0
    %5128 = vmatprep.subr.mxu0 0.0
    %5129 = vmatpush1.msra.mxu0 0.0
    %5130 = vmatprep.subr.mxu0 0.0
    %5131 = vmatpush1.msra.mxu0 0.0
    %5132 = vmatprep.subr.mxu0 0.0
    %5133 = vmatpush1.msra.mxu0 0.0
    %5134 = vmatprep.subr.mxu0 0.0
    %5135 = vmatpush1.msra.mxu0 0.0
    %5136 = vmatprep.mubr.f32.mxu0 0.0
    %5137 = vmatmul.mubr.f32.gmra.mrb[0].mxu0 %v5070
    %v5138 = vpop.f32.mrb[0].mxu0
    %v5139 = vadd.f32 0.0, %v5138
    %v5140 = vpop.f32.mrb[0].mxu0
    %5141 = vdwg.mxu0
    %v5143 = vsel %vm1823, %v4596, 0
    %5145 = vmatprep.subr.mxu0 0.0
    %5146 = vmatpush1.msra.mxu0 %v110
    %5147 = vmatprep.subr.mxu0 0.0
    %5148 = vmatpush1.msra.mxu0 0.0
    %5149 = vmatprep.subr.mxu0 0.0
    %5150 = vmatpush1.msra.mxu0 0.0
    %5151 = vmatprep.subr.mxu0 0.0
    %5152 = vmatpush1.msra.mxu0 0.0
    %5153 = vmatprep.subr.mxu0 0.0
    %5154 = vmatpush1.msra.mxu0 0.0
    %5155 = vmatprep.subr.mxu0 0.0
    %5156 = vmatpush1.msra.mxu0 0.0
    %5157 = vmatprep.subr.mxu0 0.0
    %5158 = vmatpush1.msra.mxu0 0.0
    %5159 = vmatprep.subr.mxu0 0.0
    %5160 = vmatpush1.msra.mxu0 0.0
    %5161 = vmatprep.subr.mxu0 0.0
    %5162 = vmatpush1.msra.mxu0 0.0
    %5163 = vmatprep.subr.mxu0 0.0
    %5164 = vmatpush1.msra.mxu0 0.0
    %5165 = vmatprep.subr.mxu0 0.0
    %5166 = vmatpush1.msra.mxu0 0.0
    %5167 = vmatprep.subr.mxu0 0.0
    %5168 = vmatpush1.msra.mxu0 0.0
    %5169 = vmatprep.subr.mxu0 0.0
    %5170 = vmatpush1.msra.mxu0 0.0
    %5171 = vmatprep.subr.mxu0 0.0
    %5172 = vmatpush1.msra.mxu0 0.0
    %5173 = vmatprep.subr.mxu0 0.0
    %5174 = vmatpush1.msra.mxu0 0.0
    %5175 = vmatprep.subr.mxu0 0.0
    %5176 = vmatpush1.msra.mxu0 0.0
    %5177 = vmatprep.subr.mxu0 0.0
    %5178 = vmatpush1.msra.mxu0 0.0
    %5179 = vmatprep.subr.mxu0 0.0
    %5180 = vmatpush1.msra.mxu0 0.0
    %5181 = vmatprep.subr.mxu0 0.0
    %5182 = vmatpush1.msra.mxu0 0.0
    %5183 = vmatprep.subr.mxu0 0.0
    %5184 = vmatpush1.msra.mxu0 0.0
    %5185 = vmatprep.subr.mxu0 0.0
    %5186 = vmatpush1.msra.mxu0 0.0
    %5187 = vmatprep.subr.mxu0 0.0
    %5188 = vmatpush1.msra.mxu0 0.0
    %5189 = vmatprep.subr.mxu0 0.0
    %5190 = vmatpush1.msra.mxu0 0.0
    %5191 = vmatprep.subr.mxu0 0.0
    %5192 = vmatpush1.msra.mxu0 0.0
    %5193 = vmatprep.subr.mxu0 0.0
    %5194 = vmatpush1.msra.mxu0 0.0
    %5195 = vmatprep.subr.mxu0 0.0
    %5196 = vmatpush1.msra.mxu0 0.0
    %5197 = vmatprep.subr.mxu0 0.0
    %5198 = vmatpush1.msra.mxu0 0.0
    %5199 = vmatprep.subr.mxu0 0.0
    %5200 = vmatpush1.msra.mxu0 0.0
    %5201 = vmatprep.subr.mxu0 0.0
    %5202 = vmatpush1.msra.mxu0 0.0
    %5203 = vmatprep.subr.mxu0 0.0
    %5204 = vmatpush1.msra.mxu0 0.0
    %5205 = vmatprep.subr.mxu0 0.0
    %5206 = vmatpush1.msra.mxu0 0.0
    %5207 = vmatprep.subr.mxu0 0.0
    %5208 = vmatpush1.msra.mxu0 0.0
    %5209 = vmatprep.mubr.f32.mxu0 0.0
    %5210 = vmatmul.mubr.f32.gmra.mrb[0].mxu0 %v5143
    %v5211 = vpop.f32.mrb[0].mxu0
    %v5212 = vadd.f32 0.0, %v5211
    %v5213 = vpop.f32.mrb[0].mxu0
    %5214 = vdwg.mxu0
    %v5216 = vsel %vm1823, %v4685, 0
    %5218 = vmatprep.subr.mxu0 0.0
    %5219 = vmatpush1.msra.mxu0 %v111
    %5220 = vmatprep.subr.mxu0 0.0
    %5221 = vmatpush1.msra.mxu0 0.0
    %5222 = vmatprep.subr.mxu0 0.0
    %5223 = vmatpush1.msra.mxu0 0.0
    %5224 = vmatprep.subr.mxu0 0.0
    %5225 = vmatpush1.msra.mxu0 0.0
    %5226 = vmatprep.subr.mxu0 0.0
    %5227 = vmatpush1.msra.mxu0 0.0
    %5228 = vmatprep.subr.mxu0 0.0
    %5229 = vmatpush1.msra.mxu0 0.0
    %5230 = vmatprep.subr.mxu0 0.0
    %5231 = vmatpush1.msra.mxu0 0.0
    %5232 = vmatprep.subr.mxu0 0.0
    %5233 = vmatpush1.msra.mxu0 0.0
    %5234 = vmatprep.subr.mxu0 0.0
    %5235 = vmatpush1.msra.mxu0 0.0
    %5236 = vmatprep.subr.mxu0 0.0
    %5237 = vmatpush1.msra.mxu0 0.0
    %5238 = vmatprep.subr.mxu0 0.0
    %5239 = vmatpush1.msra.mxu0 0.0
    %5240 = vmatprep.subr.mxu0 0.0
    %5241 = vmatpush1.msra.mxu0 0.0
    %5242 = vmatprep.subr.mxu0 0.0
    %5243 = vmatpush1.msra.mxu0 0.0
    %5244 = vmatprep.subr.mxu0 0.0
    %5245 = vmatpush1.msra.mxu0 0.0
    %5246 = vmatprep.subr.mxu0 0.0
    %5247 = vmatpush1.msra.mxu0 0.0
    %5248 = vmatprep.subr.mxu0 0.0
    %5249 = vmatpush1.msra.mxu0 0.0
    %5250 = vmatprep.subr.mxu0 0.0
    %5251 = vmatpush1.msra.mxu0 0.0
    %5252 = vmatprep.subr.mxu0 0.0
    %5253 = vmatpush1.msra.mxu0 0.0
    %5254 = vmatprep.subr.mxu0 0.0
    %5255 = vmatpush1.msra.mxu0 0.0
    %5256 = vmatprep.subr.mxu0 0.0
    %5257 = vmatpush1.msra.mxu0 0.0
    %5258 = vmatprep.subr.mxu0 0.0
    %5259 = vmatpush1.msra.mxu0 0.0
    %5260 = vmatprep.subr.mxu0 0.0
    %5261 = vmatpush1.msra.mxu0 0.0
    %5262 = vmatprep.subr.mxu0 0.0
    %5263 = vmatpush1.msra.mxu0 0.0
    %5264 = vmatprep.subr.mxu0 0.0
    %5265 = vmatpush1.msra.mxu0 0.0
    %5266 = vmatprep.subr.mxu0 0.0
    %5267 = vmatpush1.msra.mxu0 0.0
    %5268 = vmatprep.subr.mxu0 0.0
    %5269 = vmatpush1.msra.mxu0 0.0
    %5270 = vmatprep.subr.mxu0 0.0
    %5271 = vmatpush1.msra.mxu0 0.0
    %5272 = vmatprep.subr.mxu0 0.0
    %5273 = vmatpush1.msra.mxu0 0.0
    %5274 = vmatprep.subr.mxu0 0.0
    %5275 = vmatpush1.msra.mxu0 0.0
    %5276 = vmatprep.subr.mxu0 0.0
    %5277 = vmatpush1.msra.mxu0 0.0
    %5278 = vmatprep.subr.mxu0 0.0
    %5279 = vmatpush1.msra.mxu0 0.0
    %5280 = vmatprep.subr.mxu0 0.0
    %5281 = vmatpush1.msra.mxu0 0.0
    %5282 = vmatprep.mubr.f32.mxu0 0.0
    %5283 = vmatmul.mubr.f32.gmra.mrb[0].mxu0 %v5216
    %v5284 = vpop.f32.mrb[0].mxu0
    %v5285 = vadd.f32 0.0, %v5284
    %v5286 = vpop.f32.mrb[0].mxu0
    %5287 = vdwg.mxu0
    %v5289 = vsel %vm1823, %v4774, 0
    %5291 = vmatprep.subr.mxu0 0.0
    %5292 = vmatpush1.msra.mxu0 %v112
    %5293 = vmatprep.subr.mxu0 0.0
    %5294 = vmatpush1.msra.mxu0 0.0
    %5295 = vmatprep.subr.mxu0 0.0
    %5296 = vmatpush1.msra.mxu0 0.0
    %5297 = vmatprep.subr.mxu0 0.0
    %5298 = vmatpush1.msra.mxu0 0.0
    %5299 = vmatprep.subr.mxu0 0.0
    %5300 = vmatpush1.msra.mxu0 0.0
    %5301 = vmatprep.subr.mxu0 0.0
    %5302 = vmatpush1.msra.mxu0 0.0
    %5303 = vmatprep.subr.mxu0 0.0
    %5304 = vmatpush1.msra.mxu0 0.0
    %5305 = vmatprep.subr.mxu0 0.0
    %5306 = vmatpush1.msra.mxu0 0.0
    %5307 = vmatprep.subr.mxu0 0.0
    %5308 = vmatpush1.msra.mxu0 0.0
    %5309 = vmatprep.subr.mxu0 0.0
    %5310 = vmatpush1.msra.mxu0 0.0
    %5311 = vmatprep.subr.mxu0 0.0
    %5312 = vmatpush1.msra.mxu0 0.0
    %5313 = vmatprep.subr.mxu0 0.0
    %5314 = vmatpush1.msra.mxu0 0.0
    %5315 = vmatprep.subr.mxu0 0.0
    %5316 = vmatpush1.msra.mxu0 0.0
    %5317 = vmatprep.subr.mxu0 0.0
    %5318 = vmatpush1.msra.mxu0 0.0
    %5319 = vmatprep.subr.mxu0 0.0
    %5320 = vmatpush1.msra.mxu0 0.0
    %5321 = vmatprep.subr.mxu0 0.0
    %5322 = vmatpush1.msra.mxu0 0.0
    %5323 = vmatprep.subr.mxu0 0.0
    %5324 = vmatpush1.msra.mxu0 0.0
    %5325 = vmatprep.subr.mxu0 0.0
    %5326 = vmatpush1.msra.mxu0 0.0
    %5327 = vmatprep.subr.mxu0 0.0
    %5328 = vmatpush1.msra.mxu0 0.0
    %5329 = vmatprep.subr.mxu0 0.0
    %5330 = vmatpush1.msra.mxu0 0.0
    %5331 = vmatprep.subr.mxu0 0.0
    %5332 = vmatpush1.msra.mxu0 0.0
    %5333 = vmatprep.subr.mxu0 0.0
    %5334 = vmatpush1.msra.mxu0 0.0
    %5335 = vmatprep.subr.mxu0 0.0
    %5336 = vmatpush1.msra.mxu0 0.0
    %5337 = vmatprep.subr.mxu0 0.0
    %5338 = vmatpush1.msra.mxu0 0.0
    %5339 = vmatprep.subr.mxu0 0.0
    %5340 = vmatpush1.msra.mxu0 0.0
    %5341 = vmatprep.subr.mxu0 0.0
    %5342 = vmatpush1.msra.mxu0 0.0
    %5343 = vmatprep.subr.mxu0 0.0
    %5344 = vmatpush1.msra.mxu0 0.0
    %5345 = vmatprep.subr.mxu0 0.0
    %5346 = vmatpush1.msra.mxu0 0.0
    %5347 = vmatprep.subr.mxu0 0.0
    %5348 = vmatpush1.msra.mxu0 0.0
    %5349 = vmatprep.subr.mxu0 0.0
    %5350 = vmatpush1.msra.mxu0 0.0
    %5351 = vmatprep.subr.mxu0 0.0
    %5352 = vmatpush1.msra.mxu0 0.0
    %5353 = vmatprep.subr.mxu0 0.0
    %5354 = vmatpush1.msra.mxu0 0.0
    %5355 = vmatprep.mubr.f32.mxu0 0.0
    %5356 = vmatmul.mubr.f32.gmra.mrb[0].mxu0 %v5289
    %v5357 = vpop.f32.mrb[0].mxu0
    %v5358 = vadd.f32 0.0, %v5357
    %v5359 = vpop.f32.mrb[0].mxu0
    %5360 = vdwg.mxu0
    %v5361 = vsel %vm132, %v4847, 0.0
    %v5362 = vsel %vm132, %v4993, 0.0
    %v5363 = vadd.f32 %v5361, %v5362
    %v5364 = vsel %vm132, %v5139, 0.0
    %v5365 = vadd.f32 %v5363, %v5364
    %v5366 = vsel %vm132, %v5285, 0.0
    %v5367 = vadd.f32 %v5365, %v5366
    %v5368 = vsel %vm132, %v4920, 0.0
    %v5369 = vsel %vm132, %v5066, 0.0
    %v5370 = vadd.f32 %v5368, %v5369
    %v5371 = vsel %vm132, %v5212, 0.0
    %v5372 = vadd.f32 %v5370, %v5371
    %v5373 = vsel %vm132, %v5358, 0.0
    %v5374 = vadd.f32 %v5372, %v5373
    %v5375 = vlaneseq
    %v5376 = vshrl.u32 %v5375, 7
    %v5377 = vsub.s32 0, %v5376
    %v5378 = vrot.slane %v125, %v5377
    %v5379 = vadd.f32 %v5367, %v5378
    %v5380 = vadd.f32 %v5374, %v5378
    %v5381 = vadd.f32 %v15, %v5379
    %v5382 = vadd.f32 %v16, %v5380
    %v5383 = vsel %vm132, %v5381, 0.0
    %5384 = vadd.xlane.f32.xlu0 %v5383
    %v5385 = vpop.xlane.xlu0 %5384
    %v5386 = vsel %vm132, %v5382, 0.0
    %5387 = vadd.xlane.f32.xlu0 %v5386
    %v5388 = vpop.xlane.xlu0 %5387
    %v5389 = vrcp.pop 32.0
    %v5390 = vmul.f32 %v5385, %v5389
    %v5391 = vmul.f32 %v5388, %v5389
    %v5392 = vsub.f32 %v5381, %v5390
    %v5393 = vsub.f32 %v5382, %v5391
    %v5394 = vmul.f32 %v5392, %v5392
    %v5395 = vmul.f32 %v5393, %v5393
    %v5396 = vsel %vm132, %v5394, 0.0
    %5397 = vadd.xlane.f32.xlu0 %v5396
    %v5398 = vpop.xlane.xlu0 %5397
    %v5399 = vsel %vm132, %v5395, 0.0
    %5400 = vadd.xlane.f32.xlu0 %v5399
    %v5401 = vpop.xlane.xlu0 %5400
    %v5402 = vmul.f32 %v5398, %v5389
    %v5403 = vmul.f32 %v5401, %v5389
    %v5404 = vadd.f32 %v5402, 1e-05
    %v5405 = vadd.f32 %v5403, 1e-05
    %v5406 = vrsqrt.pop %v5404
    %v5407 = vrsqrt.pop %v5405
    %v5408 = vmul.f32 %v5392, %v5406
    %v5409 = vmul.f32 %v5393, %v5407
    %v5410 = vlaneseq
    %v5411 = vshrl.u32 %v5410, 7
    %v5412 = vsub.s32 0, %v5411
    %v5413 = vrot.slane %v126, %v5412
    %v5414 = vmul.f32 %v5408, %v5413
    %v5415 = vmul.f32 %v5409, %v5413
    %v5416 = vlaneseq
    %v5417 = vshrl.u32 %v5416, 7
    %v5418 = vsub.s32 0, %v5417
    %v5419 = vrot.slane %v127, %v5418
    %v5420 = vadd.f32 %v5414, %v5419
    %v5421 = vadd.f32 %v5415, %v5419
    %v5422 = vlaneseq
    %v5423 = vshrl.u32 %v5422, 7
    %v5424 = vsub.s32 0, %v5423
    %v5425 = vrot.slane %v128, %v5424
    %v5427 = vsel %vm132, %v5420, 0
    %v5430 = vsel %vm132, %v5421, 0
    %5432 = vmatprep.subr.mxu0 0.0
    %5433 = vmatpush1.msra.mxu0 %v113
    %5434 = vmatprep.subr.mxu0 0.0
    %5435 = vmatpush1.msra.mxu0 %v114
    %5436 = vmatprep.subr.mxu0 0.0
    %5437 = vmatpush1.msra.mxu0 %v115
    %5438 = vmatprep.subr.mxu0 0.0
    %5439 = vmatpush1.msra.mxu0 %v116
    %5440 = vmatprep.subr.mxu0 0.0
    %5441 = vmatpush1.msra.mxu0 0.0
    %5442 = vmatprep.subr.mxu0 0.0
    %5443 = vmatpush1.msra.mxu0 0.0
    %5444 = vmatprep.subr.mxu0 0.0
    %5445 = vmatpush1.msra.mxu0 0.0
    %5446 = vmatprep.subr.mxu0 0.0
    %5447 = vmatpush1.msra.mxu0 0.0
    %5448 = vmatprep.subr.mxu0 0.0
    %5449 = vmatpush1.msra.mxu0 0.0
    %5450 = vmatprep.subr.mxu0 0.0
    %5451 = vmatpush1.msra.mxu0 0.0
    %5452 = vmatprep.subr.mxu0 0.0
    %5453 = vmatpush1.msra.mxu0 0.0
    %5454 = vmatprep.subr.mxu0 0.0
    %5455 = vmatpush1.msra.mxu0 0.0
    %5456 = vmatprep.subr.mxu0 0.0
    %5457 = vmatpush1.msra.mxu0 0.0
    %5458 = vmatprep.subr.mxu0 0.0
    %5459 = vmatpush1.msra.mxu0 0.0
    %5460 = vmatprep.subr.mxu0 0.0
    %5461 = vmatpush1.msra.mxu0 0.0
    %5462 = vmatprep.subr.mxu0 0.0
    %5463 = vmatpush1.msra.mxu0 0.0
    %5464 = vmatprep.subr.mxu0 0.0
    %5465 = vmatpush1.msra.mxu0 0.0
    %5466 = vmatprep.subr.mxu0 0.0
    %5467 = vmatpush1.msra.mxu0 0.0
    %5468 = vmatprep.subr.mxu0 0.0
    %5469 = vmatpush1.msra.mxu0 0.0
    %5470 = vmatprep.subr.mxu0 0.0
    %5471 = vmatpush1.msra.mxu0 0.0
    %5472 = vmatprep.subr.mxu0 0.0
    %5473 = vmatpush1.msra.mxu0 0.0
    %5474 = vmatprep.subr.mxu0 0.0
    %5475 = vmatpush1.msra.mxu0 0.0
    %5476 = vmatprep.subr.mxu0 0.0
    %5477 = vmatpush1.msra.mxu0 0.0
    %5478 = vmatprep.subr.mxu0 0.0
    %5479 = vmatpush1.msra.mxu0 0.0
    %5480 = vmatprep.subr.mxu0 0.0
    %5481 = vmatpush1.msra.mxu0 0.0
    %5482 = vmatprep.subr.mxu0 0.0
    %5483 = vmatpush1.msra.mxu0 0.0
    %5484 = vmatprep.subr.mxu0 0.0
    %5485 = vmatpush1.msra.mxu0 0.0
    %5486 = vmatprep.subr.mxu0 0.0
    %5487 = vmatpush1.msra.mxu0 0.0
    %5488 = vmatprep.subr.mxu0 0.0
    %5489 = vmatpush1.msra.mxu0 0.0
    %5490 = vmatprep.subr.mxu0 0.0
    %5491 = vmatpush1.msra.mxu0 0.0
    %5492 = vmatprep.subr.mxu0 0.0
    %5493 = vmatpush1.msra.mxu0 0.0
    %5494 = vmatprep.subr.mxu0 0.0
    %5495 = vmatpush1.msra.mxu0 0.0
    %5496 = vmatprep.mubr.f32.mxu0 0.0
    %5497 = vmatmul.mubr.f32.gmra.mrb[0].mxu0 %v5427
    %v5498 = vpop.f32.mrb[0].mxu0
    %v5499 = vadd.f32 %v5425, %v5498
    %v5500 = vpop.f32.mrb[0].mxu0
    %5501 = vmatprep.mubr.f32.mxu0 0.0
    %5502 = vmatmul.mubr.f32.gmra.mrb[0].mxu0 %v5430
    %v5503 = vpop.f32.mrb[0].mxu0
    %v5504 = vadd.f32 %v5425, %v5503
    %v5505 = vpop.f32.mrb[0].mxu0
    %5506 = vdwg.mxu0
    %v5507 = vmax.f32 %v5499, 0.0
    %v5508 = vmax.f32 %v5504, 0.0
    %v5509 = vlaneseq
    %v5510 = vshrl.u32 %v5509, 7
    %v5511 = vsub.s32 0, %v5510
    %v5512 = vrot.slane %v129, %v5511
    %vm5513 = vcmask 523264
    %v5515 = vsel %vm5513, %v5507, 0
    %v5518 = vsel %vm5513, %v5508, 0
    %5520 = vmatprep.subr.mxu0 0.0
    %5521 = vmatpush1.msra.mxu0 %v117
    %5522 = vmatprep.subr.mxu0 0.0
    %5523 = vmatpush1.msra.mxu0 %v118
    %5524 = vmatprep.subr.mxu0 0.0
    %5525 = vmatpush1.msra.mxu0 %v119
    %5526 = vmatprep.subr.mxu0 0.0
    %5527 = vmatpush1.msra.mxu0 %v120
    %5528 = vmatprep.subr.mxu0 0.0
    %5529 = vmatpush1.msra.mxu0 %v121
    %5530 = vmatprep.subr.mxu0 0.0
    %5531 = vmatpush1.msra.mxu0 %v122
    %5532 = vmatprep.subr.mxu0 0.0
    %5533 = vmatpush1.msra.mxu0 %v123
    %5534 = vmatprep.subr.mxu0 0.0
    %5535 = vmatpush1.msra.mxu0 %v124
    %5536 = vmatprep.subr.mxu0 0.0
    %5537 = vmatpush1.msra.mxu0 0.0
    %5538 = vmatprep.subr.mxu0 0.0
    %5539 = vmatpush1.msra.mxu0 0.0
    %5540 = vmatprep.subr.mxu0 0.0
    %5541 = vmatpush1.msra.mxu0 0.0
    %5542 = vmatprep.subr.mxu0 0.0
    %5543 = vmatpush1.msra.mxu0 0.0
    %5544 = vmatprep.subr.mxu0 0.0
    %5545 = vmatpush1.msra.mxu0 0.0
    %5546 = vmatprep.subr.mxu0 0.0
    %5547 = vmatpush1.msra.mxu0 0.0
    %5548 = vmatprep.subr.mxu0 0.0
    %5549 = vmatpush1.msra.mxu0 0.0
    %5550 = vmatprep.subr.mxu0 0.0
    %5551 = vmatpush1.msra.mxu0 0.0
    %5552 = vmatprep.subr.mxu0 0.0
    %5553 = vmatpush1.msra.mxu0 0.0
    %5554 = vmatprep.subr.mxu0 0.0
    %5555 = vmatpush1.msra.mxu0 0.0
    %5556 = vmatprep.subr.mxu0 0.0
    %5557 = vmatpush1.msra.mxu0 0.0
    %5558 = vmatprep.subr.mxu0 0.0
    %5559 = vmatpush1.msra.mxu0 0.0
    %5560 = vmatprep.subr.mxu0 0.0
    %5561 = vmatpush1.msra.mxu0 0.0
    %5562 = vmatprep.subr.mxu0 0.0
    %5563 = vmatpush1.msra.mxu0 0.0
    %5564 = vmatprep.subr.mxu0 0.0
    %5565 = vmatpush1.msra.mxu0 0.0
    %5566 = vmatprep.subr.mxu0 0.0
    %5567 = vmatpush1.msra.mxu0 0.0
    %5568 = vmatprep.subr.mxu0 0.0
    %5569 = vmatpush1.msra.mxu0 0.0
    %5570 = vmatprep.subr.mxu0 0.0
    %5571 = vmatpush1.msra.mxu0 0.0
    %5572 = vmatprep.subr.mxu0 0.0
    %5573 = vmatpush1.msra.mxu0 0.0
    %5574 = vmatprep.subr.mxu0 0.0
    %5575 = vmatpush1.msra.mxu0 0.0
    %5576 = vmatprep.subr.mxu0 0.0
    %5577 = vmatpush1.msra.mxu0 0.0
    %5578 = vmatprep.subr.mxu0 0.0
    %5579 = vmatpush1.msra.mxu0 0.0
    %5580 = vmatprep.subr.mxu0 0.0
    %5581 = vmatpush1.msra.mxu0 0.0
    %5582 = vmatprep.subr.mxu0 0.0
    %5583 = vmatpush1.msra.mxu0 0.0
    %5584 = vmatprep.mubr.f32.mxu0 0.0
    %5585 = vmatmul.mubr.f32.gmra.mrb[0].mxu0 %v5515
    %v5586 = vpop.f32.mrb[0].mxu0
    %v5587 = vadd.f32 %v5512, %v5586
    %v5588 = vpop.f32.mrb[0].mxu0
    %5589 = vmatprep.mubr.f32.mxu0 0.0
    %5590 = vmatmul.mubr.f32.gmra.mrb[0].mxu0 %v5518
    %v5591 = vpop.f32.mrb[0].mxu0
    %v5592 = vadd.f32 %v5512, %v5591
    %v5593 = vpop.f32.mrb[0].mxu0
    %5594 = vdwg.mxu0
    %v5595 = vadd.f32 %v5420, %v5587
    %v5596 = vadd.f32 %v5421, %v5592
    %v5597 = vsel %vm132, %v5595, 0.0
    %5598 = vadd.xlane.f32.xlu0 %v5597
    %v5599 = vpop.xlane.xlu0 %5598
    %v5600 = vsel %vm132, %v5596, 0.0
    %5601 = vadd.xlane.f32.xlu0 %v5600
    %v5602 = vpop.xlane.xlu0 %5601
    %v5603 = vmul.f32 %v5599, %v5389
    %v5604 = vmul.f32 %v5602, %v5389
    %v5605 = vsub.f32 %v5595, %v5603
    %v5606 = vsub.f32 %v5596, %v5604
    %v5607 = vmul.f32 %v5605, %v5605
    %v5608 = vmul.f32 %v5606, %v5606
    %v5609 = vsel %vm132, %v5607, 0.0
    %5610 = vadd.xlane.f32.xlu0 %v5609
    %v5611 = vpop.xlane.xlu0 %5610
    %v5612 = vsel %vm132, %v5608, 0.0
    %5613 = vadd.xlane.f32.xlu0 %v5612
    %v5614 = vpop.xlane.xlu0 %5613
    %v5615 = vmul.f32 %v5611, %v5389
    %v5616 = vmul.f32 %v5614, %v5389
    %v5617 = vadd.f32 %v5615, 1e-05
    %v5618 = vadd.f32 %v5616, 1e-05
    %v5619 = vrsqrt.pop %v5617
    %v5620 = vrsqrt.pop %v5618
    %v5621 = vmul.f32 %v5605, %v5619
    %v5622 = vmul.f32 %v5606, %v5620
    %v5623 = vlaneseq
    %v5624 = vshrl.u32 %v5623, 7
    %v5625 = vsub.s32 0, %v5624
    %v5626 = vrot.slane %v130, %v5625
    %v5627 = vmul.f32 %v5621, %v5626
    %v5628 = vmul.f32 %v5622, %v5626
    %v5629 = vlaneseq
    %v5630 = vshrl.u32 %v5629, 7
    %v5631 = vsub.s32 0, %v5630
    %v5632 = vrot.slane %v131, %v5631
    %v5633 = vadd.f32 %v5627, %v5632
    %v5634 = vadd.f32 %v5628, %v5632
    %5635 = vst.msk [vmem:[#allocation2] sm:$0xff] %vm132, %v5633
    %5636 = vst.msk [vmem:[#allocation2 + $0x8] sm:$0xff] %vm132, %v5634
    // Predicated region
    $region14: #{encoder_layer.1} parent=1 // pred_check
      _
    $region15: #{encoder_layer.1} parent=1 // pred_check_branch
      %5638 = sbr.rel (0) target = $region17
    $region16: #{encoder_layer.1} parent=1 // pred_region
      %s5640 = ssub.s32 256, 256
      %5641 = vsyncadd [#allocation3], %s5640
      %s5642 = sshll.u32 [#allocation2], 4
      %s5643 = int_to_ptr.vmem [resolvable:$true] %s5642
      %5648 = dma.vmem_to_hbm [thread:$0]  %s5643, 256, %s3, [#allocation3], 128, 128, 8
    $region17: #{encoder_layer.1} parent=1 // pred_fallthru
      _
    // Predicated region
    $region18: #{encoder_layer.1} parent=1 // pred_check
      _
    $region19: #{encoder_layer.1} parent=1 // pred_check_branch
      %5650 = sbr.rel (0) target = $region21
    $region20: #{encoder_layer.1} parent=1 // pred_region
      %5651 = dma.done [#allocation3], 256
    $region21: #{encoder_layer.1} parent=1 // pred_fallthru
      _
    %5652 = vsyncpa [#allocation3], 1

</llo_original>
